<compile_context>
chip_gen: v6e
topology: v6e:2x2x1
jax: 0.10.0
libtpu: 0.0.40
codegen_flags: <defaults>
</compile_context>

<pallas_src>
import jax
import jax.numpy as jnp
from jax.experimental import pallas as pl
from jax.experimental.pallas import tpu as pltpu


def _spatial_attn_kernel(TB, C, H, W, K):
    """Build a kernel specialized for static (TB, C, H, W, K)."""
    P = K // 2
    inv_c = 1.0 / C

    def kernel(w_ref, x_ref, o_ref, avg_ref, mx_ref):
        # w_ref   : SMEM (2*K*K,) f32   flattened conv weight [avg taps | max taps]
        # x_ref   : VMEM (TB, C, H, W)  unpadded input block
        # o_ref   : VMEM (TB, H, W)     sigmoid(conv) output block
        # avg/mx  : VMEM (TB, H+2P, W+2P) zero-padded pooled maps (scratch)

        # Scratch persists across grid steps (and is per-core under megacore
        # sharding), so re-zero the halo every step.  It is only a few KiB.
        avg_ref[...] = jnp.zeros_like(avg_ref)
        mx_ref[...] = jnp.zeros_like(mx_ref)

        # Channel-wise mean / max with f32 accumulation (unrolled over C).
        # TODO(synk): for very large C, switch to lax.fori_loop with dynamic
        # channel indexing to bound unrolled code size.
        x0 = x_ref[:, 0].astype(jnp.float32)
        s = x0
        m = x0
        for c in range(1, C):
            xc = x_ref[:, c].astype(jnp.float32)
            s = s + xc
            m = jnp.maximum(m, xc)

        # Write pooled maps into the interior of the zeroed scratch: this IS
        # the 'same' zero padding of the concatenated (avg, max) maps.
        avg_ref[:, P:P + H, P:P + W] = s * inv_c
        mx_ref[:, P:P + H, P:P + W] = m
        avg_p = avg_ref[...]
        mx_p = mx_ref[...]

        # KxK 'same' conv over the two pooled maps, unrolled over taps.
        acc = jnp.zeros((TB, H, W), jnp.float32)
        for dy in range(K):
            for dx in range(K):
                a_sl = avg_p[:, dy:dy + H, dx:dx + W]
                m_sl = mx_p[:, dy:dy + H, dx:dx + W]
                acc = acc + w_ref[dy * K + dx] * a_sl \
                          + w_ref[K * K + dy * K + dx] * m_sl

        o_ref[...] = jax.nn.sigmoid(acc).astype(o_ref.dtype)

    return kernel


def spatial_attention(x, w):
    """x: (B, C, H, W) NCHW; w: (1, 2, K, K) conv1 weight (bias-free).
    Returns sigmoid(conv1(cat([mean_c(x), max_c(x)], 1))) of shape (B,1,H,W)."""
    B, C, H, W = x.shape
    K = w.shape[-1]
    assert w.shape == (1, 2, K, K)
    P = K // 2
    Hp, Wp = H + 2 * P, W + 2 * P

    # Flatten weight for SMEM scalar taps: [0:K*K]=avg channel, [K*K:]=max.
    w_flat = w.reshape(2 * K * K).astype(jnp.float32)

    # Batch tile: largest divisor of B that is <= 8 (amortizes per-step
    # overhead; block stays tiny vs. v7x's 64 MiB VMEM as well as v5e/v6e).
    TB = 1
    for d in range(2, min(B, 8) + 1):
        if B % d == 0:
            TB = d

    kernel = _spatial_attn_kernel(TB, C, H, W, K)

    # TODO(synk): for very large C or H*W, add channel/spatial grid axes with a
    # VMEM scratch accumulator (halo'd spatial tiles) instead of one full block.
    out = pl.pallas_call(
        kernel,
        out_shape=jax.ShapeDtypeStruct((B, H, W), x.dtype),
        grid_spec=pltpu.PrefetchScalarGridSpec(
            num_scalar_prefetch=1,
            grid=(B // TB,),
            in_specs=[
                pl.BlockSpec((TB, C, H, W), lambda b, w_s: (b, 0, 0, 0)),
            ],
            out_specs=pl.BlockSpec((TB, H, W), lambda b, w_s: (b, 0, 0)),
            scratch_shapes=[
                pltpu.VMEM((TB, Hp, Wp), jnp.float32),   # padded avg map
                pltpu.VMEM((TB, Hp, Wp), jnp.float32),   # padded max map
            ],
        ),
        compiler_params=pltpu.CompilerParams(
            dimension_semantics=("parallel",)),
    )(w_flat, x)

    return out.reshape(B, 1, H, W)


def spatial_attention_ref(x, w):
    """Pure-JAX reference mirroring the PyTorch module."""
    K = w.shape[-1]
    P = K // 2
    avg = jnp.mean(x, axis=1, keepdims=True)
    mx = jnp.max(x, axis=1, keepdims=True)
    xc = jnp.concatenate([avg, mx], axis=1)                 # (B, 2, H, W)
    y = jax.lax.conv_general_dilated(
        xc, w, window_strides=(1, 1), padding=((P, P), (P, P)),
        dimension_numbers=("NCHW", "OIHW", "NCHW"))
    return jax.nn.sigmoid(y)                                # (B, 1, H, W)


if __name__ == "__main__":
    # Small shapes consistent with the module: kernel_size must be 3 or 7.
    B, C, H, W = 2, 4, 16, 16
    K = 7

    key = jax.random.PRNGKey(0)
    kx, kw = jax.random.split(key)
    x = jax.random.normal(kx, (B, C, H, W), dtype=jnp.float32)
    w = jax.random.normal(kw, (1, 2, K, K), dtype=jnp.float32) * 0.1

    out = spatial_attention(x, w)
    out = jax.block_until_ready(out)

    ref = spatial_attention_ref(x, w)
    assert out.shape == (B, 1, H, W)
    assert jnp.allclose(out, ref, atol=1e-5, rtol=1e-5), "mismatch vs reference"

    print("KERNEL_OK")
</pallas_src>

<mosaic_0001>
module attributes {stable_mosaic.version = 11 : i64} {
  func.func @kernel(%arg0: i32, %arg1: memref<98xf32, #tpu.memory_space<smem>>, %arg2: memref<2x4x16x16xf32, #tpu.memory_space<vmem>>, %arg3: memref<2x16x16xf32, #tpu.memory_space<vmem>>, %arg4: memref<2x22x22xf32, #tpu.memory_space<vmem>>, %arg5: memref<2x22x22xf32, #tpu.memory_space<vmem>>) attributes {dimension_semantics = [#tpu.dimension_semantics<parallel>], iteration_bounds = array<i64: 1>, scalar_prefetch = 1 : i64, scratch_operands = 2 : i64, tpu.core_type = #tpu.core_type<tc>, window_params = [{transform_indices = @transform_0, window_bounds = array<i64: 2, 4, 16, 16>}, {transform_indices = @transform_1, window_bounds = array<i64: 2, 16, 16>}]} {
    %cst = arith.constant 0.000000e+00 : f32
    %0 = vector.broadcast %cst : f32 to vector<2x22x22xf32>
    %c0 = arith.constant 0 : index
    %c0_0 = arith.constant 0 : index
    %c0_1 = arith.constant 0 : index
    %1 = vector.load %arg4[%c0, %c0_0, %c0_1] : memref<2x22x22xf32, #tpu.memory_space<vmem>>, vector<2x22x22xf32>
    tpu.vector_store %arg4[%c0, %c0_0, %c0_1], %0 {strides = array<i32>} : memref<2x22x22xf32, #tpu.memory_space<vmem>>, vector<2x22x22xf32>,
    %cst_2 = arith.constant 0.000000e+00 : f32
    %2 = vector.broadcast %cst_2 : f32 to vector<2x22x22xf32>
    %c0_3 = arith.constant 0 : index
    %c0_4 = arith.constant 0 : index
    %c0_5 = arith.constant 0 : index
    %3 = vector.load %arg5[%c0_3, %c0_4, %c0_5] : memref<2x22x22xf32, #tpu.memory_space<vmem>>, vector<2x22x22xf32>
    tpu.vector_store %arg5[%c0_3, %c0_4, %c0_5], %2 {strides = array<i32>} : memref<2x22x22xf32, #tpu.memory_space<vmem>>, vector<2x22x22xf32>,
    %c0_6 = arith.constant 0 : index
    %c0_7 = arith.constant 0 : index
    %c0_8 = arith.constant 0 : index
    %c0_9 = arith.constant 0 : index
    %4 = vector.load %arg2[%c0_6, %c0_7, %c0_8, %c0_9] : memref<2x4x16x16xf32, #tpu.memory_space<vmem>>, vector<2x1x16x16xf32>
    %5 = vector.shape_cast %4 : vector<2x1x16x16xf32> to vector<2x16x16xf32>
    %c0_10 = arith.constant 0 : index
    %c1 = arith.constant 1 : index
    %c0_11 = arith.constant 0 : index
    %c0_12 = arith.constant 0 : index
    %6 = vector.load %arg2[%c0_10, %c1, %c0_11, %c0_12] : memref<2x4x16x16xf32, #tpu.memory_space<vmem>>, vector<2x1x16x16xf32>
    %7 = vector.shape_cast %6 : vector<2x1x16x16xf32> to vector<2x16x16xf32>
    %8 = arith.addf %5, %7 : vector<2x16x16xf32>
    %9 = arith.maximumf %5, %7 : vector<2x16x16xf32>
    %c0_13 = arith.constant 0 : index
    %c2 = arith.constant 2 : index
    %c0_14 = arith.constant 0 : index
    %c0_15 = arith.constant 0 : index
    %10 = vector.load %arg2[%c0_13, %c2, %c0_14, %c0_15] : memref<2x4x16x16xf32, #tpu.memory_space<vmem>>, vector<2x1x16x16xf32>
    %11 = vector.shape_cast %10 : vector<2x1x16x16xf32> to vector<2x16x16xf32>
    %12 = arith.addf %8, %11 : vector<2x16x16xf32>
    %13 = arith.maximumf %9, %11 : vector<2x16x16xf32>
    %c0_16 = arith.constant 0 : index
    %c3 = arith.constant 3 : index
    %c0_17 = arith.constant 0 : index
    %c0_18 = arith.constant 0 : index
    %14 = vector.load %arg2[%c0_16, %c3, %c0_17, %c0_18] : memref<2x4x16x16xf32, #tpu.memory_space<vmem>>, vector<2x1x16x16xf32>
    %15 = vector.shape_cast %14 : vector<2x1x16x16xf32> to vector<2x16x16xf32>
    %16 = arith.addf %12, %15 : vector<2x16x16xf32>
    %17 = arith.maximumf %13, %15 : vector<2x16x16xf32>
    %cst_19 = arith.constant 2.500000e-01 : f32
    %18 = vector.broadcast %cst_19 : f32 to vector<2x16x16xf32>
    %19 = arith.mulf %16, %18 : vector<2x16x16xf32>
    %c0_20 = arith.constant 0 : index
    %c3_21 = arith.constant 3 : index
    %c3_22 = arith.constant 3 : index
    %20 = vector.load %arg4[%c0_20, %c3_21, %c3_22] : memref<2x22x22xf32, #tpu.memory_space<vmem>>, vector<2x16x16xf32>
    tpu.vector_store %arg4[%c0_20, %c3_21, %c3_22], %19 {strides = array<i32>} : memref<2x22x22xf32, #tpu.memory_space<vmem>>, vector<2x16x16xf32>,
    %c0_23 = arith.constant 0 : index
    %c3_24 = arith.constant 3 : index
    %c3_25 = arith.constant 3 : index
    %21 = vector.load %arg5[%c0_23, %c3_24, %c3_25] : memref<2x22x22xf32, #tpu.memory_space<vmem>>, vector<2x16x16xf32>
    tpu.vector_store %arg5[%c0_23, %c3_24, %c3_25], %17 {strides = array<i32>} : memref<2x22x22xf32, #tpu.memory_space<vmem>>, vector<2x16x16xf32>,
    %c0_26 = arith.constant 0 : index
    %c0_27 = arith.constant 0 : index
    %c0_28 = arith.constant 0 : index
    %22 = vector.load %arg4[%c0_26, %c0_27, %c0_28] : memref<2x22x22xf32, #tpu.memory_space<vmem>>, vector<2x22x22xf32>
    %c0_29 = arith.constant 0 : index
    %c0_30 = arith.constant 0 : index
    %c0_31 = arith.constant 0 : index
    %23 = vector.load %arg5[%c0_29, %c0_30, %c0_31] : memref<2x22x22xf32, #tpu.memory_space<vmem>>, vector<2x22x22xf32>
    %cst_32 = arith.constant 0.000000e+00 : f32
    %24 = vector.broadcast %cst_32 : f32 to vector<2x16x16xf32>
    %25 = vector.extract_strided_slice %22 {offsets = [0, 0, 0], sizes = [2, 16, 16], strides = [1, 1, 1]} : vector<2x22x22xf32> to vector<2x16x16xf32>
    %26 = vector.extract_strided_slice %23 {offsets = [0, 0, 0], sizes = [2, 16, 16], strides = [1, 1, 1]} : vector<2x22x22xf32> to vector<2x16x16xf32>
    %c0_33 = arith.constant 0 : index
    %27 = memref.load %arg1[%c0_33] : memref<98xf32, #tpu.memory_space<smem>>
    %28 = vector.broadcast %27 : f32 to vector<2x16x16xf32>
    %29 = arith.mulf %28, %25 : vector<2x16x16xf32>
    %30 = arith.addf %24, %29 : vector<2x16x16xf32>
    %c49 = arith.constant 49 : index
    %31 = memref.load %arg1[%c49] : memref<98xf32, #tpu.memory_space<smem>>
    %32 = vector.broadcast %31 : f32 to vector<2x16x16xf32>
    %33 = arith.mulf %32, %26 : vector<2x16x16xf32>
    %34 = arith.addf %30, %33 : vector<2x16x16xf32>
    %35 = vector.extract_strided_slice %22 {offsets = [0, 0, 1], sizes = [2, 16, 16], strides = [1, 1, 1]} : vector<2x22x22xf32> to vector<2x16x16xf32>
    %36 = vector.extract_strided_slice %23 {offsets = [0, 0, 1], sizes = [2, 16, 16], strides = [1, 1, 1]} : vector<2x22x22xf32> to vector<2x16x16xf32>
    %c1_34 = arith.constant 1 : index
    %37 = memref.load %arg1[%c1_34] : memref<98xf32, #tpu.memory_space<smem>>
    %38 = vector.broadcast %37 : f32 to vector<2x16x16xf32>
    %39 = arith.mulf %38, %35 : vector<2x16x16xf32>
    %40 = arith.addf %34, %39 : vector<2x16x16xf32>
    %c50 = arith.constant 50 : index
    %41 = memref.load %arg1[%c50] : memref<98xf32, #tpu.memory_space<smem>>
    %42 = vector.broadcast %41 : f32 to vector<2x16x16xf32>
    %43 = arith.mulf %42, %36 : vector<2x16x16xf32>
    %44 = arith.addf %40, %43 : vector<2x16x16xf32>
    %45 = vector.extract_strided_slice %22 {offsets = [0, 0, 2], sizes = [2, 16, 16], strides = [1, 1, 1]} : vector<2x22x22xf32> to vector<2x16x16xf32>
    %46 = vector.extract_strided_slice %23 {offsets = [0, 0, 2], sizes = [2, 16, 16], strides = [1, 1, 1]} : vector<2x22x22xf32> to vector<2x16x16xf32>
    %c2_35 = arith.constant 2 : index
    %47 = memref.load %arg1[%c2_35] : memref<98xf32, #tpu.memory_space<smem>>
    %48 = vector.broadcast %47 : f32 to vector<2x16x16xf32>
    %49 = arith.mulf %48, %45 : vector<2x16x16xf32>
    %50 = arith.addf %44, %49 : vector<2x16x16xf32>
    %c51 = arith.constant 51 : index
    %51 = memref.load %arg1[%c51] : memref<98xf32, #tpu.memory_space<smem>>
    %52 = vector.broadcast %51 : f32 to vector<2x16x16xf32>
    %53 = arith.mulf %52, %46 : vector<2x16x16xf32>
    %54 = arith.addf %50, %53 : vector<2x16x16xf32>
    %55 = vector.extract_strided_slice %22 {offsets = [0, 0, 3], sizes = [2, 16, 16], strides = [1, 1, 1]} : vector<2x22x22xf32> to vector<2x16x16xf32>
    %56 = vector.extract_strided_slice %23 {offsets = [0, 0, 3], sizes = [2, 16, 16], strides = [1, 1, 1]} : vector<2x22x22xf32> to vector<2x16x16xf32>
    %c3_36 = arith.constant 3 : index
    %57 = memref.load %arg1[%c3_36] : memref<98xf32, #tpu.memory_space<smem>>
    %58 = vector.broadcast %57 : f32 to vector<2x16x16xf32>
    %59 = arith.mulf %58, %55 : vector<2x16x16xf32>
    %60 = arith.addf %54, %59 : vector<2x16x16xf32>
    %c52 = arith.constant 52 : index
    %61 = memref.load %arg1[%c52] : memref<98xf32, #tpu.memory_space<smem>>
    %62 = vector.broadcast %61 : f32 to vector<2x16x16xf32>
    %63 = arith.mulf %62, %56 : vector<2x16x16xf32>
    %64 = arith.addf %60, %63 : vector<2x16x16xf32>
    %65 = vector.extract_strided_slice %22 {offsets = [0, 0, 4], sizes = [2, 16, 16], strides = [1, 1, 1]} : vector<2x22x22xf32> to vector<2x16x16xf32>
    %66 = vector.extract_strided_slice %23 {offsets = [0, 0, 4], sizes = [2, 16, 16], strides = [1, 1, 1]} : vector<2x22x22xf32> to vector<2x16x16xf32>
    %c4 = arith.constant 4 : index
    %67 = memref.load %arg1[%c4] : memref<98xf32, #tpu.memory_space<smem>>
    %68 = vector.broadcast %67 : f32 to vector<2x16x16xf32>
    %69 = arith.mulf %68, %65 : vector<2x16x16xf32>
    %70 = arith.addf %64, %69 : vector<2x16x16xf32>
    %c53 = arith.constant 53 : index
    %71 = memref.load %arg1[%c53] : memref<98xf32, #tpu.memory_space<smem>>
    %72 = vector.broadcast %71 : f32 to vector<2x16x16xf32>
    %73 = arith.mulf %72, %66 : vector<2x16x16xf32>
    %74 = arith.addf %70, %73 : vector<2x16x16xf32>
    %75 = vector.extract_strided_slice %22 {offsets = [0, 0, 5], sizes = [2, 16, 16], strides = [1, 1, 1]} : vector<2x22x22xf32> to vector<2x16x16xf32>
    %76 = vector.extract_strided_slice %23 {offsets = [0, 0, 5], sizes = [2, 16, 16], strides = [1, 1, 1]} : vector<2x22x22xf32> to vector<2x16x16xf32>
    %c5 = arith.constant 5 : index
    %77 = memref.load %arg1[%c5] : memref<98xf32, #tpu.memory_space<smem>>
    %78 = vector.broadcast %77 : f32 to vector<2x16x16xf32>
    %79 = arith.mulf %78, %75 : vector<2x16x16xf32>
    %80 = arith.addf %74, %79 : vector<2x16x16xf32>
    %c54 = arith.constant 54 : index
    %81 = memref.load %arg1[%c54] : memref<98xf32, #tpu.memory_space<smem>>
    %82 = vector.broadcast %81 : f32 to vector<2x16x16xf32>
    %83 = arith.mulf %82, %76 : vector<2x16x16xf32>
    %84 = arith.addf %80, %83 : vector<2x16x16xf32>
    %85 = vector.extract_strided_slice %22 {offsets = [0, 0, 6], sizes = [2, 16, 16], strides = [1, 1, 1]} : vector<2x22x22xf32> to vector<2x16x16xf32>
    %86 = vector.extract_strided_slice %23 {offsets = [0, 0, 6], sizes = [2, 16, 16], strides = [1, 1, 1]} : vector<2x22x22xf32> to vector<2x16x16xf32>
    %c6 = arith.constant 6 : index
    %87 = memref.load %arg1[%c6] : memref<98xf32, #tpu.memory_space<smem>>
    %88 = vector.broadcast %87 : f32 to vector<2x16x16xf32>
    %89 = arith.mulf %88, %85 : vector<2x16x16xf32>
    %90 = arith.addf %84, %89 : vector<2x16x16xf32>
    %c55 = arith.constant 55 : index
    %91 = memref.load %arg1[%c55] : memref<98xf32, #tpu.memory_space<smem>>
    %92 = vector.broadcast %91 : f32 to vector<2x16x16xf32>
    %93 = arith.mulf %92, %86 : vector<2x16x16xf32>
    %94 = arith.addf %90, %93 : vector<2x16x16xf32>
    %95 = vector.extract_strided_slice %22 {offsets = [0, 1, 0], sizes = [2, 16, 16], strides = [1, 1, 1]} : vector<2x22x22xf32> to vector<2x16x16xf32>
    %96 = vector.extract_strided_slice %23 {offsets = [0, 1, 0], sizes = [2, 16, 16], strides = [1, 1, 1]} : vector<2x22x22xf32> to vector<2x16x16xf32>
    %c7 = arith.constant 7 : index
    %97 = memref.load %arg1[%c7] : memref<98xf32, #tpu.memory_space<smem>>
    %98 = vector.broadcast %97 : f32 to vector<2x16x16xf32>
    %99 = arith.mulf %98, %95 : vector<2x16x16xf32>
    %100 = arith.addf %94, %99 : vector<2x16x16xf32>
    %c56 = arith.constant 56 : index
    %101 = memref.load %arg1[%c56] : memref<98xf32, #tpu.memory_space<smem>>
    %102 = vector.broadcast %101 : f32 to vector<2x16x16xf32>
    %103 = arith.mulf %102, %96 : vector<2x16x16xf32>
    %104 = arith.addf %100, %103 : vector<2x16x16xf32>
    %105 = vector.extract_strided_slice %22 {offsets = [0, 1, 1], sizes = [2, 16, 16], strides = [1, 1, 1]} : vector<2x22x22xf32> to vector<2x16x16xf32>
    %106 = vector.extract_strided_slice %23 {offsets = [0, 1, 1], sizes = [2, 16, 16], strides = [1, 1, 1]} : vector<2x22x22xf32> to vector<2x16x16xf32>
    %c8 = arith.constant 8 : index
    %107 = memref.load %arg1[%c8] : memref<98xf32, #tpu.memory_space<smem>>
    %108 = vector.broadcast %107 : f32 to vector<2x16x16xf32>
    %109 = arith.mulf %108, %105 : vector<2x16x16xf32>
    %110 = arith.addf %104, %109 : vector<2x16x16xf32>
    %c57 = arith.constant 57 : index
    %111 = memref.load %arg1[%c57] : memref<98xf32, #tpu.memory_space<smem>>
    %112 = vector.broadcast %111 : f32 to vector<2x16x16xf32>
    %113 = arith.mulf %112, %106 : vector<2x16x16xf32>
    %114 = arith.addf %110, %113 : vector<2x16x16xf32>
    %115 = vector.extract_strided_slice %22 {offsets = [0, 1, 2], sizes = [2, 16, 16], strides = [1, 1, 1]} : vector<2x22x22xf32> to vector<2x16x16xf32>
    %116 = vector.extract_strided_slice %23 {offsets = [0, 1, 2], sizes = [2, 16, 16], strides = [1, 1, 1]} : vector<2x22x22xf32> to vector<2x16x16xf32>
    %c9 = arith.constant 9 : index
    %117 = memref.load %arg1[%c9] : memref<98xf32, #tpu.memory_space<smem>>
    %118 = vector.broadcast %117 : f32 to vector<2x16x16xf32>
    %119 = arith.mulf %118, %115 : vector<2x16x16xf32>
    %120 = arith.addf %114, %119 : vector<2x16x16xf32>
    %c58 = arith.constant 58 : index
    %121 = memref.load %arg1[%c58] : memref<98xf32, #tpu.memory_space<smem>>
    %122 = vector.broadcast %121 : f32 to vector<2x16x16xf32>
    %123 = arith.mulf %122, %116 : vector<2x16x16xf32>
    %124 = arith.addf %120, %123 : vector<2x16x16xf32>
    %125 = vector.extract_strided_slice %22 {offsets = [0, 1, 3], sizes = [2, 16, 16], strides = [1, 1, 1]} : vector<2x22x22xf32> to vector<2x16x16xf32>
    %126 = vector.extract_strided_slice %23 {offsets = [0, 1, 3], sizes = [2, 16, 16], strides = [1, 1, 1]} : vector<2x22x22xf32> to vector<2x16x16xf32>
    %c10 = arith.constant 10 : index
    %127 = memref.load %arg1[%c10] : memref<98xf32, #tpu.memory_space<smem>>
    %128 = vector.broadcast %127 : f32 to vector<2x16x16xf32>
    %129 = arith.mulf %128, %125 : vector<2x16x16xf32>
    %130 = arith.addf %124, %129 : vector<2x16x16xf32>
    %c59 = arith.constant 59 : index
    %131 = memref.load %arg1[%c59] : memref<98xf32, #tpu.memory_space<smem>>
    %132 = vector.broadcast %131 : f32 to vector<2x16x16xf32>
    %133 = arith.mulf %132, %126 : vector<2x16x16xf32>
    %134 = arith.addf %130, %133 : vector<2x16x16xf32>
    %135 = vector.extract_strided_slice %22 {offsets = [0, 1, 4], sizes = [2, 16, 16], strides = [1, 1, 1]} : vector<2x22x22xf32> to vector<2x16x16xf32>
    %136 = vector.extract_strided_slice %23 {offsets = [0, 1, 4], sizes = [2, 16, 16], strides = [1, 1, 1]} : vector<2x22x22xf32> to vector<2x16x16xf32>
    %c11 = arith.constant 11 : index
    %137 = memref.load %arg1[%c11] : memref<98xf32, #tpu.memory_space<smem>>
    %138 = vector.broadcast %137 : f32 to vector<2x16x16xf32>
    %139 = arith.mulf %138, %135 : vector<2x16x16xf32>
    %140 = arith.addf %134, %139 : vector<2x16x16xf32>
    %c60 = arith.constant 60 : index
    %141 = memref.load %arg1[%c60] : memref<98xf32, #tpu.memory_space<smem>>
    %142 = vector.broadcast %141 : f32 to vector<2x16x16xf32>
    %143 = arith.mulf %142, %136 : vector<2x16x16xf32>
    %144 = arith.addf %140, %143 : vector<2x16x16xf32>
    %145 = vector.extract_strided_slice %22 {offsets = [0, 1, 5], sizes = [2, 16, 16], strides = [1, 1, 1]} : vector<2x22x22xf32> to vector<2x16x16xf32>
    %146 = vector.extract_strided_slice %23 {offsets = [0, 1, 5], sizes = [2, 16, 16], strides = [1, 1, 1]} : vector<2x22x22xf32> to vector<2x16x16xf32>
    %c12 = arith.constant 12 : index
    %147 = memref.load %arg1[%c12] : memref<98xf32, #tpu.memory_space<smem>>
    %148 = vector.broadcast %147 : f32 to vector<2x16x16xf32>
    %149 = arith.mulf %148, %145 : vector<2x16x16xf32>
    %150 = arith.addf %144, %149 : vector<2x16x16xf32>
    %c61 = arith.constant 61 : index
    %151 = memref.load %arg1[%c61] : memref<98xf32, #tpu.memory_space<smem>>
    %152 = vector.broadcast %151 : f32 to vector<2x16x16xf32>
    %153 = arith.mulf %152, %146 : vector<2x16x16xf32>
    %154 = arith.addf %150, %153 : vector<2x16x16xf32>
    %155 = vector.extract_strided_slice %22 {offsets = [0, 1, 6], sizes = [2, 16, 16], strides = [1, 1, 1]} : vector<2x22x22xf32> to vector<2x16x16xf32>
    %156 = vector.extract_strided_slice %23 {offsets = [0, 1, 6], sizes = [2, 16, 16], strides = [1, 1, 1]} : vector<2x22x22xf32> to vector<2x16x16xf32>
    %c13 = arith.constant 13 : index
    %157 = memref.load %arg1[%c13] : memref<98xf32, #tpu.memory_space<smem>>
    %158 = vector.broadcast %157 : f32 to vector<2x16x16xf32>
    %159 = arith.mulf %158, %155 : vector<2x16x16xf32>
    %160 = arith.addf %154, %159 : vector<2x16x16xf32>
    %c62 = arith.constant 62 : index
    %161 = memref.load %arg1[%c62] : memref<98xf32, #tpu.memory_space<smem>>
    %162 = vector.broadcast %161 : f32 to vector<2x16x16xf32>
    %163 = arith.mulf %162, %156 : vector<2x16x16xf32>
    %164 = arith.addf %160, %163 : vector<2x16x16xf32>
    %165 = vector.extract_strided_slice %22 {offsets = [0, 2, 0], sizes = [2, 16, 16], strides = [1, 1, 1]} : vector<2x22x22xf32> to vector<2x16x16xf32>
    %166 = vector.extract_strided_slice %23 {offsets = [0, 2, 0], sizes = [2, 16, 16], strides = [1, 1, 1]} : vector<2x22x22xf32> to vector<2x16x16xf32>
    %c14 = arith.constant 14 : index
    %167 = memref.load %arg1[%c14] : memref<98xf32, #tpu.memory_space<smem>>
    %168 = vector.broadcast %167 : f32 to vector<2x16x16xf32>
    %169 = arith.mulf %168, %165 : vector<2x16x16xf32>
    %170 = arith.addf %164, %169 : vector<2x16x16xf32>
    %c63 = arith.constant 63 : index
    %171 = memref.load %arg1[%c63] : memref<98xf32, #tpu.memory_space<smem>>
    %172 = vector.broadcast %171 : f32 to vector<2x16x16xf32>
    %173 = arith.mulf %172, %166 : vector<2x16x16xf32>
    %174 = arith.addf %170, %173 : vector<2x16x16xf32>
    %175 = vector.extract_strided_slice %22 {offsets = [0, 2, 1], sizes = [2, 16, 16], strides = [1, 1, 1]} : vector<2x22x22xf32> to vector<2x16x16xf32>
    %176 = vector.extract_strided_slice %23 {offsets = [0, 2, 1], sizes = [2, 16, 16], strides = [1, 1, 1]} : vector<2x22x22xf32> to vector<2x16x16xf32>
    %c15 = arith.constant 15 : index
    %177 = memref.load %arg1[%c15] : memref<98xf32, #tpu.memory_space<smem>>
    %178 = vector.broadcast %177 : f32 to vector<2x16x16xf32>
    %179 = arith.mulf %178, %175 : vector<2x16x16xf32>
    %180 = arith.addf %174, %179 : vector<2x16x16xf32>
    %c64 = arith.constant 64 : index
    %181 = memref.load %arg1[%c64] : memref<98xf32, #tpu.memory_space<smem>>
    %182 = vector.broadcast %181 : f32 to vector<2x16x16xf32>
    %183 = arith.mulf %182, %176 : vector<2x16x16xf32>
    %184 = arith.addf %180, %183 : vector<2x16x16xf32>
    %185 = vector.extract_strided_slice %22 {offsets = [0, 2, 2], sizes = [2, 16, 16], strides = [1, 1, 1]} : vector<2x22x22xf32> to vector<2x16x16xf32>
    %186 = vector.extract_strided_slice %23 {offsets = [0, 2, 2], sizes = [2, 16, 16], strides = [1, 1, 1]} : vector<2x22x22xf32> to vector<2x16x16xf32>
    %c16 = arith.constant 16 : index
    %187 = memref.load %arg1[%c16] : memref<98xf32, #tpu.memory_space<smem>>
    %188 = vector.broadcast %187 : f32 to vector<2x16x16xf32>
    %189 = arith.mulf %188, %185 : vector<2x16x16xf32>
    %190 = arith.addf %184, %189 : vector<2x16x16xf32>
    %c65 = arith.constant 65 : index
    %191 = memref.load %arg1[%c65] : memref<98xf32, #tpu.memory_space<smem>>
    %192 = vector.broadcast %191 : f32 to vector<2x16x16xf32>
    %193 = arith.mulf %192, %186 : vector<2x16x16xf32>
    %194 = arith.addf %190, %193 : vector<2x16x16xf32>
    %195 = vector.extract_strided_slice %22 {offsets = [0, 2, 3], sizes = [2, 16, 16], strides = [1, 1, 1]} : vector<2x22x22xf32> to vector<2x16x16xf32>
    %196 = vector.extract_strided_slice %23 {offsets = [0, 2, 3], sizes = [2, 16, 16], strides = [1, 1, 1]} : vector<2x22x22xf32> to vector<2x16x16xf32>
    %c17 = arith.constant 17 : index
    %197 = memref.load %arg1[%c17] : memref<98xf32, #tpu.memory_space<smem>>
    %198 = vector.broadcast %197 : f32 to vector<2x16x16xf32>
    %199 = arith.mulf %198, %195 : vector<2x16x16xf32>
    %200 = arith.addf %194, %199 : vector<2x16x16xf32>
    %c66 = arith.constant 66 : index
    %201 = memref.load %arg1[%c66] : memref<98xf32, #tpu.memory_space<smem>>
    %202 = vector.broadcast %201 : f32 to vector<2x16x16xf32>
    %203 = arith.mulf %202, %196 : vector<2x16x16xf32>
    %204 = arith.addf %200, %203 : vector<2x16x16xf32>
    %205 = vector.extract_strided_slice %22 {offsets = [0, 2, 4], sizes = [2, 16, 16], strides = [1, 1, 1]} : vector<2x22x22xf32> to vector<2x16x16xf32>
    %206 = vector.extract_strided_slice %23 {offsets = [0, 2, 4], sizes = [2, 16, 16], strides = [1, 1, 1]} : vector<2x22x22xf32> to vector<2x16x16xf32>
    %c18 = arith.constant 18 : index
    %207 = memref.load %arg1[%c18] : memref<98xf32, #tpu.memory_space<smem>>
    %208 = vector.broadcast %207 : f32 to vector<2x16x16xf32>
    %209 = arith.mulf %208, %205 : vector<2x16x16xf32>
    %210 = arith.addf %204, %209 : vector<2x16x16xf32>
    %c67 = arith.constant 67 : index
    %211 = memref.load %arg1[%c67] : memref<98xf32, #tpu.memory_space<smem>>
    %212 = vector.broadcast %211 : f32 to vector<2x16x16xf32>
    %213 = arith.mulf %212, %206 : vector<2x16x16xf32>
    %214 = arith.addf %210, %213 : vector<2x16x16xf32>
    %215 = vector.extract_strided_slice %22 {offsets = [0, 2, 5], sizes = [2, 16, 16], strides = [1, 1, 1]} : vector<2x22x22xf32> to vector<2x16x16xf32>
    %216 = vector.extract_strided_slice %23 {offsets = [0, 2, 5], sizes = [2, 16, 16], strides = [1, 1, 1]} : vector<2x22x22xf32> to vector<2x16x16xf32>
    %c19 = arith.constant 19 : index
    %217 = memref.load %arg1[%c19] : memref<98xf32, #tpu.memory_space<smem>>
    %218 = vector.broadcast %217 : f32 to vector<2x16x16xf32>
    %219 = arith.mulf %218, %215 : vector<2x16x16xf32>
    %220 = arith.addf %214, %219 : vector<2x16x16xf32>
    %c68 = arith.constant 68 : index
    %221 = memref.load %arg1[%c68] : memref<98xf32, #tpu.memory_space<smem>>
    %222 = vector.broadcast %221 : f32 to vector<2x16x16xf32>
    %223 = arith.mulf %222, %216 : vector<2x16x16xf32>
    %224 = arith.addf %220, %223 : vector<2x16x16xf32>
    %225 = vector.extract_strided_slice %22 {offsets = [0, 2, 6], sizes = [2, 16, 16], strides = [1, 1, 1]} : vector<2x22x22xf32> to vector<2x16x16xf32>
    %226 = vector.extract_strided_slice %23 {offsets = [0, 2, 6], sizes = [2, 16, 16], strides = [1, 1, 1]} : vector<2x22x22xf32> to vector<2x16x16xf32>
    %c20 = arith.constant 20 : index
    %227 = memref.load %arg1[%c20] : memref<98xf32, #tpu.memory_space<smem>>
    %228 = vector.broadcast %227 : f32 to vector<2x16x16xf32>
    %229 = arith.mulf %228, %225 : vector<2x16x16xf32>
    %230 = arith.addf %224, %229 : vector<2x16x16xf32>
    %c69 = arith.constant 69 : index
    %231 = memref.load %arg1[%c69] : memref<98xf32, #tpu.memory_space<smem>>
    %232 = vector.broadcast %231 : f32 to vector<2x16x16xf32>
    %233 = arith.mulf %232, %226 : vector<2x16x16xf32>
    %234 = arith.addf %230, %233 : vector<2x16x16xf32>
    %235 = vector.extract_strided_slice %22 {offsets = [0, 3, 0], sizes = [2, 16, 16], strides = [1, 1, 1]} : vector<2x22x22xf32> to vector<2x16x16xf32>
    %236 = vector.extract_strided_slice %23 {offsets = [0, 3, 0], sizes = [2, 16, 16], strides = [1, 1, 1]} : vector<2x22x22xf32> to vector<2x16x16xf32>
    %c21 = arith.constant 21 : index
    %237 = memref.load %arg1[%c21] : memref<98xf32, #tpu.memory_space<smem>>
    %238 = vector.broadcast %237 : f32 to vector<2x16x16xf32>
    %239 = arith.mulf %238, %235 : vector<2x16x16xf32>
    %240 = arith.addf %234, %239 : vector<2x16x16xf32>
    %c70 = arith.constant 70 : index
    %241 = memref.load %arg1[%c70] : memref<98xf32, #tpu.memory_space<smem>>
    %242 = vector.broadcast %241 : f32 to vector<2x16x16xf32>
    %243 = arith.mulf %242, %236 : vector<2x16x16xf32>
    %244 = arith.addf %240, %243 : vector<2x16x16xf32>
    %245 = vector.extract_strided_slice %22 {offsets = [0, 3, 1], sizes = [2, 16, 16], strides = [1, 1, 1]} : vector<2x22x22xf32> to vector<2x16x16xf32>
    %246 = vector.extract_strided_slice %23 {offsets = [0, 3, 1], sizes = [2, 16, 16], strides = [1, 1, 1]} : vector<2x22x22xf32> to vector<2x16x16xf32>
    %c22 = arith.constant 22 : index
    %247 = memref.load %arg1[%c22] : memref<98xf32, #tpu.memory_space<smem>>
    %248 = vector.broadcast %247 : f32 to vector<2x16x16xf32>
    %249 = arith.mulf %248, %245 : vector<2x16x16xf32>
    %250 = arith.addf %244, %249 : vector<2x16x16xf32>
    %c71 = arith.constant 71 : index
    %251 = memref.load %arg1[%c71] : memref<98xf32, #tpu.memory_space<smem>>
    %252 = vector.broadcast %251 : f32 to vector<2x16x16xf32>
    %253 = arith.mulf %252, %246 : vector<2x16x16xf32>
    %254 = arith.addf %250, %253 : vector<2x16x16xf32>
    %255 = vector.extract_strided_slice %22 {offsets = [0, 3, 2], sizes = [2, 16, 16], strides = [1, 1, 1]} : vector<2x22x22xf32> to vector<2x16x16xf32>
    %256 = vector.extract_strided_slice %23 {offsets = [0, 3, 2], sizes = [2, 16, 16], strides = [1, 1, 1]} : vector<2x22x22xf32> to vector<2x16x16xf32>
    %c23 = arith.constant 23 : index
    %257 = memref.load %arg1[%c23] : memref<98xf32, #tpu.memory_space<smem>>
    %258 = vector.broadcast %257 : f32 to vector<2x16x16xf32>
    %259 = arith.mulf %258, %255 : vector<2x16x16xf32>
    %260 = arith.addf %254, %259 : vector<2x16x16xf32>
    %c72 = arith.constant 72 : index
    %261 = memref.load %arg1[%c72] : memref<98xf32, #tpu.memory_space<smem>>
    %262 = vector.broadcast %261 : f32 to vector<2x16x16xf32>
    %263 = arith.mulf %262, %256 : vector<2x16x16xf32>
    %264 = arith.addf %260, %263 : vector<2x16x16xf32>
    %265 = vector.extract_strided_slice %22 {offsets = [0, 3, 3], sizes = [2, 16, 16], strides = [1, 1, 1]} : vector<2x22x22xf32> to vector<2x16x16xf32>
    %266 = vector.extract_strided_slice %23 {offsets = [0, 3, 3], sizes = [2, 16, 16], strides = [1, 1, 1]} : vector<2x22x22xf32> to vector<2x16x16xf32>
    %c24 = arith.constant 24 : index
    %267 = memref.load %arg1[%c24] : memref<98xf32, #tpu.memory_space<smem>>
    %268 = vector.broadcast %267 : f32 to vector<2x16x16xf32>
    %269 = arith.mulf %268, %265 : vector<2x16x16xf32>
    %270 = arith.addf %264, %269 : vector<2x16x16xf32>
    %c73 = arith.constant 73 : index
    %271 = memref.load %arg1[%c73] : memref<98xf32, #tpu.memory_space<smem>>
    %272 = vector.broadcast %271 : f32 to vector<2x16x16xf32>
    %273 = arith.mulf %272, %266 : vector<2x16x16xf32>
    %274 = arith.addf %270, %273 : vector<2x16x16xf32>
    %275 = vector.extract_strided_slice %22 {offsets = [0, 3, 4], sizes = [2, 16, 16], strides = [1, 1, 1]} : vector<2x22x22xf32> to vector<2x16x16xf32>
    %276 = vector.extract_strided_slice %23 {offsets = [0, 3, 4], sizes = [2, 16, 16], strides = [1, 1, 1]} : vector<2x22x22xf32> to vector<2x16x16xf32>
    %c25 = arith.constant 25 : index
    %277 = memref.load %arg1[%c25] : memref<98xf32, #tpu.memory_space<smem>>
    %278 = vector.broadcast %277 : f32 to vector<2x16x16xf32>
    %279 = arith.mulf %278, %275 : vector<2x16x16xf32>
    %280 = arith.addf %274, %279 : vector<2x16x16xf32>
    %c74 = arith.constant 74 : index
    %281 = memref.load %arg1[%c74] : memref<98xf32, #tpu.memory_space<smem>>
    %282 = vector.broadcast %281 : f32 to vector<2x16x16xf32>
    %283 = arith.mulf %282, %276 : vector<2x16x16xf32>
    %284 = arith.addf %280, %283 : vector<2x16x16xf32>
    %285 = vector.extract_strided_slice %22 {offsets = [0, 3, 5], sizes = [2, 16, 16], strides = [1, 1, 1]} : vector<2x22x22xf32> to vector<2x16x16xf32>
    %286 = vector.extract_strided_slice %23 {offsets = [0, 3, 5], sizes = [2, 16, 16], strides = [1, 1, 1]} : vector<2x22x22xf32> to vector<2x16x16xf32>
    %c26 = arith.constant 26 : index
    %287 = memref.load %arg1[%c26] : memref<98xf32, #tpu.memory_space<smem>>
    %288 = vector.broadcast %287 : f32 to vector<2x16x16xf32>
    %289 = arith.mulf %288, %285 : vector<2x16x16xf32>
    %290 = arith.addf %284, %289 : vector<2x16x16xf32>
    %c75 = arith.constant 75 : index
    %291 = memref.load %arg1[%c75] : memref<98xf32, #tpu.memory_space<smem>>
    %292 = vector.broadcast %291 : f32 to vector<2x16x16xf32>
    %293 = arith.mulf %292, %286 : vector<2x16x16xf32>
    %294 = arith.addf %290, %293 : vector<2x16x16xf32>
    %295 = vector.extract_strided_slice %22 {offsets = [0, 3, 6], sizes = [2, 16, 16], strides = [1, 1, 1]} : vector<2x22x22xf32> to vector<2x16x16xf32>
    %296 = vector.extract_strided_slice %23 {offsets = [0, 3, 6], sizes = [2, 16, 16], strides = [1, 1, 1]} : vector<2x22x22xf32> to vector<2x16x16xf32>
    %c27 = arith.constant 27 : index
    %297 = memref.load %arg1[%c27] : memref<98xf32, #tpu.memory_space<smem>>
    %298 = vector.broadcast %297 : f32 to vector<2x16x16xf32>
    %299 = arith.mulf %298, %295 : vector<2x16x16xf32>
    %300 = arith.addf %294, %299 : vector<2x16x16xf32>
    %c76 = arith.constant 76 : index
    %301 = memref.load %arg1[%c76] : memref<98xf32, #tpu.memory_space<smem>>
    %302 = vector.broadcast %301 : f32 to vector<2x16x16xf32>
    %303 = arith.mulf %302, %296 : vector<2x16x16xf32>
    %304 = arith.addf %300, %303 : vector<2x16x16xf32>
    %305 = vector.extract_strided_slice %22 {offsets = [0, 4, 0], sizes = [2, 16, 16], strides = [1, 1, 1]} : vector<2x22x22xf32> to vector<2x16x16xf32>
    %306 = vector.extract_strided_slice %23 {offsets = [0, 4, 0], sizes = [2, 16, 16], strides = [1, 1, 1]} : vector<2x22x22xf32> to vector<2x16x16xf32>
    %c28 = arith.constant 28 : index
    %307 = memref.load %arg1[%c28] : memref<98xf32, #tpu.memory_space<smem>>
    %308 = vector.broadcast %307 : f32 to vector<2x16x16xf32>
    %309 = arith.mulf %308, %305 : vector<2x16x16xf32>
    %310 = arith.addf %304, %309 : vector<2x16x16xf32>
    %c77 = arith.constant 77 : index
    %311 = memref.load %arg1[%c77] : memref<98xf32, #tpu.memory_space<smem>>
    %312 = vector.broadcast %311 : f32 to vector<2x16x16xf32>
    %313 = arith.mulf %312, %306 : vector<2x16x16xf32>
    %314 = arith.addf %310, %313 : vector<2x16x16xf32>
    %315 = vector.extract_strided_slice %22 {offsets = [0, 4, 1], sizes = [2, 16, 16], strides = [1, 1, 1]} : vector<2x22x22xf32> to vector<2x16x16xf32>
    %316 = vector.extract_strided_slice %23 {offsets = [0, 4, 1], sizes = [2, 16, 16], strides = [1, 1, 1]} : vector<2x22x22xf32> to vector<2x16x16xf32>
    %c29 = arith.constant 29 : index
    %317 = memref.load %arg1[%c29] : memref<98xf32, #tpu.memory_space<smem>>
    %318 = vector.broadcast %317 : f32 to vector<2x16x16xf32>
    %319 = arith.mulf %318, %315 : vector<2x16x16xf32>
    %320 = arith.addf %314, %319 : vector<2x16x16xf32>
    %c78 = arith.constant 78 : index
    %321 = memref.load %arg1[%c78] : memref<98xf32, #tpu.memory_space<smem>>
    %322 = vector.broadcast %321 : f32 to vector<2x16x16xf32>
    %323 = arith.mulf %322, %316 : vector<2x16x16xf32>
    %324 = arith.addf %320, %323 : vector<2x16x16xf32>
    %325 = vector.extract_strided_slice %22 {offsets = [0, 4, 2], sizes = [2, 16, 16], strides = [1, 1, 1]} : vector<2x22x22xf32> to vector<2x16x16xf32>
    %326 = vector.extract_strided_slice %23 {offsets = [0, 4, 2], sizes = [2, 16, 16], strides = [1, 1, 1]} : vector<2x22x22xf32> to vector<2x16x16xf32>
    %c30 = arith.constant 30 : index
    %327 = memref.load %arg1[%c30] : memref<98xf32, #tpu.memory_space<smem>>
    %328 = vector.broadcast %327 : f32 to vector<2x16x16xf32>
    %329 = arith.mulf %328, %325 : vector<2x16x16xf32>
    %330 = arith.addf %324, %329 : vector<2x16x16xf32>
    %c79 = arith.constant 79 : index
    %331 = memref.load %arg1[%c79] : memref<98xf32, #tpu.memory_space<smem>>
    %332 = vector.broadcast %331 : f32 to vector<2x16x16xf32>
    %333 = arith.mulf %332, %326 : vector<2x16x16xf32>
    %334 = arith.addf %330, %333 : vector<2x16x16xf32>
    %335 = vector.extract_strided_slice %22 {offsets = [0, 4, 3], sizes = [2, 16, 16], strides = [1, 1, 1]} : vector<2x22x22xf32> to vector<2x16x16xf32>
    %336 = vector.extract_strided_slice %23 {offsets = [0, 4, 3], sizes = [2, 16, 16], strides = [1, 1, 1]} : vector<2x22x22xf32> to vector<2x16x16xf32>
    %c31 = arith.constant 31 : index
    %337 = memref.load %arg1[%c31] : memref<98xf32, #tpu.memory_space<smem>>
    %338 = vector.broadcast %337 : f32 to vector<2x16x16xf32>
    %339 = arith.mulf %338, %335 : vector<2x16x16xf32>
    %340 = arith.addf %334, %339 : vector<2x16x16xf32>
    %c80 = arith.constant 80 : index
    %341 = memref.load %arg1[%c80] : memref<98xf32, #tpu.memory_space<smem>>
    %342 = vector.broadcast %341 : f32 to vector<2x16x16xf32>
    %343 = arith.mulf %342, %336 : vector<2x16x16xf32>
    %344 = arith.addf %340, %343 : vector<2x16x16xf32>
    %345 = vector.extract_strided_slice %22 {offsets = [0, 4, 4], sizes = [2, 16, 16], strides = [1, 1, 1]} : vector<2x22x22xf32> to vector<2x16x16xf32>
    %346 = vector.extract_strided_slice %23 {offsets = [0, 4, 4], sizes = [2, 16, 16], strides = [1, 1, 1]} : vector<2x22x22xf32> to vector<2x16x16xf32>
    %c32 = arith.constant 32 : index
    %347 = memref.load %arg1[%c32] : memref<98xf32, #tpu.memory_space<smem>>
    %348 = vector.broadcast %347 : f32 to vector<2x16x16xf32>
    %349 = arith.mulf %348, %345 : vector<2x16x16xf32>
    %350 = arith.addf %344, %349 : vector<2x16x16xf32>
    %c81 = arith.constant 81 : index
    %351 = memref.load %arg1[%c81] : memref<98xf32, #tpu.memory_space<smem>>
    %352 = vector.broadcast %351 : f32 to vector<2x16x16xf32>
    %353 = arith.mulf %352, %346 : vector<2x16x16xf32>
    %354 = arith.addf %350, %353 : vector<2x16x16xf32>
    %355 = vector.extract_strided_slice %22 {offsets = [0, 4, 5], sizes = [2, 16, 16], strides = [1, 1, 1]} : vector<2x22x22xf32> to vector<2x16x16xf32>
    %356 = vector.extract_strided_slice %23 {offsets = [0, 4, 5], sizes = [2, 16, 16], strides = [1, 1, 1]} : vector<2x22x22xf32> to vector<2x16x16xf32>
    %c33 = arith.constant 33 : index
    %357 = memref.load %arg1[%c33] : memref<98xf32, #tpu.memory_space<smem>>
    %358 = vector.broadcast %357 : f32 to vector<2x16x16xf32>
    %359 = arith.mulf %358, %355 : vector<2x16x16xf32>
    %360 = arith.addf %354, %359 : vector<2x16x16xf32>
    %c82 = arith.constant 82 : index
    %361 = memref.load %arg1[%c82] : memref<98xf32, #tpu.memory_space<smem>>
    %362 = vector.broadcast %361 : f32 to vector<2x16x16xf32>
    %363 = arith.mulf %362, %356 : vector<2x16x16xf32>
    %364 = arith.addf %360, %363 : vector<2x16x16xf32>
    %365 = vector.extract_strided_slice %22 {offsets = [0, 4, 6], sizes = [2, 16, 16], strides = [1, 1, 1]} : vector<2x22x22xf32> to vector<2x16x16xf32>
    %366 = vector.extract_strided_slice %23 {offsets = [0, 4, 6], sizes = [2, 16, 16], strides = [1, 1, 1]} : vector<2x22x22xf32> to vector<2x16x16xf32>
    %c34 = arith.constant 34 : index
    %367 = memref.load %arg1[%c34] : memref<98xf32, #tpu.memory_space<smem>>
    %368 = vector.broadcast %367 : f32 to vector<2x16x16xf32>
    %369 = arith.mulf %368, %365 : vector<2x16x16xf32>
    %370 = arith.addf %364, %369 : vector<2x16x16xf32>
    %c83 = arith.constant 83 : index
    %371 = memref.load %arg1[%c83] : memref<98xf32, #tpu.memory_space<smem>>
    %372 = vector.broadcast %371 : f32 to vector<2x16x16xf32>
    %373 = arith.mulf %372, %366 : vector<2x16x16xf32>
    %374 = arith.addf %370, %373 : vector<2x16x16xf32>
    %375 = vector.extract_strided_slice %22 {offsets = [0, 5, 0], sizes = [2, 16, 16], strides = [1, 1, 1]} : vector<2x22x22xf32> to vector<2x16x16xf32>
    %376 = vector.extract_strided_slice %23 {offsets = [0, 5, 0], sizes = [2, 16, 16], strides = [1, 1, 1]} : vector<2x22x22xf32> to vector<2x16x16xf32>
    %c35 = arith.constant 35 : index
    %377 = memref.load %arg1[%c35] : memref<98xf32, #tpu.memory_space<smem>>
    %378 = vector.broadcast %377 : f32 to vector<2x16x16xf32>
    %379 = arith.mulf %378, %375 : vector<2x16x16xf32>
    %380 = arith.addf %374, %379 : vector<2x16x16xf32>
    %c84 = arith.constant 84 : index
    %381 = memref.load %arg1[%c84] : memref<98xf32, #tpu.memory_space<smem>>
    %382 = vector.broadcast %381 : f32 to vector<2x16x16xf32>
    %383 = arith.mulf %382, %376 : vector<2x16x16xf32>
    %384 = arith.addf %380, %383 : vector<2x16x16xf32>
    %385 = vector.extract_strided_slice %22 {offsets = [0, 5, 1], sizes = [2, 16, 16], strides = [1, 1, 1]} : vector<2x22x22xf32> to vector<2x16x16xf32>
    %386 = vector.extract_strided_slice %23 {offsets = [0, 5, 1], sizes = [2, 16, 16], strides = [1, 1, 1]} : vector<2x22x22xf32> to vector<2x16x16xf32>
    %c36 = arith.constant 36 : index
    %387 = memref.load %arg1[%c36] : memref<98xf32, #tpu.memory_space<smem>>
    %388 = vector.broadcast %387 : f32 to vector<2x16x16xf32>
    %389 = arith.mulf %388, %385 : vector<2x16x16xf32>
    %390 = arith.addf %384, %389 : vector<2x16x16xf32>
    %c85 = arith.constant 85 : index
    %391 = memref.load %arg1[%c85] : memref<98xf32, #tpu.memory_space<smem>>
    %392 = vector.broadcast %391 : f32 to vector<2x16x16xf32>
    %393 = arith.mulf %392, %386 : vector<2x16x16xf32>
    %394 = arith.addf %390, %393 : vector<2x16x16xf32>
    %395 = vector.extract_strided_slice %22 {offsets = [0, 5, 2], sizes = [2, 16, 16], strides = [1, 1, 1]} : vector<2x22x22xf32> to vector<2x16x16xf32>
    %396 = vector.extract_strided_slice %23 {offsets = [0, 5, 2], sizes = [2, 16, 16], strides = [1, 1, 1]} : vector<2x22x22xf32> to vector<2x16x16xf32>
    %c37 = arith.constant 37 : index
    %397 = memref.load %arg1[%c37] : memref<98xf32, #tpu.memory_space<smem>>
    %398 = vector.broadcast %397 : f32 to vector<2x16x16xf32>
    %399 = arith.mulf %398, %395 : vector<2x16x16xf32>
    %400 = arith.addf %394, %399 : vector<2x16x16xf32>
    %c86 = arith.constant 86 : index
    %401 = memref.load %arg1[%c86] : memref<98xf32, #tpu.memory_space<smem>>
    %402 = vector.broadcast %401 : f32 to vector<2x16x16xf32>
    %403 = arith.mulf %402, %396 : vector<2x16x16xf32>
    %404 = arith.addf %400, %403 : vector<2x16x16xf32>
    %405 = vector.extract_strided_slice %22 {offsets = [0, 5, 3], sizes = [2, 16, 16], strides = [1, 1, 1]} : vector<2x22x22xf32> to vector<2x16x16xf32>
    %406 = vector.extract_strided_slice %23 {offsets = [0, 5, 3], sizes = [2, 16, 16], strides = [1, 1, 1]} : vector<2x22x22xf32> to vector<2x16x16xf32>
    %c38 = arith.constant 38 : index
    %407 = memref.load %arg1[%c38] : memref<98xf32, #tpu.memory_space<smem>>
    %408 = vector.broadcast %407 : f32 to vector<2x16x16xf32>
    %409 = arith.mulf %408, %405 : vector<2x16x16xf32>
    %410 = arith.addf %404, %409 : vector<2x16x16xf32>
    %c87 = arith.constant 87 : index
    %411 = memref.load %arg1[%c87] : memref<98xf32, #tpu.memory_space<smem>>
    %412 = vector.broadcast %411 : f32 to vector<2x16x16xf32>
    %413 = arith.mulf %412, %406 : vector<2x16x16xf32>
    %414 = arith.addf %410, %413 : vector<2x16x16xf32>
    %415 = vector.extract_strided_slice %22 {offsets = [0, 5, 4], sizes = [2, 16, 16], strides = [1, 1, 1]} : vector<2x22x22xf32> to vector<2x16x16xf32>
    %416 = vector.extract_strided_slice %23 {offsets = [0, 5, 4], sizes = [2, 16, 16], strides = [1, 1, 1]} : vector<2x22x22xf32> to vector<2x16x16xf32>
    %c39 = arith.constant 39 : index
    %417 = memref.load %arg1[%c39] : memref<98xf32, #tpu.memory_space<smem>>
    %418 = vector.broadcast %417 : f32 to vector<2x16x16xf32>
    %419 = arith.mulf %418, %415 : vector<2x16x16xf32>
    %420 = arith.addf %414, %419 : vector<2x16x16xf32>
    %c88 = arith.constant 88 : index
    %421 = memref.load %arg1[%c88] : memref<98xf32, #tpu.memory_space<smem>>
    %422 = vector.broadcast %421 : f32 to vector<2x16x16xf32>
    %423 = arith.mulf %422, %416 : vector<2x16x16xf32>
    %424 = arith.addf %420, %423 : vector<2x16x16xf32>
    %425 = vector.extract_strided_slice %22 {offsets = [0, 5, 5], sizes = [2, 16, 16], strides = [1, 1, 1]} : vector<2x22x22xf32> to vector<2x16x16xf32>
    %426 = vector.extract_strided_slice %23 {offsets = [0, 5, 5], sizes = [2, 16, 16], strides = [1, 1, 1]} : vector<2x22x22xf32> to vector<2x16x16xf32>
    %c40 = arith.constant 40 : index
    %427 = memref.load %arg1[%c40] : memref<98xf32, #tpu.memory_space<smem>>
    %428 = vector.broadcast %427 : f32 to vector<2x16x16xf32>
    %429 = arith.mulf %428, %425 : vector<2x16x16xf32>
    %430 = arith.addf %424, %429 : vector<2x16x16xf32>
    %c89 = arith.constant 89 : index
    %431 = memref.load %arg1[%c89] : memref<98xf32, #tpu.memory_space<smem>>
    %432 = vector.broadcast %431 : f32 to vector<2x16x16xf32>
    %433 = arith.mulf %432, %426 : vector<2x16x16xf32>
    %434 = arith.addf %430, %433 : vector<2x16x16xf32>
    %435 = vector.extract_strided_slice %22 {offsets = [0, 5, 6], sizes = [2, 16, 16], strides = [1, 1, 1]} : vector<2x22x22xf32> to vector<2x16x16xf32>
    %436 = vector.extract_strided_slice %23 {offsets = [0, 5, 6], sizes = [2, 16, 16], strides = [1, 1, 1]} : vector<2x22x22xf32> to vector<2x16x16xf32>
    %c41 = arith.constant 41 : index
    %437 = memref.load %arg1[%c41] : memref<98xf32, #tpu.memory_space<smem>>
    %438 = vector.broadcast %437 : f32 to vector<2x16x16xf32>
    %439 = arith.mulf %438, %435 : vector<2x16x16xf32>
    %440 = arith.addf %434, %439 : vector<2x16x16xf32>
    %c90 = arith.constant 90 : index
    %441 = memref.load %arg1[%c90] : memref<98xf32, #tpu.memory_space<smem>>
    %442 = vector.broadcast %441 : f32 to vector<2x16x16xf32>
    %443 = arith.mulf %442, %436 : vector<2x16x16xf32>
    %444 = arith.addf %440, %443 : vector<2x16x16xf32>
    %445 = vector.extract_strided_slice %22 {offsets = [0, 6, 0], sizes = [2, 16, 16], strides = [1, 1, 1]} : vector<2x22x22xf32> to vector<2x16x16xf32>
    %446 = vector.extract_strided_slice %23 {offsets = [0, 6, 0], sizes = [2, 16, 16], strides = [1, 1, 1]} : vector<2x22x22xf32> to vector<2x16x16xf32>
    %c42 = arith.constant 42 : index
    %447 = memref.load %arg1[%c42] : memref<98xf32, #tpu.memory_space<smem>>
    %448 = vector.broadcast %447 : f32 to vector<2x16x16xf32>
    %449 = arith.mulf %448, %445 : vector<2x16x16xf32>
    %450 = arith.addf %444, %449 : vector<2x16x16xf32>
    %c91 = arith.constant 91 : index
    %451 = memref.load %arg1[%c91] : memref<98xf32, #tpu.memory_space<smem>>
    %452 = vector.broadcast %451 : f32 to vector<2x16x16xf32>
    %453 = arith.mulf %452, %446 : vector<2x16x16xf32>
    %454 = arith.addf %450, %453 : vector<2x16x16xf32>
    %455 = vector.extract_strided_slice %22 {offsets = [0, 6, 1], sizes = [2, 16, 16], strides = [1, 1, 1]} : vector<2x22x22xf32> to vector<2x16x16xf32>
    %456 = vector.extract_strided_slice %23 {offsets = [0, 6, 1], sizes = [2, 16, 16], strides = [1, 1, 1]} : vector<2x22x22xf32> to vector<2x16x16xf32>
    %c43 = arith.constant 43 : index
    %457 = memref.load %arg1[%c43] : memref<98xf32, #tpu.memory_space<smem>>
    %458 = vector.broadcast %457 : f32 to vector<2x16x16xf32>
    %459 = arith.mulf %458, %455 : vector<2x16x16xf32>
    %460 = arith.addf %454, %459 : vector<2x16x16xf32>
    %c92 = arith.constant 92 : index
    %461 = memref.load %arg1[%c92] : memref<98xf32, #tpu.memory_space<smem>>
    %462 = vector.broadcast %461 : f32 to vector<2x16x16xf32>
    %463 = arith.mulf %462, %456 : vector<2x16x16xf32>
    %464 = arith.addf %460, %463 : vector<2x16x16xf32>
    %465 = vector.extract_strided_slice %22 {offsets = [0, 6, 2], sizes = [2, 16, 16], strides = [1, 1, 1]} : vector<2x22x22xf32> to vector<2x16x16xf32>
    %466 = vector.extract_strided_slice %23 {offsets = [0, 6, 2], sizes = [2, 16, 16], strides = [1, 1, 1]} : vector<2x22x22xf32> to vector<2x16x16xf32>
    %c44 = arith.constant 44 : index
    %467 = memref.load %arg1[%c44] : memref<98xf32, #tpu.memory_space<smem>>
    %468 = vector.broadcast %467 : f32 to vector<2x16x16xf32>
    %469 = arith.mulf %468, %465 : vector<2x16x16xf32>
    %470 = arith.addf %464, %469 : vector<2x16x16xf32>
    %c93 = arith.constant 93 : index
    %471 = memref.load %arg1[%c93] : memref<98xf32, #tpu.memory_space<smem>>
    %472 = vector.broadcast %471 : f32 to vector<2x16x16xf32>
    %473 = arith.mulf %472, %466 : vector<2x16x16xf32>
    %474 = arith.addf %470, %473 : vector<2x16x16xf32>
    %475 = vector.extract_strided_slice %22 {offsets = [0, 6, 3], sizes = [2, 16, 16], strides = [1, 1, 1]} : vector<2x22x22xf32> to vector<2x16x16xf32>
    %476 = vector.extract_strided_slice %23 {offsets = [0, 6, 3], sizes = [2, 16, 16], strides = [1, 1, 1]} : vector<2x22x22xf32> to vector<2x16x16xf32>
    %c45 = arith.constant 45 : index
    %477 = memref.load %arg1[%c45] : memref<98xf32, #tpu.memory_space<smem>>
    %478 = vector.broadcast %477 : f32 to vector<2x16x16xf32>
    %479 = arith.mulf %478, %475 : vector<2x16x16xf32>
    %480 = arith.addf %474, %479 : vector<2x16x16xf32>
    %c94 = arith.constant 94 : index
    %481 = memref.load %arg1[%c94] : memref<98xf32, #tpu.memory_space<smem>>
    %482 = vector.broadcast %481 : f32 to vector<2x16x16xf32>
    %483 = arith.mulf %482, %476 : vector<2x16x16xf32>
    %484 = arith.addf %480, %483 : vector<2x16x16xf32>
    %485 = vector.extract_strided_slice %22 {offsets = [0, 6, 4], sizes = [2, 16, 16], strides = [1, 1, 1]} : vector<2x22x22xf32> to vector<2x16x16xf32>
    %486 = vector.extract_strided_slice %23 {offsets = [0, 6, 4], sizes = [2, 16, 16], strides = [1, 1, 1]} : vector<2x22x22xf32> to vector<2x16x16xf32>
    %c46 = arith.constant 46 : index
    %487 = memref.load %arg1[%c46] : memref<98xf32, #tpu.memory_space<smem>>
    %488 = vector.broadcast %487 : f32 to vector<2x16x16xf32>
    %489 = arith.mulf %488, %485 : vector<2x16x16xf32>
    %490 = arith.addf %484, %489 : vector<2x16x16xf32>
    %c95 = arith.constant 95 : index
    %491 = memref.load %arg1[%c95] : memref<98xf32, #tpu.memory_space<smem>>
    %492 = vector.broadcast %491 : f32 to vector<2x16x16xf32>
    %493 = arith.mulf %492, %486 : vector<2x16x16xf32>
    %494 = arith.addf %490, %493 : vector<2x16x16xf32>
    %495 = vector.extract_strided_slice %22 {offsets = [0, 6, 5], sizes = [2, 16, 16], strides = [1, 1, 1]} : vector<2x22x22xf32> to vector<2x16x16xf32>
    %496 = vector.extract_strided_slice %23 {offsets = [0, 6, 5], sizes = [2, 16, 16], strides = [1, 1, 1]} : vector<2x22x22xf32> to vector<2x16x16xf32>
    %c47 = arith.constant 47 : index
    %497 = memref.load %arg1[%c47] : memref<98xf32, #tpu.memory_space<smem>>
    %498 = vector.broadcast %497 : f32 to vector<2x16x16xf32>
    %499 = arith.mulf %498, %495 : vector<2x16x16xf32>
    %500 = arith.addf %494, %499 : vector<2x16x16xf32>
    %c96 = arith.constant 96 : index
    %501 = memref.load %arg1[%c96] : memref<98xf32, #tpu.memory_space<smem>>
    %502 = vector.broadcast %501 : f32 to vector<2x16x16xf32>
    %503 = arith.mulf %502, %496 : vector<2x16x16xf32>
    %504 = arith.addf %500, %503 : vector<2x16x16xf32>
    %505 = vector.extract_strided_slice %22 {offsets = [0, 6, 6], sizes = [2, 16, 16], strides = [1, 1, 1]} : vector<2x22x22xf32> to vector<2x16x16xf32>
    %506 = vector.extract_strided_slice %23 {offsets = [0, 6, 6], sizes = [2, 16, 16], strides = [1, 1, 1]} : vector<2x22x22xf32> to vector<2x16x16xf32>
    %c48 = arith.constant 48 : index
    %507 = memref.load %arg1[%c48] : memref<98xf32, #tpu.memory_space<smem>>
    %508 = vector.broadcast %507 : f32 to vector<2x16x16xf32>
    %509 = arith.mulf %508, %505 : vector<2x16x16xf32>
    %510 = arith.addf %504, %509 : vector<2x16x16xf32>
    %c97 = arith.constant 97 : index
    %511 = memref.load %arg1[%c97] : memref<98xf32, #tpu.memory_space<smem>>
    %512 = vector.broadcast %511 : f32 to vector<2x16x16xf32>
    %513 = arith.mulf %512, %506 : vector<2x16x16xf32>
    %514 = arith.addf %510, %513 : vector<2x16x16xf32>
    %515 = arith.negf %514 : vector<2x16x16xf32>
    %516 = math.exp %515 : vector<2x16x16xf32>
    %cst_37 = arith.constant 1.000000e+00 : f32
    %517 = vector.broadcast %cst_37 : f32 to vector<2x16x16xf32>
    %518 = arith.addf %517, %516 : vector<2x16x16xf32>
    %519 = arith.divf %517, %518 : vector<2x16x16xf32>
    %c0_38 = arith.constant 0 : index
    %c0_39 = arith.constant 0 : index
    %c0_40 = arith.constant 0 : index
    %520 = vector.load %arg3[%c0_38, %c0_39, %c0_40] : memref<2x16x16xf32, #tpu.memory_space<vmem>>, vector<2x16x16xf32>
    tpu.vector_store %arg3[%c0_38, %c0_39, %c0_40], %519 {strides = array<i32>} : memref<2x16x16xf32, #tpu.memory_space<vmem>>, vector<2x16x16xf32>,
    return
  }
  func.func @transform_0(%arg0: i32, %arg1: memref<98xf32, #tpu.memory_space<smem>>) -> (i32, i32, i32, i32) {
    %c0_i32 = arith.constant 0 : i32
    %c0_i32_0 = arith.constant 0 : i32
    %c0_i32_1 = arith.constant 0 : i32
    %c0_i32_2 = arith.constant 0 : i32
    return %arg0, %c0_i32, %c0_i32_0, %c0_i32_1 : i32, i32, i32, i32
  }
  func.func @transform_1(%arg0: i32, %arg1: memref<98xf32, #tpu.memory_space<smem>>) -> (i32, i32, i32) {
    %c0_i32 = arith.constant 0 : i32
    %c0_i32_0 = arith.constant 0 : i32
    %c0_i32_1 = arith.constant 0 : i32
    return %arg0, %c0_i32, %c0_i32_0 : i32, i32, i32
  }
}

</mosaic_0001>

<llo_original>
// kernel: tpu_custom_call.1
$region0: #{tpu_custom_call.1}
  #allocation0 [shape = 'u32[]', space=smem, size = 0x4, offset = 0x4, fixed_abs, tag = 'smem constant byte address 0x4 - core index']
  #allocation1 [shape = 'u32[144,128]{1,0:T(1,128)}', space=vmem, size = 0x12000, scoped, tag = 'internal scratch']
  #allocation2 [shape = 'f32[2,22,22]{2,1,0:T(8,128)}', space=vmem, size = 0x6000, scoped, tag = 'scratch operand']
  #allocation3 [shape = 'f32[2,22,22]{2,1,0:T(8,128)}', space=vmem, size = 0x6000, scoped, tag = 'scratch operand']
  #allocation4 [shape = 's32[1]{0}', space=sflag, size = 0x4, scoped, tag = 'scoped memory for tpu_custom_call.1']
  #allocation5 [shape = 'u8[512]{0}', space=smem, size = 0x200, scoped, tag = 'prefetched SMEM operand 0']
  %s0 = inlined_call_operand.hbm [shape: f32[98], index: 0, kind: input, shape index: {}]
  %s1 = inlined_call_operand.hbm [shape: f32[2,4,16,16], index: 1, kind: input, shape index: {}]
  %s2 = inlined_call_operand.hbm [shape: f32[2,16,16], index: 2, kind: output, shape index: {}]
  %s3 = sld [smem:[#allocation0]]
  $region18: #{tpu_custom_call.1} parent=0
    _
  %s5 = ssub.s32 1, %s3
  %s6 = scalar_select 0, %s5, %s3
  %8 = dma.hbm_to_smem %s0, 16, [#allocation5], [#allocation4]
  %9 = dma.done [#allocation4], 16
  %10 = sfence
  $region1: #{tpu_custom_call.1} parent=0
    #allocation6 [shape = 'u8[65536]{0}', space=vmem, size = 0x10000, scoped, tag = 'input window, operand 1, single buffered']
    #allocation7 [shape = 's32[1]{0}', space=sflag, size = 0x4, scoped, tag = 'scoped memory for tpu_custom_call.1']
    #allocation8 [shape = 's32[1]{0}', space=sflag, size = 0x4, scoped, tag = 'scoped memory for tpu_custom_call.1']
    #allocation9 [shape = 'u8[16384]{0}', space=vmem, size = 0x4000, scoped, tag = 'output window, operand 0, single buffered']
    %11 = vsyncpa [#allocation7], 0
    %12 = vsyncpa [#allocation8], 0
    // Predicated region
    $region2: #{tpu_custom_call.1} parent=1 // pred_check
      _
    $region3: #{tpu_custom_call.1} parent=1 // pred_check_branch
      %14 = sbr.rel (0) target = $region5
    $region4: #{tpu_custom_call.1} parent=1 // pred_region
      %s16 = ssub.s32 2048, 2048
      %17 = vsyncadd [#allocation7], %s16
      %s18 = sshll.u32 [#allocation6], 4
      %s19 = int_to_ptr.vmem [resolvable:$true] %s18
      %24 = dma.hbm_to_vmem [thread:$0]  %s1, 2048, %s19, [#allocation7], 128, 128, 8
    $region5: #{tpu_custom_call.1} parent=1 // pred_fallthru
      _
    // Predicated region
    $region6: #{tpu_custom_call.1} parent=1 // pred_check
      _
    $region7: #{tpu_custom_call.1} parent=1 // pred_check_branch
      %26 = sbr.rel (0) target = $region9
    $region8: #{tpu_custom_call.1} parent=1 // pred_region
      %27 = dma.done [#allocation7], 2048
    $region9: #{tpu_custom_call.1} parent=1 // pred_fallthru
      _
    %vm28 = vcmask 179200
    %29 = vst.msk [vmem:[#allocation2] sm:$0xff] %vm28, 0.0
    %30 = vst.msk [vmem:[#allocation2 + $0x8] sm:$0xff] %vm28, 0.0
    %vm31 = vcmask 177152
    %32 = vst.msk [vmem:[#allocation2 + $0x10] sm:$0x3f] %vm31, 0.0
    %33 = vst.msk [vmem:[#allocation2 + $0x18] sm:$0xff] %vm28, 0.0
    %34 = vst.msk [vmem:[#allocation2 + $0x20] sm:$0xff] %vm28, 0.0
    %35 = vst.msk [vmem:[#allocation2 + $0x28] sm:$0x3f] %vm31, 0.0
    %36 = vst.msk [vmem:[#allocation3] sm:$0xff] %vm28, 0.0
    %37 = vst.msk [vmem:[#allocation3 + $0x8] sm:$0xff] %vm28, 0.0
    %38 = vst.msk [vmem:[#allocation3 + $0x10] sm:$0x3f] %vm31, 0.0
    %39 = vst.msk [vmem:[#allocation3 + $0x18] sm:$0xff] %vm28, 0.0
    %40 = vst.msk [vmem:[#allocation3 + $0x20] sm:$0xff] %vm28, 0.0
    %41 = vst.msk [vmem:[#allocation3 + $0x28] sm:$0x3f] %vm31, 0.0
    %v42 = vld [vmem:[#allocation6] sm:$0xff]
    %v43 = vld [vmem:[#allocation6 + $0x8] sm:$0xff]
    %v44 = vld [vmem:[#allocation6 + $0x40] sm:$0xff]
    %v45 = vld [vmem:[#allocation6 + $0x48] sm:$0xff]
    %s46 = scalar_lea.vmem [#allocation6], 16
    %v47 = vld [vmem:[%s46] sm:$0xff]
    %v48 = vld [vmem:[%s46 + $0x8] sm:$0xff]
    %v49 = vld [vmem:[%s46 + $0x40] sm:$0xff]
    %v50 = vld [vmem:[%s46 + $0x48] sm:$0xff]
    %v51 = vadd.f32 %v42, %v47
    %v52 = vadd.f32 %v43, %v48
    %v53 = vadd.f32 %v44, %v49
    %v54 = vadd.f32 %v45, %v50
    %v55 = vmax.f32 %v42, %v47
    %v56 = vmax.f32 %v43, %v48
    %v57 = vmax.f32 %v44, %v49
    %v58 = vmax.f32 %v45, %v50
    %s59 = scalar_lea.vmem [#allocation6], 32
    %v60 = vld [vmem:[%s59] sm:$0xff]
    %v61 = vld [vmem:[%s59 + $0x8] sm:$0xff]
    %v62 = vld [vmem:[%s59 + $0x40] sm:$0xff]
    %v63 = vld [vmem:[%s59 + $0x48] sm:$0xff]
    %v64 = vadd.f32 %v51, %v60
    %v65 = vadd.f32 %v52, %v61
    %v66 = vadd.f32 %v53, %v62
    %v67 = vadd.f32 %v54, %v63
    %v68 = vmax.f32 %v55, %v60
    %v69 = vmax.f32 %v56, %v61
    %v70 = vmax.f32 %v57, %v62
    %v71 = vmax.f32 %v58, %v63
    %s72 = scalar_lea.vmem [#allocation6], 48
    %v73 = vld [vmem:[%s72] sm:$0xff]
    %v74 = vld [vmem:[%s72 + $0x8] sm:$0xff]
    %v75 = vld [vmem:[%s72 + $0x40] sm:$0xff]
    %v76 = vld [vmem:[%s72 + $0x48] sm:$0xff]
    %v77 = vadd.f32 %v64, %v73
    %v78 = vadd.f32 %v65, %v74
    %v79 = vadd.f32 %v66, %v75
    %v80 = vadd.f32 %v67, %v76
    %v81 = vmax.f32 %v68, %v73
    %v82 = vmax.f32 %v69, %v74
    %v83 = vmax.f32 %v70, %v75
    %v84 = vmax.f32 %v71, %v76
    %v85 = vmul.f32 %v77, 0.25
    %v86 = vmul.f32 %v78, 0.25
    %v87 = vmul.f32 %v79, 0.25
    %v88 = vmul.f32 %v80, 0.25
    %93 = vrot.lane.b32.xlu0 %v85, 3
    %v94 = vpop.permute.xlu0 %93
    %95 = vrot.lane.b32.xlu0 %v86, 3
    %v96 = vpop.permute.xlu0 %95
    %97 = vrot.lane.b32.xlu0 %v87, 3
    %v98 = vpop.permute.xlu0 %97
    %99 = vrot.lane.b32.xlu0 %v88, 3
    %v100 = vpop.permute.xlu0 %99
    %vm105 = vcmask 154648
    %106 = vst.msk [vmem:[#allocation2 + $0x3] sm:$0xff] %vm105, %v94
    %107 = vst.msk [vmem:[#allocation2 + $0xb] sm:$0xff] %vm105, %v96
    %108 = vst.msk [vmem:[#allocation2 + $0x1b] sm:$0xff] %vm105, %v98
    %109 = vst.msk [vmem:[#allocation2 + $0x23] sm:$0xff] %vm105, %v100
    %114 = vrot.lane.b32.xlu0 %v81, 3
    %v115 = vpop.permute.xlu0 %114
    %116 = vrot.lane.b32.xlu0 %v82, 3
    %v117 = vpop.permute.xlu0 %116
    %118 = vrot.lane.b32.xlu0 %v83, 3
    %v119 = vpop.permute.xlu0 %118
    %120 = vrot.lane.b32.xlu0 %v84, 3
    %v121 = vpop.permute.xlu0 %120
    %126 = vst.msk [vmem:[#allocation3 + $0x3] sm:$0xff] %vm105, %v115
    %127 = vst.msk [vmem:[#allocation3 + $0xb] sm:$0xff] %vm105, %v117
    %128 = vst.msk [vmem:[#allocation3 + $0x1b] sm:$0xff] %vm105, %v119
    %129 = vst.msk [vmem:[#allocation3 + $0x23] sm:$0xff] %vm105, %v121
    %v130 = vld [vmem:[#allocation2] sm:$0xff]
    %v131 = vld [vmem:[#allocation2 + $0x8] sm:$0xff]
    %v132 = vld [vmem:[#allocation2 + $0x10] sm:$0x3f]
    %v133 = vld [vmem:[#allocation2 + $0x18] sm:$0xff]
    %v134 = vld [vmem:[#allocation2 + $0x20] sm:$0xff]
    %v135 = vld [vmem:[#allocation2 + $0x28] sm:$0x3f]
    %v136 = vld [vmem:[#allocation3] sm:$0xff]
    %v137 = vld [vmem:[#allocation3 + $0x8] sm:$0xff]
    %v138 = vld [vmem:[#allocation3 + $0x10] sm:$0x3f]
    %v139 = vld [vmem:[#allocation3 + $0x18] sm:$0xff]
    %v140 = vld [vmem:[#allocation3 + $0x20] sm:$0xff]
    %v141 = vld [vmem:[#allocation3 + $0x28] sm:$0x3f]
    %s142 = sld [smem:[#allocation5]]
    %v143 = vstv %s142
    %v144 = vmul.f32 %v143, %v130
    %v145 = vmul.f32 %v143, %v131
    %v146 = vmul.f32 %v143, %v133
    %v147 = vmul.f32 %v143, %v134
    %v148 = vadd.f32 %v144, 0.0
    %v149 = vadd.f32 %v145, 0.0
    %v150 = vadd.f32 %v146, 0.0
    %v151 = vadd.f32 %v147, 0.0
    %s152 = sld [smem:[#allocation5 + $0x31]]
    %v153 = vstv %s152
    %v154 = vmul.f32 %v153, %v136
    %v155 = vmul.f32 %v153, %v137
    %v156 = vmul.f32 %v153, %v139
    %v157 = vmul.f32 %v153, %v140
    %v158 = vadd.f32 %v148, %v154
    %v159 = vadd.f32 %v149, %v155
    %v160 = vadd.f32 %v150, %v156
    %v161 = vadd.f32 %v151, %v157
    %s162 = sld [smem:[#allocation5 + $0x1]]
    %v163 = vstv %s162
    %v164 = vmul.f32 %v163, %v130
    %v165 = vmul.f32 %v163, %v131
    %v166 = vmul.f32 %v163, %v133
    %v167 = vmul.f32 %v163, %v134
    %172 = vrot.lane.b32.xlu0 %v164, 127
    %v173 = vpop.permute.xlu0 %172
    %174 = vrot.lane.b32.xlu0 %v165, 127
    %v175 = vpop.permute.xlu0 %174
    %176 = vrot.lane.b32.xlu0 %v166, 127
    %v177 = vpop.permute.xlu0 %176
    %178 = vrot.lane.b32.xlu0 %v167, 127
    %v179 = vpop.permute.xlu0 %178
    %v184 = vadd.f32 %v158, %v173
    %v185 = vadd.f32 %v159, %v175
    %v186 = vadd.f32 %v160, %v177
    %v187 = vadd.f32 %v161, %v179
    %s188 = sld [smem:[#allocation5 + $0x32]]
    %v189 = vstv %s188
    %v190 = vmul.f32 %v189, %v136
    %v191 = vmul.f32 %v189, %v137
    %v192 = vmul.f32 %v189, %v139
    %v193 = vmul.f32 %v189, %v140
    %198 = vrot.lane.b32.xlu0 %v190, 127
    %v199 = vpop.permute.xlu0 %198
    %200 = vrot.lane.b32.xlu0 %v191, 127
    %v201 = vpop.permute.xlu0 %200
    %202 = vrot.lane.b32.xlu0 %v192, 127
    %v203 = vpop.permute.xlu0 %202
    %204 = vrot.lane.b32.xlu0 %v193, 127
    %v205 = vpop.permute.xlu0 %204
    %v210 = vadd.f32 %v184, %v199
    %v211 = vadd.f32 %v185, %v201
    %v212 = vadd.f32 %v186, %v203
    %v213 = vadd.f32 %v187, %v205
    %s214 = sld [smem:[#allocation5 + $0x2]]
    %v215 = vstv %s214
    %v216 = vmul.f32 %v215, %v130
    %v217 = vmul.f32 %v215, %v131
    %v218 = vmul.f32 %v215, %v133
    %v219 = vmul.f32 %v215, %v134
    %224 = vrot.lane.b32.xlu0 %v216, 126
    %v225 = vpop.permute.xlu0 %224
    %226 = vrot.lane.b32.xlu0 %v217, 126
    %v227 = vpop.permute.xlu0 %226
    %228 = vrot.lane.b32.xlu0 %v218, 126
    %v229 = vpop.permute.xlu0 %228
    %230 = vrot.lane.b32.xlu0 %v219, 126
    %v231 = vpop.permute.xlu0 %230
    %v236 = vadd.f32 %v210, %v225
    %v237 = vadd.f32 %v211, %v227
    %v238 = vadd.f32 %v212, %v229
    %v239 = vadd.f32 %v213, %v231
    %s240 = sld [smem:[#allocation5 + $0x33]]
    %v241 = vstv %s240
    %v242 = vmul.f32 %v241, %v136
    %v243 = vmul.f32 %v241, %v137
    %v244 = vmul.f32 %v241, %v139
    %v245 = vmul.f32 %v241, %v140
    %250 = vrot.lane.b32.xlu0 %v242, 126
    %v251 = vpop.permute.xlu0 %250
    %252 = vrot.lane.b32.xlu0 %v243, 126
    %v253 = vpop.permute.xlu0 %252
    %254 = vrot.lane.b32.xlu0 %v244, 126
    %v255 = vpop.permute.xlu0 %254
    %256 = vrot.lane.b32.xlu0 %v245, 126
    %v257 = vpop.permute.xlu0 %256
    %v262 = vadd.f32 %v236, %v251
    %v263 = vadd.f32 %v237, %v253
    %v264 = vadd.f32 %v238, %v255
    %v265 = vadd.f32 %v239, %v257
    %s266 = sld [smem:[#allocation5 + $0x3]]
    %v267 = vstv %s266
    %v268 = vmul.f32 %v267, %v130
    %v269 = vmul.f32 %v267, %v131
    %v270 = vmul.f32 %v267, %v133
    %v271 = vmul.f32 %v267, %v134
    %276 = vrot.lane.b32.xlu0 %v268, 125
    %v277 = vpop.permute.xlu0 %276
    %278 = vrot.lane.b32.xlu0 %v269, 125
    %v279 = vpop.permute.xlu0 %278
    %280 = vrot.lane.b32.xlu0 %v270, 125
    %v281 = vpop.permute.xlu0 %280
    %282 = vrot.lane.b32.xlu0 %v271, 125
    %v283 = vpop.permute.xlu0 %282
    %v288 = vadd.f32 %v262, %v277
    %v289 = vadd.f32 %v263, %v279
    %v290 = vadd.f32 %v264, %v281
    %v291 = vadd.f32 %v265, %v283
    %s292 = sld [smem:[#allocation5 + $0x34]]
    %v293 = vstv %s292
    %v294 = vmul.f32 %v293, %v136
    %v295 = vmul.f32 %v293, %v137
    %v296 = vmul.f32 %v293, %v139
    %v297 = vmul.f32 %v293, %v140
    %302 = vrot.lane.b32.xlu0 %v294, 125
    %v303 = vpop.permute.xlu0 %302
    %304 = vrot.lane.b32.xlu0 %v295, 125
    %v305 = vpop.permute.xlu0 %304
    %306 = vrot.lane.b32.xlu0 %v296, 125
    %v307 = vpop.permute.xlu0 %306
    %308 = vrot.lane.b32.xlu0 %v297, 125
    %v309 = vpop.permute.xlu0 %308
    %v314 = vadd.f32 %v288, %v303
    %v315 = vadd.f32 %v289, %v305
    %v316 = vadd.f32 %v290, %v307
    %v317 = vadd.f32 %v291, %v309
    %s318 = sld [smem:[#allocation5 + $0x4]]
    %v319 = vstv %s318
    %v320 = vmul.f32 %v319, %v130
    %v321 = vmul.f32 %v319, %v131
    %v322 = vmul.f32 %v319, %v133
    %v323 = vmul.f32 %v319, %v134
    %328 = vrot.lane.b32.xlu0 %v320, 124
    %v329 = vpop.permute.xlu0 %328
    %330 = vrot.lane.b32.xlu0 %v321, 124
    %v331 = vpop.permute.xlu0 %330
    %332 = vrot.lane.b32.xlu0 %v322, 124
    %v333 = vpop.permute.xlu0 %332
    %334 = vrot.lane.b32.xlu0 %v323, 124
    %v335 = vpop.permute.xlu0 %334
    %v340 = vadd.f32 %v314, %v329
    %v341 = vadd.f32 %v315, %v331
    %v342 = vadd.f32 %v316, %v333
    %v343 = vadd.f32 %v317, %v335
    %s344 = sld [smem:[#allocation5 + $0x35]]
    %v345 = vstv %s344
    %v346 = vmul.f32 %v345, %v136
    %v347 = vmul.f32 %v345, %v137
    %v348 = vmul.f32 %v345, %v139
    %v349 = vmul.f32 %v345, %v140
    %354 = vrot.lane.b32.xlu0 %v346, 124
    %v355 = vpop.permute.xlu0 %354
    %356 = vrot.lane.b32.xlu0 %v347, 124
    %v357 = vpop.permute.xlu0 %356
    %358 = vrot.lane.b32.xlu0 %v348, 124
    %v359 = vpop.permute.xlu0 %358
    %360 = vrot.lane.b32.xlu0 %v349, 124
    %v361 = vpop.permute.xlu0 %360
    %v366 = vadd.f32 %v340, %v355
    %v367 = vadd.f32 %v341, %v357
    %v368 = vadd.f32 %v342, %v359
    %v369 = vadd.f32 %v343, %v361
    %s370 = sld [smem:[#allocation5 + $0x5]]
    %v371 = vstv %s370
    %v372 = vmul.f32 %v371, %v130
    %v373 = vmul.f32 %v371, %v131
    %v374 = vmul.f32 %v371, %v133
    %v375 = vmul.f32 %v371, %v134
    %380 = vrot.lane.b32.xlu0 %v372, 123
    %v381 = vpop.permute.xlu0 %380
    %382 = vrot.lane.b32.xlu0 %v373, 123
    %v383 = vpop.permute.xlu0 %382
    %384 = vrot.lane.b32.xlu0 %v374, 123
    %v385 = vpop.permute.xlu0 %384
    %386 = vrot.lane.b32.xlu0 %v375, 123
    %v387 = vpop.permute.xlu0 %386
    %v392 = vadd.f32 %v366, %v381
    %v393 = vadd.f32 %v367, %v383
    %v394 = vadd.f32 %v368, %v385
    %v395 = vadd.f32 %v369, %v387
    %s396 = sld [smem:[#allocation5 + $0x36]]
    %v397 = vstv %s396
    %v398 = vmul.f32 %v397, %v136
    %v399 = vmul.f32 %v397, %v137
    %v400 = vmul.f32 %v397, %v139
    %v401 = vmul.f32 %v397, %v140
    %406 = vrot.lane.b32.xlu0 %v398, 123
    %v407 = vpop.permute.xlu0 %406
    %408 = vrot.lane.b32.xlu0 %v399, 123
    %v409 = vpop.permute.xlu0 %408
    %410 = vrot.lane.b32.xlu0 %v400, 123
    %v411 = vpop.permute.xlu0 %410
    %412 = vrot.lane.b32.xlu0 %v401, 123
    %v413 = vpop.permute.xlu0 %412
    %v418 = vadd.f32 %v392, %v407
    %v419 = vadd.f32 %v393, %v409
    %v420 = vadd.f32 %v394, %v411
    %v421 = vadd.f32 %v395, %v413
    %s422 = sld [smem:[#allocation5 + $0x6]]
    %v423 = vstv %s422
    %v424 = vmul.f32 %v423, %v130
    %v425 = vmul.f32 %v423, %v131
    %v426 = vmul.f32 %v423, %v133
    %v427 = vmul.f32 %v423, %v134
    %432 = vrot.lane.b32.xlu0 %v424, 122
    %v433 = vpop.permute.xlu0 %432
    %434 = vrot.lane.b32.xlu0 %v425, 122
    %v435 = vpop.permute.xlu0 %434
    %436 = vrot.lane.b32.xlu0 %v426, 122
    %v437 = vpop.permute.xlu0 %436
    %438 = vrot.lane.b32.xlu0 %v427, 122
    %v439 = vpop.permute.xlu0 %438
    %v444 = vadd.f32 %v418, %v433
    %v445 = vadd.f32 %v419, %v435
    %v446 = vadd.f32 %v420, %v437
    %v447 = vadd.f32 %v421, %v439
    %s448 = sld [smem:[#allocation5 + $0x37]]
    %v449 = vstv %s448
    %v450 = vmul.f32 %v449, %v136
    %v451 = vmul.f32 %v449, %v137
    %v452 = vmul.f32 %v449, %v139
    %v453 = vmul.f32 %v449, %v140
    %458 = vrot.lane.b32.xlu0 %v450, 122
    %v459 = vpop.permute.xlu0 %458
    %460 = vrot.lane.b32.xlu0 %v451, 122
    %v461 = vpop.permute.xlu0 %460
    %462 = vrot.lane.b32.xlu0 %v452, 122
    %v463 = vpop.permute.xlu0 %462
    %464 = vrot.lane.b32.xlu0 %v453, 122
    %v465 = vpop.permute.xlu0 %464
    %v470 = vadd.f32 %v444, %v459
    %v471 = vadd.f32 %v445, %v461
    %v472 = vadd.f32 %v446, %v463
    %v473 = vadd.f32 %v447, %v465
    %s474 = sld [smem:[#allocation5 + $0x7]]
    %v475 = vstv %s474
    %v476 = vmul.f32 %v475, %v130
    %v477 = vmul.f32 %v475, %v131
    %v478 = vmul.f32 %v475, %v132
    %v479 = vmul.f32 %v475, %v133
    %v480 = vmul.f32 %v475, %v134
    %v481 = vmul.f32 %v475, %v135
    %vm488 = vcmask 1046528
    %v489 = vrot.slane %v476, 1
    %v490 = vrot.slane %v477, 1
    %v491 = vsel %vm488, %v489, %v490
    %v492 = vrot.slane %v478, 1
    %v493 = vsel %vm488, %v490, %v492
    %v494 = vrot.slane %v479, 1
    %v495 = vrot.slane %v480, 1
    %v496 = vsel %vm488, %v494, %v495
    %v497 = vrot.slane %v481, 1
    %v498 = vsel %vm488, %v495, %v497
    %v503 = vadd.f32 %v470, %v491
    %v504 = vadd.f32 %v471, %v493
    %v505 = vadd.f32 %v472, %v496
    %v506 = vadd.f32 %v473, %v498
    %s507 = sld [smem:[#allocation5 + $0x38]]
    %v508 = vstv %s507
    %v509 = vmul.f32 %v508, %v136
    %v510 = vmul.f32 %v508, %v137
    %v511 = vmul.f32 %v508, %v138
    %v512 = vmul.f32 %v508, %v139
    %v513 = vmul.f32 %v508, %v140
    %v514 = vmul.f32 %v508, %v141
    %v521 = vrot.slane %v509, 1
    %v522 = vrot.slane %v510, 1
    %v523 = vsel %vm488, %v521, %v522
    %v524 = vrot.slane %v511, 1
    %v525 = vsel %vm488, %v522, %v524
    %v526 = vrot.slane %v512, 1
    %v527 = vrot.slane %v513, 1
    %v528 = vsel %vm488, %v526, %v527
    %v529 = vrot.slane %v514, 1
    %v530 = vsel %vm488, %v527, %v529
    %v535 = vadd.f32 %v503, %v523
    %v536 = vadd.f32 %v504, %v525
    %v537 = vadd.f32 %v505, %v528
    %v538 = vadd.f32 %v506, %v530
    %s539 = sld [smem:[#allocation5 + $0x8]]
    %v540 = vstv %s539
    %v541 = vmul.f32 %v540, %v130
    %v542 = vmul.f32 %v540, %v131
    %v543 = vmul.f32 %v540, %v132
    %v544 = vmul.f32 %v540, %v133
    %v545 = vmul.f32 %v540, %v134
    %v546 = vmul.f32 %v540, %v135
    %v553 = vrot.slane %v541, 1
    %v554 = vrot.slane %v542, 1
    %v555 = vsel %vm488, %v553, %v554
    %v556 = vrot.slane %v543, 1
    %v557 = vsel %vm488, %v554, %v556
    %v558 = vrot.slane %v544, 1
    %v559 = vrot.slane %v545, 1
    %v560 = vsel %vm488, %v558, %v559
    %v561 = vrot.slane %v546, 1
    %v562 = vsel %vm488, %v559, %v561
    %563 = vrot.lane.b32.xlu0 %v555, 127
    %v564 = vpop.permute.xlu0 %563
    %565 = vrot.lane.b32.xlu0 %v557, 127
    %v566 = vpop.permute.xlu0 %565
    %567 = vrot.lane.b32.xlu0 %v560, 127
    %v568 = vpop.permute.xlu0 %567
    %569 = vrot.lane.b32.xlu0 %v562, 127
    %v570 = vpop.permute.xlu0 %569
    %v575 = vadd.f32 %v535, %v564
    %v576 = vadd.f32 %v536, %v566
    %v577 = vadd.f32 %v537, %v568
    %v578 = vadd.f32 %v538, %v570
    %s579 = sld [smem:[#allocation5 + $0x39]]
    %v580 = vstv %s579
    %v581 = vmul.f32 %v580, %v136
    %v582 = vmul.f32 %v580, %v137
    %v583 = vmul.f32 %v580, %v138
    %v584 = vmul.f32 %v580, %v139
    %v585 = vmul.f32 %v580, %v140
    %v586 = vmul.f32 %v580, %v141
    %v593 = vrot.slane %v581, 1
    %v594 = vrot.slane %v582, 1
    %v595 = vsel %vm488, %v593, %v594
    %v596 = vrot.slane %v583, 1
    %v597 = vsel %vm488, %v594, %v596
    %v598 = vrot.slane %v584, 1
    %v599 = vrot.slane %v585, 1
    %v600 = vsel %vm488, %v598, %v599
    %v601 = vrot.slane %v586, 1
    %v602 = vsel %vm488, %v599, %v601
    %603 = vrot.lane.b32.xlu0 %v595, 127
    %v604 = vpop.permute.xlu0 %603
    %605 = vrot.lane.b32.xlu0 %v597, 127
    %v606 = vpop.permute.xlu0 %605
    %607 = vrot.lane.b32.xlu0 %v600, 127
    %v608 = vpop.permute.xlu0 %607
    %609 = vrot.lane.b32.xlu0 %v602, 127
    %v610 = vpop.permute.xlu0 %609
    %v615 = vadd.f32 %v575, %v604
    %v616 = vadd.f32 %v576, %v606
    %v617 = vadd.f32 %v577, %v608
    %v618 = vadd.f32 %v578, %v610
    %s619 = sld [smem:[#allocation5 + $0x9]]
    %v620 = vstv %s619
    %v621 = vmul.f32 %v620, %v130
    %v622 = vmul.f32 %v620, %v131
    %v623 = vmul.f32 %v620, %v132
    %v624 = vmul.f32 %v620, %v133
    %v625 = vmul.f32 %v620, %v134
    %v626 = vmul.f32 %v620, %v135
    %v633 = vrot.slane %v621, 1
    %v634 = vrot.slane %v622, 1
    %v635 = vsel %vm488, %v633, %v634
    %v636 = vrot.slane %v623, 1
    %v637 = vsel %vm488, %v634, %v636
    %v638 = vrot.slane %v624, 1
    %v639 = vrot.slane %v625, 1
    %v640 = vsel %vm488, %v638, %v639
    %v641 = vrot.slane %v626, 1
    %v642 = vsel %vm488, %v639, %v641
    %643 = vrot.lane.b32.xlu0 %v635, 126
    %v644 = vpop.permute.xlu0 %643
    %645 = vrot.lane.b32.xlu0 %v637, 126
    %v646 = vpop.permute.xlu0 %645
    %647 = vrot.lane.b32.xlu0 %v640, 126
    %v648 = vpop.permute.xlu0 %647
    %649 = vrot.lane.b32.xlu0 %v642, 126
    %v650 = vpop.permute.xlu0 %649
    %v655 = vadd.f32 %v615, %v644
    %v656 = vadd.f32 %v616, %v646
    %v657 = vadd.f32 %v617, %v648
    %v658 = vadd.f32 %v618, %v650
    %s659 = sld [smem:[#allocation5 + $0x3a]]
    %v660 = vstv %s659
    %v661 = vmul.f32 %v660, %v136
    %v662 = vmul.f32 %v660, %v137
    %v663 = vmul.f32 %v660, %v138
    %v664 = vmul.f32 %v660, %v139
    %v665 = vmul.f32 %v660, %v140
    %v666 = vmul.f32 %v660, %v141
    %v673 = vrot.slane %v661, 1
    %v674 = vrot.slane %v662, 1
    %v675 = vsel %vm488, %v673, %v674
    %v676 = vrot.slane %v663, 1
    %v677 = vsel %vm488, %v674, %v676
    %v678 = vrot.slane %v664, 1
    %v679 = vrot.slane %v665, 1
    %v680 = vsel %vm488, %v678, %v679
    %v681 = vrot.slane %v666, 1
    %v682 = vsel %vm488, %v679, %v681
    %683 = vrot.lane.b32.xlu0 %v675, 126
    %v684 = vpop.permute.xlu0 %683
    %685 = vrot.lane.b32.xlu0 %v677, 126
    %v686 = vpop.permute.xlu0 %685
    %687 = vrot.lane.b32.xlu0 %v680, 126
    %v688 = vpop.permute.xlu0 %687
    %689 = vrot.lane.b32.xlu0 %v682, 126
    %v690 = vpop.permute.xlu0 %689
    %v695 = vadd.f32 %v655, %v684
    %v696 = vadd.f32 %v656, %v686
    %v697 = vadd.f32 %v657, %v688
    %v698 = vadd.f32 %v658, %v690
    %s699 = sld [smem:[#allocation5 + $0xa]]
    %v700 = vstv %s699
    %v701 = vmul.f32 %v700, %v130
    %v702 = vmul.f32 %v700, %v131
    %v703 = vmul.f32 %v700, %v132
    %v704 = vmul.f32 %v700, %v133
    %v705 = vmul.f32 %v700, %v134
    %v706 = vmul.f32 %v700, %v135
    %v713 = vrot.slane %v701, 1
    %v714 = vrot.slane %v702, 1
    %v715 = vsel %vm488, %v713, %v714
    %v716 = vrot.slane %v703, 1
    %v717 = vsel %vm488, %v714, %v716
    %v718 = vrot.slane %v704, 1
    %v719 = vrot.slane %v705, 1
    %v720 = vsel %vm488, %v718, %v719
    %v721 = vrot.slane %v706, 1
    %v722 = vsel %vm488, %v719, %v721
    %723 = vrot.lane.b32.xlu0 %v715, 125
    %v724 = vpop.permute.xlu0 %723
    %725 = vrot.lane.b32.xlu0 %v717, 125
    %v726 = vpop.permute.xlu0 %725
    %727 = vrot.lane.b32.xlu0 %v720, 125
    %v728 = vpop.permute.xlu0 %727
    %729 = vrot.lane.b32.xlu0 %v722, 125
    %v730 = vpop.permute.xlu0 %729
    %v735 = vadd.f32 %v695, %v724
    %v736 = vadd.f32 %v696, %v726
    %v737 = vadd.f32 %v697, %v728
    %v738 = vadd.f32 %v698, %v730
    %s739 = sld [smem:[#allocation5 + $0x3b]]
    %v740 = vstv %s739
    %v741 = vmul.f32 %v740, %v136
    %v742 = vmul.f32 %v740, %v137
    %v743 = vmul.f32 %v740, %v138
    %v744 = vmul.f32 %v740, %v139
    %v745 = vmul.f32 %v740, %v140
    %v746 = vmul.f32 %v740, %v141
    %v753 = vrot.slane %v741, 1
    %v754 = vrot.slane %v742, 1
    %v755 = vsel %vm488, %v753, %v754
    %v756 = vrot.slane %v743, 1
    %v757 = vsel %vm488, %v754, %v756
    %v758 = vrot.slane %v744, 1
    %v759 = vrot.slane %v745, 1
    %v760 = vsel %vm488, %v758, %v759
    %v761 = vrot.slane %v746, 1
    %v762 = vsel %vm488, %v759, %v761
    %763 = vrot.lane.b32.xlu0 %v755, 125
    %v764 = vpop.permute.xlu0 %763
    %765 = vrot.lane.b32.xlu0 %v757, 125
    %v766 = vpop.permute.xlu0 %765
    %767 = vrot.lane.b32.xlu0 %v760, 125
    %v768 = vpop.permute.xlu0 %767
    %769 = vrot.lane.b32.xlu0 %v762, 125
    %v770 = vpop.permute.xlu0 %769
    %v775 = vadd.f32 %v735, %v764
    %v776 = vadd.f32 %v736, %v766
    %v777 = vadd.f32 %v737, %v768
    %v778 = vadd.f32 %v738, %v770
    %s779 = sld [smem:[#allocation5 + $0xb]]
    %v780 = vstv %s779
    %v781 = vmul.f32 %v780, %v130
    %v782 = vmul.f32 %v780, %v131
    %v783 = vmul.f32 %v780, %v132
    %v784 = vmul.f32 %v780, %v133
    %v785 = vmul.f32 %v780, %v134
    %v786 = vmul.f32 %v780, %v135
    %v793 = vrot.slane %v781, 1
    %v794 = vrot.slane %v782, 1
    %v795 = vsel %vm488, %v793, %v794
    %v796 = vrot.slane %v783, 1
    %v797 = vsel %vm488, %v794, %v796
    %v798 = vrot.slane %v784, 1
    %v799 = vrot.slane %v785, 1
    %v800 = vsel %vm488, %v798, %v799
    %v801 = vrot.slane %v786, 1
    %v802 = vsel %vm488, %v799, %v801
    %803 = vrot.lane.b32.xlu0 %v795, 124
    %v804 = vpop.permute.xlu0 %803
    %805 = vrot.lane.b32.xlu0 %v797, 124
    %v806 = vpop.permute.xlu0 %805
    %807 = vrot.lane.b32.xlu0 %v800, 124
    %v808 = vpop.permute.xlu0 %807
    %809 = vrot.lane.b32.xlu0 %v802, 124
    %v810 = vpop.permute.xlu0 %809
    %v815 = vadd.f32 %v775, %v804
    %v816 = vadd.f32 %v776, %v806
    %v817 = vadd.f32 %v777, %v808
    %v818 = vadd.f32 %v778, %v810
    %s819 = sld [smem:[#allocation5 + $0x3c]]
    %v820 = vstv %s819
    %v821 = vmul.f32 %v820, %v136
    %v822 = vmul.f32 %v820, %v137
    %v823 = vmul.f32 %v820, %v138
    %v824 = vmul.f32 %v820, %v139
    %v825 = vmul.f32 %v820, %v140
    %v826 = vmul.f32 %v820, %v141
    %v833 = vrot.slane %v821, 1
    %v834 = vrot.slane %v822, 1
    %v835 = vsel %vm488, %v833, %v834
    %v836 = vrot.slane %v823, 1
    %v837 = vsel %vm488, %v834, %v836
    %v838 = vrot.slane %v824, 1
    %v839 = vrot.slane %v825, 1
    %v840 = vsel %vm488, %v838, %v839
    %v841 = vrot.slane %v826, 1
    %v842 = vsel %vm488, %v839, %v841
    %843 = vrot.lane.b32.xlu0 %v835, 124
    %v844 = vpop.permute.xlu0 %843
    %845 = vrot.lane.b32.xlu0 %v837, 124
    %v846 = vpop.permute.xlu0 %845
    %847 = vrot.lane.b32.xlu0 %v840, 124
    %v848 = vpop.permute.xlu0 %847
    %849 = vrot.lane.b32.xlu0 %v842, 124
    %v850 = vpop.permute.xlu0 %849
    %v855 = vadd.f32 %v815, %v844
    %v856 = vadd.f32 %v816, %v846
    %v857 = vadd.f32 %v817, %v848
    %v858 = vadd.f32 %v818, %v850
    %s859 = sld [smem:[#allocation5 + $0xc]]
    %v860 = vstv %s859
    %v861 = vmul.f32 %v860, %v130
    %v862 = vmul.f32 %v860, %v131
    %v863 = vmul.f32 %v860, %v132
    %v864 = vmul.f32 %v860, %v133
    %v865 = vmul.f32 %v860, %v134
    %v866 = vmul.f32 %v860, %v135
    %v873 = vrot.slane %v861, 1
    %v874 = vrot.slane %v862, 1
    %v875 = vsel %vm488, %v873, %v874
    %v876 = vrot.slane %v863, 1
    %v877 = vsel %vm488, %v874, %v876
    %v878 = vrot.slane %v864, 1
    %v879 = vrot.slane %v865, 1
    %v880 = vsel %vm488, %v878, %v879
    %v881 = vrot.slane %v866, 1
    %v882 = vsel %vm488, %v879, %v881
    %883 = vrot.lane.b32.xlu0 %v875, 123
    %v884 = vpop.permute.xlu0 %883
    %885 = vrot.lane.b32.xlu0 %v877, 123
    %v886 = vpop.permute.xlu0 %885
    %887 = vrot.lane.b32.xlu0 %v880, 123
    %v888 = vpop.permute.xlu0 %887
    %889 = vrot.lane.b32.xlu0 %v882, 123
    %v890 = vpop.permute.xlu0 %889
    %v895 = vadd.f32 %v855, %v884
    %v896 = vadd.f32 %v856, %v886
    %v897 = vadd.f32 %v857, %v888
    %v898 = vadd.f32 %v858, %v890
    %s899 = sld [smem:[#allocation5 + $0x3d]]
    %v900 = vstv %s899
    %v901 = vmul.f32 %v900, %v136
    %v902 = vmul.f32 %v900, %v137
    %v903 = vmul.f32 %v900, %v138
    %v904 = vmul.f32 %v900, %v139
    %v905 = vmul.f32 %v900, %v140
    %v906 = vmul.f32 %v900, %v141
    %v913 = vrot.slane %v901, 1
    %v914 = vrot.slane %v902, 1
    %v915 = vsel %vm488, %v913, %v914
    %v916 = vrot.slane %v903, 1
    %v917 = vsel %vm488, %v914, %v916
    %v918 = vrot.slane %v904, 1
    %v919 = vrot.slane %v905, 1
    %v920 = vsel %vm488, %v918, %v919
    %v921 = vrot.slane %v906, 1
    %v922 = vsel %vm488, %v919, %v921
    %923 = vrot.lane.b32.xlu0 %v915, 123
    %v924 = vpop.permute.xlu0 %923
    %925 = vrot.lane.b32.xlu0 %v917, 123
    %v926 = vpop.permute.xlu0 %925
    %927 = vrot.lane.b32.xlu0 %v920, 123
    %v928 = vpop.permute.xlu0 %927
    %929 = vrot.lane.b32.xlu0 %v922, 123
    %v930 = vpop.permute.xlu0 %929
    %v935 = vadd.f32 %v895, %v924
    %v936 = vadd.f32 %v896, %v926
    %v937 = vadd.f32 %v897, %v928
    %v938 = vadd.f32 %v898, %v930
    %s939 = sld [smem:[#allocation5 + $0xd]]
    %v940 = vstv %s939
    %v941 = vmul.f32 %v940, %v130
    %v942 = vmul.f32 %v940, %v131
    %v943 = vmul.f32 %v940, %v132
    %v944 = vmul.f32 %v940, %v133
    %v945 = vmul.f32 %v940, %v134
    %v946 = vmul.f32 %v940, %v135
    %v953 = vrot.slane %v941, 1
    %v954 = vrot.slane %v942, 1
    %v955 = vsel %vm488, %v953, %v954
    %v956 = vrot.slane %v943, 1
    %v957 = vsel %vm488, %v954, %v956
    %v958 = vrot.slane %v944, 1
    %v959 = vrot.slane %v945, 1
    %v960 = vsel %vm488, %v958, %v959
    %v961 = vrot.slane %v946, 1
    %v962 = vsel %vm488, %v959, %v961
    %963 = vrot.lane.b32.xlu0 %v955, 122
    %v964 = vpop.permute.xlu0 %963
    %965 = vrot.lane.b32.xlu0 %v957, 122
    %v966 = vpop.permute.xlu0 %965
    %967 = vrot.lane.b32.xlu0 %v960, 122
    %v968 = vpop.permute.xlu0 %967
    %969 = vrot.lane.b32.xlu0 %v962, 122
    %v970 = vpop.permute.xlu0 %969
    %v975 = vadd.f32 %v935, %v964
    %v976 = vadd.f32 %v936, %v966
    %v977 = vadd.f32 %v937, %v968
    %v978 = vadd.f32 %v938, %v970
    %s979 = sld [smem:[#allocation5 + $0x3e]]
    %v980 = vstv %s979
    %v981 = vmul.f32 %v980, %v136
    %v982 = vmul.f32 %v980, %v137
    %v983 = vmul.f32 %v980, %v138
    %v984 = vmul.f32 %v980, %v139
    %v985 = vmul.f32 %v980, %v140
    %v986 = vmul.f32 %v980, %v141
    %v993 = vrot.slane %v981, 1
    %v994 = vrot.slane %v982, 1
    %v995 = vsel %vm488, %v993, %v994
    %v996 = vrot.slane %v983, 1
    %v997 = vsel %vm488, %v994, %v996
    %v998 = vrot.slane %v984, 1
    %v999 = vrot.slane %v985, 1
    %v1000 = vsel %vm488, %v998, %v999
    %v1001 = vrot.slane %v986, 1
    %v1002 = vsel %vm488, %v999, %v1001
    %1003 = vrot.lane.b32.xlu0 %v995, 122
    %v1004 = vpop.permute.xlu0 %1003
    %1005 = vrot.lane.b32.xlu0 %v997, 122
    %v1006 = vpop.permute.xlu0 %1005
    %1007 = vrot.lane.b32.xlu0 %v1000, 122
    %v1008 = vpop.permute.xlu0 %1007
    %1009 = vrot.lane.b32.xlu0 %v1002, 122
    %v1010 = vpop.permute.xlu0 %1009
    %v1015 = vadd.f32 %v975, %v1004
    %v1016 = vadd.f32 %v976, %v1006
    %v1017 = vadd.f32 %v977, %v1008
    %v1018 = vadd.f32 %v978, %v1010
    %s1019 = sld [smem:[#allocation5 + $0xe]]
    %v1020 = vstv %s1019
    %v1021 = vmul.f32 %v1020, %v130
    %v1022 = vmul.f32 %v1020, %v131
    %v1023 = vmul.f32 %v1020, %v132
    %v1024 = vmul.f32 %v1020, %v133
    %v1025 = vmul.f32 %v1020, %v134
    %v1026 = vmul.f32 %v1020, %v135
    %vm1033 = vcmask 1045504
    %v1034 = vrot.slane %v1021, 2
    %v1035 = vrot.slane %v1022, 2
    %v1036 = vsel %vm1033, %v1034, %v1035
    %v1037 = vrot.slane %v1023, 2
    %v1038 = vsel %vm1033, %v1035, %v1037
    %v1039 = vrot.slane %v1024, 2
    %v1040 = vrot.slane %v1025, 2
    %v1041 = vsel %vm1033, %v1039, %v1040
    %v1042 = vrot.slane %v1026, 2
    %v1043 = vsel %vm1033, %v1040, %v1042
    %v1048 = vadd.f32 %v1015, %v1036
    %v1049 = vadd.f32 %v1016, %v1038
    %v1050 = vadd.f32 %v1017, %v1041
    %v1051 = vadd.f32 %v1018, %v1043
    %s1052 = sld [smem:[#allocation5 + $0x3f]]
    %v1053 = vstv %s1052
    %v1054 = vmul.f32 %v1053, %v136
    %v1055 = vmul.f32 %v1053, %v137
    %v1056 = vmul.f32 %v1053, %v138
    %v1057 = vmul.f32 %v1053, %v139
    %v1058 = vmul.f32 %v1053, %v140
    %v1059 = vmul.f32 %v1053, %v141
    %v1066 = vrot.slane %v1054, 2
    %v1067 = vrot.slane %v1055, 2
    %v1068 = vsel %vm1033, %v1066, %v1067
    %v1069 = vrot.slane %v1056, 2
    %v1070 = vsel %vm1033, %v1067, %v1069
    %v1071 = vrot.slane %v1057, 2
    %v1072 = vrot.slane %v1058, 2
    %v1073 = vsel %vm1033, %v1071, %v1072
    %v1074 = vrot.slane %v1059, 2
    %v1075 = vsel %vm1033, %v1072, %v1074
    %v1080 = vadd.f32 %v1048, %v1068
    %v1081 = vadd.f32 %v1049, %v1070
    %v1082 = vadd.f32 %v1050, %v1073
    %v1083 = vadd.f32 %v1051, %v1075
    %s1084 = sld [smem:[#allocation5 + $0xf]]
    %v1085 = vstv %s1084
    %v1086 = vmul.f32 %v1085, %v130
    %v1087 = vmul.f32 %v1085, %v131
    %v1088 = vmul.f32 %v1085, %v132
    %v1089 = vmul.f32 %v1085, %v133
    %v1090 = vmul.f32 %v1085, %v134
    %v1091 = vmul.f32 %v1085, %v135
    %v1098 = vrot.slane %v1086, 2
    %v1099 = vrot.slane %v1087, 2
    %v1100 = vsel %vm1033, %v1098, %v1099
    %v1101 = vrot.slane %v1088, 2
    %v1102 = vsel %vm1033, %v1099, %v1101
    %v1103 = vrot.slane %v1089, 2
    %v1104 = vrot.slane %v1090, 2
    %v1105 = vsel %vm1033, %v1103, %v1104
    %v1106 = vrot.slane %v1091, 2
    %v1107 = vsel %vm1033, %v1104, %v1106
    %1108 = vrot.lane.b32.xlu0 %v1100, 127
    %v1109 = vpop.permute.xlu0 %1108
    %1110 = vrot.lane.b32.xlu0 %v1102, 127
    %v1111 = vpop.permute.xlu0 %1110
    %1112 = vrot.lane.b32.xlu0 %v1105, 127
    %v1113 = vpop.permute.xlu0 %1112
    %1114 = vrot.lane.b32.xlu0 %v1107, 127
    %v1115 = vpop.permute.xlu0 %1114
    %v1120 = vadd.f32 %v1080, %v1109
    %v1121 = vadd.f32 %v1081, %v1111
    %v1122 = vadd.f32 %v1082, %v1113
    %v1123 = vadd.f32 %v1083, %v1115
    %s1124 = sld [smem:[#allocation5 + $0x40]]
    %v1125 = vstv %s1124
    %v1126 = vmul.f32 %v1125, %v136
    %v1127 = vmul.f32 %v1125, %v137
    %v1128 = vmul.f32 %v1125, %v138
    %v1129 = vmul.f32 %v1125, %v139
    %v1130 = vmul.f32 %v1125, %v140
    %v1131 = vmul.f32 %v1125, %v141
    %v1138 = vrot.slane %v1126, 2
    %v1139 = vrot.slane %v1127, 2
    %v1140 = vsel %vm1033, %v1138, %v1139
    %v1141 = vrot.slane %v1128, 2
    %v1142 = vsel %vm1033, %v1139, %v1141
    %v1143 = vrot.slane %v1129, 2
    %v1144 = vrot.slane %v1130, 2
    %v1145 = vsel %vm1033, %v1143, %v1144
    %v1146 = vrot.slane %v1131, 2
    %v1147 = vsel %vm1033, %v1144, %v1146
    %1148 = vrot.lane.b32.xlu0 %v1140, 127
    %v1149 = vpop.permute.xlu0 %1148
    %1150 = vrot.lane.b32.xlu0 %v1142, 127
    %v1151 = vpop.permute.xlu0 %1150
    %1152 = vrot.lane.b32.xlu0 %v1145, 127
    %v1153 = vpop.permute.xlu0 %1152
    %1154 = vrot.lane.b32.xlu0 %v1147, 127
    %v1155 = vpop.permute.xlu0 %1154
    %v1160 = vadd.f32 %v1120, %v1149
    %v1161 = vadd.f32 %v1121, %v1151
    %v1162 = vadd.f32 %v1122, %v1153
    %v1163 = vadd.f32 %v1123, %v1155
    %s1164 = sld [smem:[#allocation5 + $0x10]]
    %v1165 = vstv %s1164
    %v1166 = vmul.f32 %v1165, %v130
    %v1167 = vmul.f32 %v1165, %v131
    %v1168 = vmul.f32 %v1165, %v132
    %v1169 = vmul.f32 %v1165, %v133
    %v1170 = vmul.f32 %v1165, %v134
    %v1171 = vmul.f32 %v1165, %v135
    %v1178 = vrot.slane %v1166, 2
    %v1179 = vrot.slane %v1167, 2
    %v1180 = vsel %vm1033, %v1178, %v1179
    %v1181 = vrot.slane %v1168, 2
    %v1182 = vsel %vm1033, %v1179, %v1181
    %v1183 = vrot.slane %v1169, 2
    %v1184 = vrot.slane %v1170, 2
    %v1185 = vsel %vm1033, %v1183, %v1184
    %v1186 = vrot.slane %v1171, 2
    %v1187 = vsel %vm1033, %v1184, %v1186
    %1188 = vrot.lane.b32.xlu0 %v1180, 126
    %v1189 = vpop.permute.xlu0 %1188
    %1190 = vrot.lane.b32.xlu0 %v1182, 126
    %v1191 = vpop.permute.xlu0 %1190
    %1192 = vrot.lane.b32.xlu0 %v1185, 126
    %v1193 = vpop.permute.xlu0 %1192
    %1194 = vrot.lane.b32.xlu0 %v1187, 126
    %v1195 = vpop.permute.xlu0 %1194
    %v1200 = vadd.f32 %v1160, %v1189
    %v1201 = vadd.f32 %v1161, %v1191
    %v1202 = vadd.f32 %v1162, %v1193
    %v1203 = vadd.f32 %v1163, %v1195
    %s1204 = sld [smem:[#allocation5 + $0x41]]
    %v1205 = vstv %s1204
    %v1206 = vmul.f32 %v1205, %v136
    %v1207 = vmul.f32 %v1205, %v137
    %v1208 = vmul.f32 %v1205, %v138
    %v1209 = vmul.f32 %v1205, %v139
    %v1210 = vmul.f32 %v1205, %v140
    %v1211 = vmul.f32 %v1205, %v141
    %v1218 = vrot.slane %v1206, 2
    %v1219 = vrot.slane %v1207, 2
    %v1220 = vsel %vm1033, %v1218, %v1219
    %v1221 = vrot.slane %v1208, 2
    %v1222 = vsel %vm1033, %v1219, %v1221
    %v1223 = vrot.slane %v1209, 2
    %v1224 = vrot.slane %v1210, 2
    %v1225 = vsel %vm1033, %v1223, %v1224
    %v1226 = vrot.slane %v1211, 2
    %v1227 = vsel %vm1033, %v1224, %v1226
    %1228 = vrot.lane.b32.xlu0 %v1220, 126
    %v1229 = vpop.permute.xlu0 %1228
    %1230 = vrot.lane.b32.xlu0 %v1222, 126
    %v1231 = vpop.permute.xlu0 %1230
    %1232 = vrot.lane.b32.xlu0 %v1225, 126
    %v1233 = vpop.permute.xlu0 %1232
    %1234 = vrot.lane.b32.xlu0 %v1227, 126
    %v1235 = vpop.permute.xlu0 %1234
    %v1240 = vadd.f32 %v1200, %v1229
    %v1241 = vadd.f32 %v1201, %v1231
    %v1242 = vadd.f32 %v1202, %v1233
    %v1243 = vadd.f32 %v1203, %v1235
    %s1244 = sld [smem:[#allocation5 + $0x11]]
    %v1245 = vstv %s1244
    %v1246 = vmul.f32 %v1245, %v130
    %v1247 = vmul.f32 %v1245, %v131
    %v1248 = vmul.f32 %v1245, %v132
    %v1249 = vmul.f32 %v1245, %v133
    %v1250 = vmul.f32 %v1245, %v134
    %v1251 = vmul.f32 %v1245, %v135
    %v1258 = vrot.slane %v1246, 2
    %v1259 = vrot.slane %v1247, 2
    %v1260 = vsel %vm1033, %v1258, %v1259
    %v1261 = vrot.slane %v1248, 2
    %v1262 = vsel %vm1033, %v1259, %v1261
    %v1263 = vrot.slane %v1249, 2
    %v1264 = vrot.slane %v1250, 2
    %v1265 = vsel %vm1033, %v1263, %v1264
    %v1266 = vrot.slane %v1251, 2
    %v1267 = vsel %vm1033, %v1264, %v1266
    %1268 = vrot.lane.b32.xlu0 %v1260, 125
    %v1269 = vpop.permute.xlu0 %1268
    %1270 = vrot.lane.b32.xlu0 %v1262, 125
    %v1271 = vpop.permute.xlu0 %1270
    %1272 = vrot.lane.b32.xlu0 %v1265, 125
    %v1273 = vpop.permute.xlu0 %1272
    %1274 = vrot.lane.b32.xlu0 %v1267, 125
    %v1275 = vpop.permute.xlu0 %1274
    %v1280 = vadd.f32 %v1240, %v1269
    %v1281 = vadd.f32 %v1241, %v1271
    %v1282 = vadd.f32 %v1242, %v1273
    %v1283 = vadd.f32 %v1243, %v1275
    %s1284 = sld [smem:[#allocation5 + $0x42]]
    %v1285 = vstv %s1284
    %v1286 = vmul.f32 %v1285, %v136
    %v1287 = vmul.f32 %v1285, %v137
    %v1288 = vmul.f32 %v1285, %v138
    %v1289 = vmul.f32 %v1285, %v139
    %v1290 = vmul.f32 %v1285, %v140
    %v1291 = vmul.f32 %v1285, %v141
    %v1298 = vrot.slane %v1286, 2
    %v1299 = vrot.slane %v1287, 2
    %v1300 = vsel %vm1033, %v1298, %v1299
    %v1301 = vrot.slane %v1288, 2
    %v1302 = vsel %vm1033, %v1299, %v1301
    %v1303 = vrot.slane %v1289, 2
    %v1304 = vrot.slane %v1290, 2
    %v1305 = vsel %vm1033, %v1303, %v1304
    %v1306 = vrot.slane %v1291, 2
    %v1307 = vsel %vm1033, %v1304, %v1306
    %1308 = vrot.lane.b32.xlu0 %v1300, 125
    %v1309 = vpop.permute.xlu0 %1308
    %1310 = vrot.lane.b32.xlu0 %v1302, 125
    %v1311 = vpop.permute.xlu0 %1310
    %1312 = vrot.lane.b32.xlu0 %v1305, 125
    %v1313 = vpop.permute.xlu0 %1312
    %1314 = vrot.lane.b32.xlu0 %v1307, 125
    %v1315 = vpop.permute.xlu0 %1314
    %v1320 = vadd.f32 %v1280, %v1309
    %v1321 = vadd.f32 %v1281, %v1311
    %v1322 = vadd.f32 %v1282, %v1313
    %v1323 = vadd.f32 %v1283, %v1315
    %s1324 = sld [smem:[#allocation5 + $0x12]]
    %v1325 = vstv %s1324
    %v1326 = vmul.f32 %v1325, %v130
    %v1327 = vmul.f32 %v1325, %v131
    %v1328 = vmul.f32 %v1325, %v132
    %v1329 = vmul.f32 %v1325, %v133
    %v1330 = vmul.f32 %v1325, %v134
    %v1331 = vmul.f32 %v1325, %v135
    %v1338 = vrot.slane %v1326, 2
    %v1339 = vrot.slane %v1327, 2
    %v1340 = vsel %vm1033, %v1338, %v1339
    %v1341 = vrot.slane %v1328, 2
    %v1342 = vsel %vm1033, %v1339, %v1341
    %v1343 = vrot.slane %v1329, 2
    %v1344 = vrot.slane %v1330, 2
    %v1345 = vsel %vm1033, %v1343, %v1344
    %v1346 = vrot.slane %v1331, 2
    %v1347 = vsel %vm1033, %v1344, %v1346
    %1348 = vrot.lane.b32.xlu0 %v1340, 124
    %v1349 = vpop.permute.xlu0 %1348
    %1350 = vrot.lane.b32.xlu0 %v1342, 124
    %v1351 = vpop.permute.xlu0 %1350
    %1352 = vrot.lane.b32.xlu0 %v1345, 124
    %v1353 = vpop.permute.xlu0 %1352
    %1354 = vrot.lane.b32.xlu0 %v1347, 124
    %v1355 = vpop.permute.xlu0 %1354
    %v1360 = vadd.f32 %v1320, %v1349
    %v1361 = vadd.f32 %v1321, %v1351
    %v1362 = vadd.f32 %v1322, %v1353
    %v1363 = vadd.f32 %v1323, %v1355
    %s1364 = sld [smem:[#allocation5 + $0x43]]
    %v1365 = vstv %s1364
    %v1366 = vmul.f32 %v1365, %v136
    %v1367 = vmul.f32 %v1365, %v137
    %v1368 = vmul.f32 %v1365, %v138
    %v1369 = vmul.f32 %v1365, %v139
    %v1370 = vmul.f32 %v1365, %v140
    %v1371 = vmul.f32 %v1365, %v141
    %v1378 = vrot.slane %v1366, 2
    %v1379 = vrot.slane %v1367, 2
    %v1380 = vsel %vm1033, %v1378, %v1379
    %v1381 = vrot.slane %v1368, 2
    %v1382 = vsel %vm1033, %v1379, %v1381
    %v1383 = vrot.slane %v1369, 2
    %v1384 = vrot.slane %v1370, 2
    %v1385 = vsel %vm1033, %v1383, %v1384
    %v1386 = vrot.slane %v1371, 2
    %v1387 = vsel %vm1033, %v1384, %v1386
    %1388 = vrot.lane.b32.xlu0 %v1380, 124
    %v1389 = vpop.permute.xlu0 %1388
    %1390 = vrot.lane.b32.xlu0 %v1382, 124
    %v1391 = vpop.permute.xlu0 %1390
    %1392 = vrot.lane.b32.xlu0 %v1385, 124
    %v1393 = vpop.permute.xlu0 %1392
    %1394 = vrot.lane.b32.xlu0 %v1387, 124
    %v1395 = vpop.permute.xlu0 %1394
    %v1400 = vadd.f32 %v1360, %v1389
    %v1401 = vadd.f32 %v1361, %v1391
    %v1402 = vadd.f32 %v1362, %v1393
    %v1403 = vadd.f32 %v1363, %v1395
    %s1404 = sld [smem:[#allocation5 + $0x13]]
    %v1405 = vstv %s1404
    %v1406 = vmul.f32 %v1405, %v130
    %v1407 = vmul.f32 %v1405, %v131
    %v1408 = vmul.f32 %v1405, %v132
    %v1409 = vmul.f32 %v1405, %v133
    %v1410 = vmul.f32 %v1405, %v134
    %v1411 = vmul.f32 %v1405, %v135
    %v1418 = vrot.slane %v1406, 2
    %v1419 = vrot.slane %v1407, 2
    %v1420 = vsel %vm1033, %v1418, %v1419
    %v1421 = vrot.slane %v1408, 2
    %v1422 = vsel %vm1033, %v1419, %v1421
    %v1423 = vrot.slane %v1409, 2
    %v1424 = vrot.slane %v1410, 2
    %v1425 = vsel %vm1033, %v1423, %v1424
    %v1426 = vrot.slane %v1411, 2
    %v1427 = vsel %vm1033, %v1424, %v1426
    %1428 = vrot.lane.b32.xlu0 %v1420, 123
    %v1429 = vpop.permute.xlu0 %1428
    %1430 = vrot.lane.b32.xlu0 %v1422, 123
    %v1431 = vpop.permute.xlu0 %1430
    %1432 = vrot.lane.b32.xlu0 %v1425, 123
    %v1433 = vpop.permute.xlu0 %1432
    %1434 = vrot.lane.b32.xlu0 %v1427, 123
    %v1435 = vpop.permute.xlu0 %1434
    %v1440 = vadd.f32 %v1400, %v1429
    %v1441 = vadd.f32 %v1401, %v1431
    %v1442 = vadd.f32 %v1402, %v1433
    %v1443 = vadd.f32 %v1403, %v1435
    %s1444 = sld [smem:[#allocation5 + $0x44]]
    %v1445 = vstv %s1444
    %v1446 = vmul.f32 %v1445, %v136
    %v1447 = vmul.f32 %v1445, %v137
    %v1448 = vmul.f32 %v1445, %v138
    %v1449 = vmul.f32 %v1445, %v139
    %v1450 = vmul.f32 %v1445, %v140
    %v1451 = vmul.f32 %v1445, %v141
    %v1458 = vrot.slane %v1446, 2
    %v1459 = vrot.slane %v1447, 2
    %v1460 = vsel %vm1033, %v1458, %v1459
    %v1461 = vrot.slane %v1448, 2
    %v1462 = vsel %vm1033, %v1459, %v1461
    %v1463 = vrot.slane %v1449, 2
    %v1464 = vrot.slane %v1450, 2
    %v1465 = vsel %vm1033, %v1463, %v1464
    %v1466 = vrot.slane %v1451, 2
    %v1467 = vsel %vm1033, %v1464, %v1466
    %1468 = vrot.lane.b32.xlu0 %v1460, 123
    %v1469 = vpop.permute.xlu0 %1468
    %1470 = vrot.lane.b32.xlu0 %v1462, 123
    %v1471 = vpop.permute.xlu0 %1470
    %1472 = vrot.lane.b32.xlu0 %v1465, 123
    %v1473 = vpop.permute.xlu0 %1472
    %1474 = vrot.lane.b32.xlu0 %v1467, 123
    %v1475 = vpop.permute.xlu0 %1474
    %v1480 = vadd.f32 %v1440, %v1469
    %v1481 = vadd.f32 %v1441, %v1471
    %v1482 = vadd.f32 %v1442, %v1473
    %v1483 = vadd.f32 %v1443, %v1475
    %s1484 = sld [smem:[#allocation5 + $0x14]]
    %v1485 = vstv %s1484
    %v1486 = vmul.f32 %v1485, %v130
    %v1487 = vmul.f32 %v1485, %v131
    %v1488 = vmul.f32 %v1485, %v132
    %v1489 = vmul.f32 %v1485, %v133
    %v1490 = vmul.f32 %v1485, %v134
    %v1491 = vmul.f32 %v1485, %v135
    %v1498 = vrot.slane %v1486, 2
    %v1499 = vrot.slane %v1487, 2
    %v1500 = vsel %vm1033, %v1498, %v1499
    %v1501 = vrot.slane %v1488, 2
    %v1502 = vsel %vm1033, %v1499, %v1501
    %v1503 = vrot.slane %v1489, 2
    %v1504 = vrot.slane %v1490, 2
    %v1505 = vsel %vm1033, %v1503, %v1504
    %v1506 = vrot.slane %v1491, 2
    %v1507 = vsel %vm1033, %v1504, %v1506
    %1508 = vrot.lane.b32.xlu0 %v1500, 122
    %v1509 = vpop.permute.xlu0 %1508
    %1510 = vrot.lane.b32.xlu0 %v1502, 122
    %v1511 = vpop.permute.xlu0 %1510
    %1512 = vrot.lane.b32.xlu0 %v1505, 122
    %v1513 = vpop.permute.xlu0 %1512
    %1514 = vrot.lane.b32.xlu0 %v1507, 122
    %v1515 = vpop.permute.xlu0 %1514
    %v1520 = vadd.f32 %v1480, %v1509
    %v1521 = vadd.f32 %v1481, %v1511
    %v1522 = vadd.f32 %v1482, %v1513
    %v1523 = vadd.f32 %v1483, %v1515
    %s1524 = sld [smem:[#allocation5 + $0x45]]
    %v1525 = vstv %s1524
    %v1526 = vmul.f32 %v1525, %v136
    %v1527 = vmul.f32 %v1525, %v137
    %v1528 = vmul.f32 %v1525, %v138
    %v1529 = vmul.f32 %v1525, %v139
    %v1530 = vmul.f32 %v1525, %v140
    %v1531 = vmul.f32 %v1525, %v141
    %v1538 = vrot.slane %v1526, 2
    %v1539 = vrot.slane %v1527, 2
    %v1540 = vsel %vm1033, %v1538, %v1539
    %v1541 = vrot.slane %v1528, 2
    %v1542 = vsel %vm1033, %v1539, %v1541
    %v1543 = vrot.slane %v1529, 2
    %v1544 = vrot.slane %v1530, 2
    %v1545 = vsel %vm1033, %v1543, %v1544
    %v1546 = vrot.slane %v1531, 2
    %v1547 = vsel %vm1033, %v1544, %v1546
    %1548 = vrot.lane.b32.xlu0 %v1540, 122
    %v1549 = vpop.permute.xlu0 %1548
    %1550 = vrot.lane.b32.xlu0 %v1542, 122
    %v1551 = vpop.permute.xlu0 %1550
    %1552 = vrot.lane.b32.xlu0 %v1545, 122
    %v1553 = vpop.permute.xlu0 %1552
    %1554 = vrot.lane.b32.xlu0 %v1547, 122
    %v1555 = vpop.permute.xlu0 %1554
    %v1560 = vadd.f32 %v1520, %v1549
    %v1561 = vadd.f32 %v1521, %v1551
    %v1562 = vadd.f32 %v1522, %v1553
    %v1563 = vadd.f32 %v1523, %v1555
    %s1564 = sld [smem:[#allocation5 + $0x15]]
    %v1565 = vstv %s1564
    %v1566 = vmul.f32 %v1565, %v130
    %v1567 = vmul.f32 %v1565, %v131
    %v1568 = vmul.f32 %v1565, %v132
    %v1569 = vmul.f32 %v1565, %v133
    %v1570 = vmul.f32 %v1565, %v134
    %v1571 = vmul.f32 %v1565, %v135
    %vm1578 = vcmask 1044480
    %v1579 = vrot.slane %v1566, 3
    %v1580 = vrot.slane %v1567, 3
    %v1581 = vsel %vm1578, %v1579, %v1580
    %v1582 = vrot.slane %v1568, 3
    %v1583 = vsel %vm1578, %v1580, %v1582
    %v1584 = vrot.slane %v1569, 3
    %v1585 = vrot.slane %v1570, 3
    %v1586 = vsel %vm1578, %v1584, %v1585
    %v1587 = vrot.slane %v1571, 3
    %v1588 = vsel %vm1578, %v1585, %v1587
    %v1593 = vadd.f32 %v1560, %v1581
    %v1594 = vadd.f32 %v1561, %v1583
    %v1595 = vadd.f32 %v1562, %v1586
    %v1596 = vadd.f32 %v1563, %v1588
    %s1597 = sld [smem:[#allocation5 + $0x46]]
    %v1598 = vstv %s1597
    %v1599 = vmul.f32 %v1598, %v136
    %v1600 = vmul.f32 %v1598, %v137
    %v1601 = vmul.f32 %v1598, %v138
    %v1602 = vmul.f32 %v1598, %v139
    %v1603 = vmul.f32 %v1598, %v140
    %v1604 = vmul.f32 %v1598, %v141
    %v1611 = vrot.slane %v1599, 3
    %v1612 = vrot.slane %v1600, 3
    %v1613 = vsel %vm1578, %v1611, %v1612
    %v1614 = vrot.slane %v1601, 3
    %v1615 = vsel %vm1578, %v1612, %v1614
    %v1616 = vrot.slane %v1602, 3
    %v1617 = vrot.slane %v1603, 3
    %v1618 = vsel %vm1578, %v1616, %v1617
    %v1619 = vrot.slane %v1604, 3
    %v1620 = vsel %vm1578, %v1617, %v1619
    %v1625 = vadd.f32 %v1593, %v1613
    %v1626 = vadd.f32 %v1594, %v1615
    %v1627 = vadd.f32 %v1595, %v1618
    %v1628 = vadd.f32 %v1596, %v1620
    %s1629 = sld [smem:[#allocation5 + $0x16]]
    %v1630 = vstv %s1629
    %v1631 = vmul.f32 %v1630, %v130
    %v1632 = vmul.f32 %v1630, %v131
    %v1633 = vmul.f32 %v1630, %v132
    %v1634 = vmul.f32 %v1630, %v133
    %v1635 = vmul.f32 %v1630, %v134
    %v1636 = vmul.f32 %v1630, %v135
    %v1643 = vrot.slane %v1631, 3
    %v1644 = vrot.slane %v1632, 3
    %v1645 = vsel %vm1578, %v1643, %v1644
    %v1646 = vrot.slane %v1633, 3
    %v1647 = vsel %vm1578, %v1644, %v1646
    %v1648 = vrot.slane %v1634, 3
    %v1649 = vrot.slane %v1635, 3
    %v1650 = vsel %vm1578, %v1648, %v1649
    %v1651 = vrot.slane %v1636, 3
    %v1652 = vsel %vm1578, %v1649, %v1651
    %1653 = vrot.lane.b32.xlu0 %v1645, 127
    %v1654 = vpop.permute.xlu0 %1653
    %1655 = vrot.lane.b32.xlu0 %v1647, 127
    %v1656 = vpop.permute.xlu0 %1655
    %1657 = vrot.lane.b32.xlu0 %v1650, 127
    %v1658 = vpop.permute.xlu0 %1657
    %1659 = vrot.lane.b32.xlu0 %v1652, 127
    %v1660 = vpop.permute.xlu0 %1659
    %v1665 = vadd.f32 %v1625, %v1654
    %v1666 = vadd.f32 %v1626, %v1656
    %v1667 = vadd.f32 %v1627, %v1658
    %v1668 = vadd.f32 %v1628, %v1660
    %s1669 = sld [smem:[#allocation5 + $0x47]]
    %v1670 = vstv %s1669
    %v1671 = vmul.f32 %v1670, %v136
    %v1672 = vmul.f32 %v1670, %v137
    %v1673 = vmul.f32 %v1670, %v138
    %v1674 = vmul.f32 %v1670, %v139
    %v1675 = vmul.f32 %v1670, %v140
    %v1676 = vmul.f32 %v1670, %v141
    %v1683 = vrot.slane %v1671, 3
    %v1684 = vrot.slane %v1672, 3
    %v1685 = vsel %vm1578, %v1683, %v1684
    %v1686 = vrot.slane %v1673, 3
    %v1687 = vsel %vm1578, %v1684, %v1686
    %v1688 = vrot.slane %v1674, 3
    %v1689 = vrot.slane %v1675, 3
    %v1690 = vsel %vm1578, %v1688, %v1689
    %v1691 = vrot.slane %v1676, 3
    %v1692 = vsel %vm1578, %v1689, %v1691
    %1693 = vrot.lane.b32.xlu0 %v1685, 127
    %v1694 = vpop.permute.xlu0 %1693
    %1695 = vrot.lane.b32.xlu0 %v1687, 127
    %v1696 = vpop.permute.xlu0 %1695
    %1697 = vrot.lane.b32.xlu0 %v1690, 127
    %v1698 = vpop.permute.xlu0 %1697
    %1699 = vrot.lane.b32.xlu0 %v1692, 127
    %v1700 = vpop.permute.xlu0 %1699
    %v1705 = vadd.f32 %v1665, %v1694
    %v1706 = vadd.f32 %v1666, %v1696
    %v1707 = vadd.f32 %v1667, %v1698
    %v1708 = vadd.f32 %v1668, %v1700
    %s1709 = sld [smem:[#allocation5 + $0x17]]
    %v1710 = vstv %s1709
    %v1711 = vmul.f32 %v1710, %v130
    %v1712 = vmul.f32 %v1710, %v131
    %v1713 = vmul.f32 %v1710, %v132
    %v1714 = vmul.f32 %v1710, %v133
    %v1715 = vmul.f32 %v1710, %v134
    %v1716 = vmul.f32 %v1710, %v135
    %v1723 = vrot.slane %v1711, 3
    %v1724 = vrot.slane %v1712, 3
    %v1725 = vsel %vm1578, %v1723, %v1724
    %v1726 = vrot.slane %v1713, 3
    %v1727 = vsel %vm1578, %v1724, %v1726
    %v1728 = vrot.slane %v1714, 3
    %v1729 = vrot.slane %v1715, 3
    %v1730 = vsel %vm1578, %v1728, %v1729
    %v1731 = vrot.slane %v1716, 3
    %v1732 = vsel %vm1578, %v1729, %v1731
    %1733 = vrot.lane.b32.xlu0 %v1725, 126
    %v1734 = vpop.permute.xlu0 %1733
    %1735 = vrot.lane.b32.xlu0 %v1727, 126
    %v1736 = vpop.permute.xlu0 %1735
    %1737 = vrot.lane.b32.xlu0 %v1730, 126
    %v1738 = vpop.permute.xlu0 %1737
    %1739 = vrot.lane.b32.xlu0 %v1732, 126
    %v1740 = vpop.permute.xlu0 %1739
    %v1745 = vadd.f32 %v1705, %v1734
    %v1746 = vadd.f32 %v1706, %v1736
    %v1747 = vadd.f32 %v1707, %v1738
    %v1748 = vadd.f32 %v1708, %v1740
    %s1749 = sld [smem:[#allocation5 + $0x48]]
    %v1750 = vstv %s1749
    %v1751 = vmul.f32 %v1750, %v136
    %v1752 = vmul.f32 %v1750, %v137
    %v1753 = vmul.f32 %v1750, %v138
    %v1754 = vmul.f32 %v1750, %v139
    %v1755 = vmul.f32 %v1750, %v140
    %v1756 = vmul.f32 %v1750, %v141
    %v1763 = vrot.slane %v1751, 3
    %v1764 = vrot.slane %v1752, 3
    %v1765 = vsel %vm1578, %v1763, %v1764
    %v1766 = vrot.slane %v1753, 3
    %v1767 = vsel %vm1578, %v1764, %v1766
    %v1768 = vrot.slane %v1754, 3
    %v1769 = vrot.slane %v1755, 3
    %v1770 = vsel %vm1578, %v1768, %v1769
    %v1771 = vrot.slane %v1756, 3
    %v1772 = vsel %vm1578, %v1769, %v1771
    %1773 = vrot.lane.b32.xlu0 %v1765, 126
    %v1774 = vpop.permute.xlu0 %1773
    %1775 = vrot.lane.b32.xlu0 %v1767, 126
    %v1776 = vpop.permute.xlu0 %1775
    %1777 = vrot.lane.b32.xlu0 %v1770, 126
    %v1778 = vpop.permute.xlu0 %1777
    %1779 = vrot.lane.b32.xlu0 %v1772, 126
    %v1780 = vpop.permute.xlu0 %1779
    %v1785 = vadd.f32 %v1745, %v1774
    %v1786 = vadd.f32 %v1746, %v1776
    %v1787 = vadd.f32 %v1747, %v1778
    %v1788 = vadd.f32 %v1748, %v1780
    %s1789 = sld [smem:[#allocation5 + $0x18]]
    %v1790 = vstv %s1789
    %v1791 = vmul.f32 %v1790, %v130
    %v1792 = vmul.f32 %v1790, %v131
    %v1793 = vmul.f32 %v1790, %v132
    %v1794 = vmul.f32 %v1790, %v133
    %v1795 = vmul.f32 %v1790, %v134
    %v1796 = vmul.f32 %v1790, %v135
    %v1803 = vrot.slane %v1791, 3
    %v1804 = vrot.slane %v1792, 3
    %v1805 = vsel %vm1578, %v1803, %v1804
    %v1806 = vrot.slane %v1793, 3
    %v1807 = vsel %vm1578, %v1804, %v1806
    %v1808 = vrot.slane %v1794, 3
    %v1809 = vrot.slane %v1795, 3
    %v1810 = vsel %vm1578, %v1808, %v1809
    %v1811 = vrot.slane %v1796, 3
    %v1812 = vsel %vm1578, %v1809, %v1811
    %1813 = vrot.lane.b32.xlu0 %v1805, 125
    %v1814 = vpop.permute.xlu0 %1813
    %1815 = vrot.lane.b32.xlu0 %v1807, 125
    %v1816 = vpop.permute.xlu0 %1815
    %1817 = vrot.lane.b32.xlu0 %v1810, 125
    %v1818 = vpop.permute.xlu0 %1817
    %1819 = vrot.lane.b32.xlu0 %v1812, 125
    %v1820 = vpop.permute.xlu0 %1819
    %v1825 = vadd.f32 %v1785, %v1814
    %v1826 = vadd.f32 %v1786, %v1816
    %v1827 = vadd.f32 %v1787, %v1818
    %v1828 = vadd.f32 %v1788, %v1820
    %s1829 = sld [smem:[#allocation5 + $0x49]]
    %v1830 = vstv %s1829
    %v1831 = vmul.f32 %v1830, %v136
    %v1832 = vmul.f32 %v1830, %v137
    %v1833 = vmul.f32 %v1830, %v138
    %v1834 = vmul.f32 %v1830, %v139
    %v1835 = vmul.f32 %v1830, %v140
    %v1836 = vmul.f32 %v1830, %v141
    %v1843 = vrot.slane %v1831, 3
    %v1844 = vrot.slane %v1832, 3
    %v1845 = vsel %vm1578, %v1843, %v1844
    %v1846 = vrot.slane %v1833, 3
    %v1847 = vsel %vm1578, %v1844, %v1846
    %v1848 = vrot.slane %v1834, 3
    %v1849 = vrot.slane %v1835, 3
    %v1850 = vsel %vm1578, %v1848, %v1849
    %v1851 = vrot.slane %v1836, 3
    %v1852 = vsel %vm1578, %v1849, %v1851
    %1853 = vrot.lane.b32.xlu0 %v1845, 125
    %v1854 = vpop.permute.xlu0 %1853
    %1855 = vrot.lane.b32.xlu0 %v1847, 125
    %v1856 = vpop.permute.xlu0 %1855
    %1857 = vrot.lane.b32.xlu0 %v1850, 125
    %v1858 = vpop.permute.xlu0 %1857
    %1859 = vrot.lane.b32.xlu0 %v1852, 125
    %v1860 = vpop.permute.xlu0 %1859
    %v1865 = vadd.f32 %v1825, %v1854
    %v1866 = vadd.f32 %v1826, %v1856
    %v1867 = vadd.f32 %v1827, %v1858
    %v1868 = vadd.f32 %v1828, %v1860
    %s1869 = sld [smem:[#allocation5 + $0x19]]
    %v1870 = vstv %s1869
    %v1871 = vmul.f32 %v1870, %v130
    %v1872 = vmul.f32 %v1870, %v131
    %v1873 = vmul.f32 %v1870, %v132
    %v1874 = vmul.f32 %v1870, %v133
    %v1875 = vmul.f32 %v1870, %v134
    %v1876 = vmul.f32 %v1870, %v135
    %v1883 = vrot.slane %v1871, 3
    %v1884 = vrot.slane %v1872, 3
    %v1885 = vsel %vm1578, %v1883, %v1884
    %v1886 = vrot.slane %v1873, 3
    %v1887 = vsel %vm1578, %v1884, %v1886
    %v1888 = vrot.slane %v1874, 3
    %v1889 = vrot.slane %v1875, 3
    %v1890 = vsel %vm1578, %v1888, %v1889
    %v1891 = vrot.slane %v1876, 3
    %v1892 = vsel %vm1578, %v1889, %v1891
    %1893 = vrot.lane.b32.xlu0 %v1885, 124
    %v1894 = vpop.permute.xlu0 %1893
    %1895 = vrot.lane.b32.xlu0 %v1887, 124
    %v1896 = vpop.permute.xlu0 %1895
    %1897 = vrot.lane.b32.xlu0 %v1890, 124
    %v1898 = vpop.permute.xlu0 %1897
    %1899 = vrot.lane.b32.xlu0 %v1892, 124
    %v1900 = vpop.permute.xlu0 %1899
    %v1905 = vadd.f32 %v1865, %v1894
    %v1906 = vadd.f32 %v1866, %v1896
    %v1907 = vadd.f32 %v1867, %v1898
    %v1908 = vadd.f32 %v1868, %v1900
    %s1909 = sld [smem:[#allocation5 + $0x4a]]
    %v1910 = vstv %s1909
    %v1911 = vmul.f32 %v1910, %v136
    %v1912 = vmul.f32 %v1910, %v137
    %v1913 = vmul.f32 %v1910, %v138
    %v1914 = vmul.f32 %v1910, %v139
    %v1915 = vmul.f32 %v1910, %v140
    %v1916 = vmul.f32 %v1910, %v141
    %v1923 = vrot.slane %v1911, 3
    %v1924 = vrot.slane %v1912, 3
    %v1925 = vsel %vm1578, %v1923, %v1924
    %v1926 = vrot.slane %v1913, 3
    %v1927 = vsel %vm1578, %v1924, %v1926
    %v1928 = vrot.slane %v1914, 3
    %v1929 = vrot.slane %v1915, 3
    %v1930 = vsel %vm1578, %v1928, %v1929
    %v1931 = vrot.slane %v1916, 3
    %v1932 = vsel %vm1578, %v1929, %v1931
    %1933 = vrot.lane.b32.xlu0 %v1925, 124
    %v1934 = vpop.permute.xlu0 %1933
    %1935 = vrot.lane.b32.xlu0 %v1927, 124
    %v1936 = vpop.permute.xlu0 %1935
    %1937 = vrot.lane.b32.xlu0 %v1930, 124
    %v1938 = vpop.permute.xlu0 %1937
    %1939 = vrot.lane.b32.xlu0 %v1932, 124
    %v1940 = vpop.permute.xlu0 %1939
    %v1945 = vadd.f32 %v1905, %v1934
    %v1946 = vadd.f32 %v1906, %v1936
    %v1947 = vadd.f32 %v1907, %v1938
    %v1948 = vadd.f32 %v1908, %v1940
    %s1949 = sld [smem:[#allocation5 + $0x1a]]
    %v1950 = vstv %s1949
    %v1951 = vmul.f32 %v1950, %v130
    %v1952 = vmul.f32 %v1950, %v131
    %v1953 = vmul.f32 %v1950, %v132
    %v1954 = vmul.f32 %v1950, %v133
    %v1955 = vmul.f32 %v1950, %v134
    %v1956 = vmul.f32 %v1950, %v135
    %v1963 = vrot.slane %v1951, 3
    %v1964 = vrot.slane %v1952, 3
    %v1965 = vsel %vm1578, %v1963, %v1964
    %v1966 = vrot.slane %v1953, 3
    %v1967 = vsel %vm1578, %v1964, %v1966
    %v1968 = vrot.slane %v1954, 3
    %v1969 = vrot.slane %v1955, 3
    %v1970 = vsel %vm1578, %v1968, %v1969
    %v1971 = vrot.slane %v1956, 3
    %v1972 = vsel %vm1578, %v1969, %v1971
    %1973 = vrot.lane.b32.xlu0 %v1965, 123
    %v1974 = vpop.permute.xlu0 %1973
    %1975 = vrot.lane.b32.xlu0 %v1967, 123
    %v1976 = vpop.permute.xlu0 %1975
    %1977 = vrot.lane.b32.xlu0 %v1970, 123
    %v1978 = vpop.permute.xlu0 %1977
    %1979 = vrot.lane.b32.xlu0 %v1972, 123
    %v1980 = vpop.permute.xlu0 %1979
    %v1985 = vadd.f32 %v1945, %v1974
    %v1986 = vadd.f32 %v1946, %v1976
    %v1987 = vadd.f32 %v1947, %v1978
    %v1988 = vadd.f32 %v1948, %v1980
    %s1989 = sld [smem:[#allocation5 + $0x4b]]
    %v1990 = vstv %s1989
    %v1991 = vmul.f32 %v1990, %v136
    %v1992 = vmul.f32 %v1990, %v137
    %v1993 = vmul.f32 %v1990, %v138
    %v1994 = vmul.f32 %v1990, %v139
    %v1995 = vmul.f32 %v1990, %v140
    %v1996 = vmul.f32 %v1990, %v141
    %v2003 = vrot.slane %v1991, 3
    %v2004 = vrot.slane %v1992, 3
    %v2005 = vsel %vm1578, %v2003, %v2004
    %v2006 = vrot.slane %v1993, 3
    %v2007 = vsel %vm1578, %v2004, %v2006
    %v2008 = vrot.slane %v1994, 3
    %v2009 = vrot.slane %v1995, 3
    %v2010 = vsel %vm1578, %v2008, %v2009
    %v2011 = vrot.slane %v1996, 3
    %v2012 = vsel %vm1578, %v2009, %v2011
    %2013 = vrot.lane.b32.xlu0 %v2005, 123
    %v2014 = vpop.permute.xlu0 %2013
    %2015 = vrot.lane.b32.xlu0 %v2007, 123
    %v2016 = vpop.permute.xlu0 %2015
    %2017 = vrot.lane.b32.xlu0 %v2010, 123
    %v2018 = vpop.permute.xlu0 %2017
    %2019 = vrot.lane.b32.xlu0 %v2012, 123
    %v2020 = vpop.permute.xlu0 %2019
    %v2025 = vadd.f32 %v1985, %v2014
    %v2026 = vadd.f32 %v1986, %v2016
    %v2027 = vadd.f32 %v1987, %v2018
    %v2028 = vadd.f32 %v1988, %v2020
    %s2029 = sld [smem:[#allocation5 + $0x1b]]
    %v2030 = vstv %s2029
    %v2031 = vmul.f32 %v2030, %v130
    %v2032 = vmul.f32 %v2030, %v131
    %v2033 = vmul.f32 %v2030, %v132
    %v2034 = vmul.f32 %v2030, %v133
    %v2035 = vmul.f32 %v2030, %v134
    %v2036 = vmul.f32 %v2030, %v135
    %v2043 = vrot.slane %v2031, 3
    %v2044 = vrot.slane %v2032, 3
    %v2045 = vsel %vm1578, %v2043, %v2044
    %v2046 = vrot.slane %v2033, 3
    %v2047 = vsel %vm1578, %v2044, %v2046
    %v2048 = vrot.slane %v2034, 3
    %v2049 = vrot.slane %v2035, 3
    %v2050 = vsel %vm1578, %v2048, %v2049
    %v2051 = vrot.slane %v2036, 3
    %v2052 = vsel %vm1578, %v2049, %v2051
    %2053 = vrot.lane.b32.xlu0 %v2045, 122
    %v2054 = vpop.permute.xlu0 %2053
    %2055 = vrot.lane.b32.xlu0 %v2047, 122
    %v2056 = vpop.permute.xlu0 %2055
    %2057 = vrot.lane.b32.xlu0 %v2050, 122
    %v2058 = vpop.permute.xlu0 %2057
    %2059 = vrot.lane.b32.xlu0 %v2052, 122
    %v2060 = vpop.permute.xlu0 %2059
    %v2065 = vadd.f32 %v2025, %v2054
    %v2066 = vadd.f32 %v2026, %v2056
    %v2067 = vadd.f32 %v2027, %v2058
    %v2068 = vadd.f32 %v2028, %v2060
    %s2069 = sld [smem:[#allocation5 + $0x4c]]
    %v2070 = vstv %s2069
    %v2071 = vmul.f32 %v2070, %v136
    %v2072 = vmul.f32 %v2070, %v137
    %v2073 = vmul.f32 %v2070, %v138
    %v2074 = vmul.f32 %v2070, %v139
    %v2075 = vmul.f32 %v2070, %v140
    %v2076 = vmul.f32 %v2070, %v141
    %v2083 = vrot.slane %v2071, 3
    %v2084 = vrot.slane %v2072, 3
    %v2085 = vsel %vm1578, %v2083, %v2084
    %v2086 = vrot.slane %v2073, 3
    %v2087 = vsel %vm1578, %v2084, %v2086
    %v2088 = vrot.slane %v2074, 3
    %v2089 = vrot.slane %v2075, 3
    %v2090 = vsel %vm1578, %v2088, %v2089
    %v2091 = vrot.slane %v2076, 3
    %v2092 = vsel %vm1578, %v2089, %v2091
    %2093 = vrot.lane.b32.xlu0 %v2085, 122
    %v2094 = vpop.permute.xlu0 %2093
    %2095 = vrot.lane.b32.xlu0 %v2087, 122
    %v2096 = vpop.permute.xlu0 %2095
    %2097 = vrot.lane.b32.xlu0 %v2090, 122
    %v2098 = vpop.permute.xlu0 %2097
    %2099 = vrot.lane.b32.xlu0 %v2092, 122
    %v2100 = vpop.permute.xlu0 %2099
    %v2105 = vadd.f32 %v2065, %v2094
    %v2106 = vadd.f32 %v2066, %v2096
    %v2107 = vadd.f32 %v2067, %v2098
    %v2108 = vadd.f32 %v2068, %v2100
    %s2109 = sld [smem:[#allocation5 + $0x1c]]
    %v2110 = vstv %s2109
    %v2111 = vmul.f32 %v2110, %v130
    %v2112 = vmul.f32 %v2110, %v131
    %v2113 = vmul.f32 %v2110, %v132
    %v2114 = vmul.f32 %v2110, %v133
    %v2115 = vmul.f32 %v2110, %v134
    %v2116 = vmul.f32 %v2110, %v135
    %vm2123 = vcmask 1043456
    %v2124 = vrot.slane %v2111, 4
    %v2125 = vrot.slane %v2112, 4
    %v2126 = vsel %vm2123, %v2124, %v2125
    %v2127 = vrot.slane %v2113, 4
    %v2128 = vsel %vm2123, %v2125, %v2127
    %v2129 = vrot.slane %v2114, 4
    %v2130 = vrot.slane %v2115, 4
    %v2131 = vsel %vm2123, %v2129, %v2130
    %v2132 = vrot.slane %v2116, 4
    %v2133 = vsel %vm2123, %v2130, %v2132
    %v2138 = vadd.f32 %v2105, %v2126
    %v2139 = vadd.f32 %v2106, %v2128
    %v2140 = vadd.f32 %v2107, %v2131
    %v2141 = vadd.f32 %v2108, %v2133
    %s2142 = sld [smem:[#allocation5 + $0x4d]]
    %v2143 = vstv %s2142
    %v2144 = vmul.f32 %v2143, %v136
    %v2145 = vmul.f32 %v2143, %v137
    %v2146 = vmul.f32 %v2143, %v138
    %v2147 = vmul.f32 %v2143, %v139
    %v2148 = vmul.f32 %v2143, %v140
    %v2149 = vmul.f32 %v2143, %v141
    %v2156 = vrot.slane %v2144, 4
    %v2157 = vrot.slane %v2145, 4
    %v2158 = vsel %vm2123, %v2156, %v2157
    %v2159 = vrot.slane %v2146, 4
    %v2160 = vsel %vm2123, %v2157, %v2159
    %v2161 = vrot.slane %v2147, 4
    %v2162 = vrot.slane %v2148, 4
    %v2163 = vsel %vm2123, %v2161, %v2162
    %v2164 = vrot.slane %v2149, 4
    %v2165 = vsel %vm2123, %v2162, %v2164
    %v2170 = vadd.f32 %v2138, %v2158
    %v2171 = vadd.f32 %v2139, %v2160
    %v2172 = vadd.f32 %v2140, %v2163
    %v2173 = vadd.f32 %v2141, %v2165
    %s2174 = sld [smem:[#allocation5 + $0x1d]]
    %v2175 = vstv %s2174
    %v2176 = vmul.f32 %v2175, %v130
    %v2177 = vmul.f32 %v2175, %v131
    %v2178 = vmul.f32 %v2175, %v132
    %v2179 = vmul.f32 %v2175, %v133
    %v2180 = vmul.f32 %v2175, %v134
    %v2181 = vmul.f32 %v2175, %v135
    %v2188 = vrot.slane %v2176, 4
    %v2189 = vrot.slane %v2177, 4
    %v2190 = vsel %vm2123, %v2188, %v2189
    %v2191 = vrot.slane %v2178, 4
    %v2192 = vsel %vm2123, %v2189, %v2191
    %v2193 = vrot.slane %v2179, 4
    %v2194 = vrot.slane %v2180, 4
    %v2195 = vsel %vm2123, %v2193, %v2194
    %v2196 = vrot.slane %v2181, 4
    %v2197 = vsel %vm2123, %v2194, %v2196
    %2198 = vrot.lane.b32.xlu0 %v2190, 127
    %v2199 = vpop.permute.xlu0 %2198
    %2200 = vrot.lane.b32.xlu0 %v2192, 127
    %v2201 = vpop.permute.xlu0 %2200
    %2202 = vrot.lane.b32.xlu0 %v2195, 127
    %v2203 = vpop.permute.xlu0 %2202
    %2204 = vrot.lane.b32.xlu0 %v2197, 127
    %v2205 = vpop.permute.xlu0 %2204
    %v2210 = vadd.f32 %v2170, %v2199
    %v2211 = vadd.f32 %v2171, %v2201
    %v2212 = vadd.f32 %v2172, %v2203
    %v2213 = vadd.f32 %v2173, %v2205
    %s2214 = sld [smem:[#allocation5 + $0x4e]]
    %v2215 = vstv %s2214
    %v2216 = vmul.f32 %v2215, %v136
    %v2217 = vmul.f32 %v2215, %v137
    %v2218 = vmul.f32 %v2215, %v138
    %v2219 = vmul.f32 %v2215, %v139
    %v2220 = vmul.f32 %v2215, %v140
    %v2221 = vmul.f32 %v2215, %v141
    %v2228 = vrot.slane %v2216, 4
    %v2229 = vrot.slane %v2217, 4
    %v2230 = vsel %vm2123, %v2228, %v2229
    %v2231 = vrot.slane %v2218, 4
    %v2232 = vsel %vm2123, %v2229, %v2231
    %v2233 = vrot.slane %v2219, 4
    %v2234 = vrot.slane %v2220, 4
    %v2235 = vsel %vm2123, %v2233, %v2234
    %v2236 = vrot.slane %v2221, 4
    %v2237 = vsel %vm2123, %v2234, %v2236
    %2238 = vrot.lane.b32.xlu0 %v2230, 127
    %v2239 = vpop.permute.xlu0 %2238
    %2240 = vrot.lane.b32.xlu0 %v2232, 127
    %v2241 = vpop.permute.xlu0 %2240
    %2242 = vrot.lane.b32.xlu0 %v2235, 127
    %v2243 = vpop.permute.xlu0 %2242
    %2244 = vrot.lane.b32.xlu0 %v2237, 127
    %v2245 = vpop.permute.xlu0 %2244
    %v2250 = vadd.f32 %v2210, %v2239
    %v2251 = vadd.f32 %v2211, %v2241
    %v2252 = vadd.f32 %v2212, %v2243
    %v2253 = vadd.f32 %v2213, %v2245
    %s2254 = sld [smem:[#allocation5 + $0x1e]]
    %v2255 = vstv %s2254
    %v2256 = vmul.f32 %v2255, %v130
    %v2257 = vmul.f32 %v2255, %v131
    %v2258 = vmul.f32 %v2255, %v132
    %v2259 = vmul.f32 %v2255, %v133
    %v2260 = vmul.f32 %v2255, %v134
    %v2261 = vmul.f32 %v2255, %v135
    %v2268 = vrot.slane %v2256, 4
    %v2269 = vrot.slane %v2257, 4
    %v2270 = vsel %vm2123, %v2268, %v2269
    %v2271 = vrot.slane %v2258, 4
    %v2272 = vsel %vm2123, %v2269, %v2271
    %v2273 = vrot.slane %v2259, 4
    %v2274 = vrot.slane %v2260, 4
    %v2275 = vsel %vm2123, %v2273, %v2274
    %v2276 = vrot.slane %v2261, 4
    %v2277 = vsel %vm2123, %v2274, %v2276
    %2278 = vrot.lane.b32.xlu0 %v2270, 126
    %v2279 = vpop.permute.xlu0 %2278
    %2280 = vrot.lane.b32.xlu0 %v2272, 126
    %v2281 = vpop.permute.xlu0 %2280
    %2282 = vrot.lane.b32.xlu0 %v2275, 126
    %v2283 = vpop.permute.xlu0 %2282
    %2284 = vrot.lane.b32.xlu0 %v2277, 126
    %v2285 = vpop.permute.xlu0 %2284
    %v2290 = vadd.f32 %v2250, %v2279
    %v2291 = vadd.f32 %v2251, %v2281
    %v2292 = vadd.f32 %v2252, %v2283
    %v2293 = vadd.f32 %v2253, %v2285
    %s2294 = sld [smem:[#allocation5 + $0x4f]]
    %v2295 = vstv %s2294
    %v2296 = vmul.f32 %v2295, %v136
    %v2297 = vmul.f32 %v2295, %v137
    %v2298 = vmul.f32 %v2295, %v138
    %v2299 = vmul.f32 %v2295, %v139
    %v2300 = vmul.f32 %v2295, %v140
    %v2301 = vmul.f32 %v2295, %v141
    %v2308 = vrot.slane %v2296, 4
    %v2309 = vrot.slane %v2297, 4
    %v2310 = vsel %vm2123, %v2308, %v2309
    %v2311 = vrot.slane %v2298, 4
    %v2312 = vsel %vm2123, %v2309, %v2311
    %v2313 = vrot.slane %v2299, 4
    %v2314 = vrot.slane %v2300, 4
    %v2315 = vsel %vm2123, %v2313, %v2314
    %v2316 = vrot.slane %v2301, 4
    %v2317 = vsel %vm2123, %v2314, %v2316
    %2318 = vrot.lane.b32.xlu0 %v2310, 126
    %v2319 = vpop.permute.xlu0 %2318
    %2320 = vrot.lane.b32.xlu0 %v2312, 126
    %v2321 = vpop.permute.xlu0 %2320
    %2322 = vrot.lane.b32.xlu0 %v2315, 126
    %v2323 = vpop.permute.xlu0 %2322
    %2324 = vrot.lane.b32.xlu0 %v2317, 126
    %v2325 = vpop.permute.xlu0 %2324
    %v2330 = vadd.f32 %v2290, %v2319
    %v2331 = vadd.f32 %v2291, %v2321
    %v2332 = vadd.f32 %v2292, %v2323
    %v2333 = vadd.f32 %v2293, %v2325
    %s2334 = sld [smem:[#allocation5 + $0x1f]]
    %v2335 = vstv %s2334
    %v2336 = vmul.f32 %v2335, %v130
    %v2337 = vmul.f32 %v2335, %v131
    %v2338 = vmul.f32 %v2335, %v132
    %v2339 = vmul.f32 %v2335, %v133
    %v2340 = vmul.f32 %v2335, %v134
    %v2341 = vmul.f32 %v2335, %v135
    %v2348 = vrot.slane %v2336, 4
    %v2349 = vrot.slane %v2337, 4
    %v2350 = vsel %vm2123, %v2348, %v2349
    %v2351 = vrot.slane %v2338, 4
    %v2352 = vsel %vm2123, %v2349, %v2351
    %v2353 = vrot.slane %v2339, 4
    %v2354 = vrot.slane %v2340, 4
    %v2355 = vsel %vm2123, %v2353, %v2354
    %v2356 = vrot.slane %v2341, 4
    %v2357 = vsel %vm2123, %v2354, %v2356
    %2358 = vrot.lane.b32.xlu0 %v2350, 125
    %v2359 = vpop.permute.xlu0 %2358
    %2360 = vrot.lane.b32.xlu0 %v2352, 125
    %v2361 = vpop.permute.xlu0 %2360
    %2362 = vrot.lane.b32.xlu0 %v2355, 125
    %v2363 = vpop.permute.xlu0 %2362
    %2364 = vrot.lane.b32.xlu0 %v2357, 125
    %v2365 = vpop.permute.xlu0 %2364
    %v2370 = vadd.f32 %v2330, %v2359
    %v2371 = vadd.f32 %v2331, %v2361
    %v2372 = vadd.f32 %v2332, %v2363
    %v2373 = vadd.f32 %v2333, %v2365
    %s2374 = sld [smem:[#allocation5 + $0x50]]
    %v2375 = vstv %s2374
    %v2376 = vmul.f32 %v2375, %v136
    %v2377 = vmul.f32 %v2375, %v137
    %v2378 = vmul.f32 %v2375, %v138
    %v2379 = vmul.f32 %v2375, %v139
    %v2380 = vmul.f32 %v2375, %v140
    %v2381 = vmul.f32 %v2375, %v141
    %v2388 = vrot.slane %v2376, 4
    %v2389 = vrot.slane %v2377, 4
    %v2390 = vsel %vm2123, %v2388, %v2389
    %v2391 = vrot.slane %v2378, 4
    %v2392 = vsel %vm2123, %v2389, %v2391
    %v2393 = vrot.slane %v2379, 4
    %v2394 = vrot.slane %v2380, 4
    %v2395 = vsel %vm2123, %v2393, %v2394
    %v2396 = vrot.slane %v2381, 4
    %v2397 = vsel %vm2123, %v2394, %v2396
    %2398 = vrot.lane.b32.xlu0 %v2390, 125
    %v2399 = vpop.permute.xlu0 %2398
    %2400 = vrot.lane.b32.xlu0 %v2392, 125
    %v2401 = vpop.permute.xlu0 %2400
    %2402 = vrot.lane.b32.xlu0 %v2395, 125
    %v2403 = vpop.permute.xlu0 %2402
    %2404 = vrot.lane.b32.xlu0 %v2397, 125
    %v2405 = vpop.permute.xlu0 %2404
    %v2410 = vadd.f32 %v2370, %v2399
    %v2411 = vadd.f32 %v2371, %v2401
    %v2412 = vadd.f32 %v2372, %v2403
    %v2413 = vadd.f32 %v2373, %v2405
    %s2414 = sld [smem:[#allocation5 + $0x20]]
    %v2415 = vstv %s2414
    %v2416 = vmul.f32 %v2415, %v130
    %v2417 = vmul.f32 %v2415, %v131
    %v2418 = vmul.f32 %v2415, %v132
    %v2419 = vmul.f32 %v2415, %v133
    %v2420 = vmul.f32 %v2415, %v134
    %v2421 = vmul.f32 %v2415, %v135
    %v2428 = vrot.slane %v2416, 4
    %v2429 = vrot.slane %v2417, 4
    %v2430 = vsel %vm2123, %v2428, %v2429
    %v2431 = vrot.slane %v2418, 4
    %v2432 = vsel %vm2123, %v2429, %v2431
    %v2433 = vrot.slane %v2419, 4
    %v2434 = vrot.slane %v2420, 4
    %v2435 = vsel %vm2123, %v2433, %v2434
    %v2436 = vrot.slane %v2421, 4
    %v2437 = vsel %vm2123, %v2434, %v2436
    %2438 = vrot.lane.b32.xlu0 %v2430, 124
    %v2439 = vpop.permute.xlu0 %2438
    %2440 = vrot.lane.b32.xlu0 %v2432, 124
    %v2441 = vpop.permute.xlu0 %2440
    %2442 = vrot.lane.b32.xlu0 %v2435, 124
    %v2443 = vpop.permute.xlu0 %2442
    %2444 = vrot.lane.b32.xlu0 %v2437, 124
    %v2445 = vpop.permute.xlu0 %2444
    %v2450 = vadd.f32 %v2410, %v2439
    %v2451 = vadd.f32 %v2411, %v2441
    %v2452 = vadd.f32 %v2412, %v2443
    %v2453 = vadd.f32 %v2413, %v2445
    %s2454 = sld [smem:[#allocation5 + $0x51]]
    %v2455 = vstv %s2454
    %v2456 = vmul.f32 %v2455, %v136
    %v2457 = vmul.f32 %v2455, %v137
    %v2458 = vmul.f32 %v2455, %v138
    %v2459 = vmul.f32 %v2455, %v139
    %v2460 = vmul.f32 %v2455, %v140
    %v2461 = vmul.f32 %v2455, %v141
    %v2468 = vrot.slane %v2456, 4
    %v2469 = vrot.slane %v2457, 4
    %v2470 = vsel %vm2123, %v2468, %v2469
    %v2471 = vrot.slane %v2458, 4
    %v2472 = vsel %vm2123, %v2469, %v2471
    %v2473 = vrot.slane %v2459, 4
    %v2474 = vrot.slane %v2460, 4
    %v2475 = vsel %vm2123, %v2473, %v2474
    %v2476 = vrot.slane %v2461, 4
    %v2477 = vsel %vm2123, %v2474, %v2476
    %2478 = vrot.lane.b32.xlu0 %v2470, 124
    %v2479 = vpop.permute.xlu0 %2478
    %2480 = vrot.lane.b32.xlu0 %v2472, 124
    %v2481 = vpop.permute.xlu0 %2480
    %2482 = vrot.lane.b32.xlu0 %v2475, 124
    %v2483 = vpop.permute.xlu0 %2482
    %2484 = vrot.lane.b32.xlu0 %v2477, 124
    %v2485 = vpop.permute.xlu0 %2484
    %v2490 = vadd.f32 %v2450, %v2479
    %v2491 = vadd.f32 %v2451, %v2481
    %v2492 = vadd.f32 %v2452, %v2483
    %v2493 = vadd.f32 %v2453, %v2485
    %s2494 = sld [smem:[#allocation5 + $0x21]]
    %v2495 = vstv %s2494
    %v2496 = vmul.f32 %v2495, %v130
    %v2497 = vmul.f32 %v2495, %v131
    %v2498 = vmul.f32 %v2495, %v132
    %v2499 = vmul.f32 %v2495, %v133
    %v2500 = vmul.f32 %v2495, %v134
    %v2501 = vmul.f32 %v2495, %v135
    %v2508 = vrot.slane %v2496, 4
    %v2509 = vrot.slane %v2497, 4
    %v2510 = vsel %vm2123, %v2508, %v2509
    %v2511 = vrot.slane %v2498, 4
    %v2512 = vsel %vm2123, %v2509, %v2511
    %v2513 = vrot.slane %v2499, 4
    %v2514 = vrot.slane %v2500, 4
    %v2515 = vsel %vm2123, %v2513, %v2514
    %v2516 = vrot.slane %v2501, 4
    %v2517 = vsel %vm2123, %v2514, %v2516
    %2518 = vrot.lane.b32.xlu0 %v2510, 123
    %v2519 = vpop.permute.xlu0 %2518
    %2520 = vrot.lane.b32.xlu0 %v2512, 123
    %v2521 = vpop.permute.xlu0 %2520
    %2522 = vrot.lane.b32.xlu0 %v2515, 123
    %v2523 = vpop.permute.xlu0 %2522
    %2524 = vrot.lane.b32.xlu0 %v2517, 123
    %v2525 = vpop.permute.xlu0 %2524
    %v2530 = vadd.f32 %v2490, %v2519
    %v2531 = vadd.f32 %v2491, %v2521
    %v2532 = vadd.f32 %v2492, %v2523
    %v2533 = vadd.f32 %v2493, %v2525
    %s2534 = sld [smem:[#allocation5 + $0x52]]
    %v2535 = vstv %s2534
    %v2536 = vmul.f32 %v2535, %v136
    %v2537 = vmul.f32 %v2535, %v137
    %v2538 = vmul.f32 %v2535, %v138
    %v2539 = vmul.f32 %v2535, %v139
    %v2540 = vmul.f32 %v2535, %v140
    %v2541 = vmul.f32 %v2535, %v141
    %v2548 = vrot.slane %v2536, 4
    %v2549 = vrot.slane %v2537, 4
    %v2550 = vsel %vm2123, %v2548, %v2549
    %v2551 = vrot.slane %v2538, 4
    %v2552 = vsel %vm2123, %v2549, %v2551
    %v2553 = vrot.slane %v2539, 4
    %v2554 = vrot.slane %v2540, 4
    %v2555 = vsel %vm2123, %v2553, %v2554
    %v2556 = vrot.slane %v2541, 4
    %v2557 = vsel %vm2123, %v2554, %v2556
    %2558 = vrot.lane.b32.xlu0 %v2550, 123
    %v2559 = vpop.permute.xlu0 %2558
    %2560 = vrot.lane.b32.xlu0 %v2552, 123
    %v2561 = vpop.permute.xlu0 %2560
    %2562 = vrot.lane.b32.xlu0 %v2555, 123
    %v2563 = vpop.permute.xlu0 %2562
    %2564 = vrot.lane.b32.xlu0 %v2557, 123
    %v2565 = vpop.permute.xlu0 %2564
    %v2570 = vadd.f32 %v2530, %v2559
    %v2571 = vadd.f32 %v2531, %v2561
    %v2572 = vadd.f32 %v2532, %v2563
    %v2573 = vadd.f32 %v2533, %v2565
    %s2574 = sld [smem:[#allocation5 + $0x22]]
    %v2575 = vstv %s2574
    %v2576 = vmul.f32 %v2575, %v130
    %v2577 = vmul.f32 %v2575, %v131
    %v2578 = vmul.f32 %v2575, %v132
    %v2579 = vmul.f32 %v2575, %v133
    %v2580 = vmul.f32 %v2575, %v134
    %v2581 = vmul.f32 %v2575, %v135
    %v2588 = vrot.slane %v2576, 4
    %v2589 = vrot.slane %v2577, 4
    %v2590 = vsel %vm2123, %v2588, %v2589
    %v2591 = vrot.slane %v2578, 4
    %v2592 = vsel %vm2123, %v2589, %v2591
    %v2593 = vrot.slane %v2579, 4
    %v2594 = vrot.slane %v2580, 4
    %v2595 = vsel %vm2123, %v2593, %v2594
    %v2596 = vrot.slane %v2581, 4
    %v2597 = vsel %vm2123, %v2594, %v2596
    %2598 = vrot.lane.b32.xlu0 %v2590, 122
    %v2599 = vpop.permute.xlu0 %2598
    %2600 = vrot.lane.b32.xlu0 %v2592, 122
    %v2601 = vpop.permute.xlu0 %2600
    %2602 = vrot.lane.b32.xlu0 %v2595, 122
    %v2603 = vpop.permute.xlu0 %2602
    %2604 = vrot.lane.b32.xlu0 %v2597, 122
    %v2605 = vpop.permute.xlu0 %2604
    %v2610 = vadd.f32 %v2570, %v2599
    %v2611 = vadd.f32 %v2571, %v2601
    %v2612 = vadd.f32 %v2572, %v2603
    %v2613 = vadd.f32 %v2573, %v2605
    %s2614 = sld [smem:[#allocation5 + $0x53]]
    %v2615 = vstv %s2614
    %v2616 = vmul.f32 %v2615, %v136
    %v2617 = vmul.f32 %v2615, %v137
    %v2618 = vmul.f32 %v2615, %v138
    %v2619 = vmul.f32 %v2615, %v139
    %v2620 = vmul.f32 %v2615, %v140
    %v2621 = vmul.f32 %v2615, %v141
    %v2628 = vrot.slane %v2616, 4
    %v2629 = vrot.slane %v2617, 4
    %v2630 = vsel %vm2123, %v2628, %v2629
    %v2631 = vrot.slane %v2618, 4
    %v2632 = vsel %vm2123, %v2629, %v2631
    %v2633 = vrot.slane %v2619, 4
    %v2634 = vrot.slane %v2620, 4
    %v2635 = vsel %vm2123, %v2633, %v2634
    %v2636 = vrot.slane %v2621, 4
    %v2637 = vsel %vm2123, %v2634, %v2636
    %2638 = vrot.lane.b32.xlu0 %v2630, 122
    %v2639 = vpop.permute.xlu0 %2638
    %2640 = vrot.lane.b32.xlu0 %v2632, 122
    %v2641 = vpop.permute.xlu0 %2640
    %2642 = vrot.lane.b32.xlu0 %v2635, 122
    %v2643 = vpop.permute.xlu0 %2642
    %2644 = vrot.lane.b32.xlu0 %v2637, 122
    %v2645 = vpop.permute.xlu0 %2644
    %v2650 = vadd.f32 %v2610, %v2639
    %v2651 = vadd.f32 %v2611, %v2641
    %v2652 = vadd.f32 %v2612, %v2643
    %v2653 = vadd.f32 %v2613, %v2645
    %s2654 = sld [smem:[#allocation5 + $0x23]]
    %v2655 = vstv %s2654
    %v2656 = vmul.f32 %v2655, %v130
    %v2657 = vmul.f32 %v2655, %v131
    %v2658 = vmul.f32 %v2655, %v132
    %v2659 = vmul.f32 %v2655, %v133
    %v2660 = vmul.f32 %v2655, %v134
    %v2661 = vmul.f32 %v2655, %v135
    %vm2668 = vcmask 1042432
    %v2669 = vrot.slane %v2656, 5
    %v2670 = vrot.slane %v2657, 5
    %v2671 = vsel %vm2668, %v2669, %v2670
    %v2672 = vrot.slane %v2658, 5
    %v2673 = vsel %vm2668, %v2670, %v2672
    %v2674 = vrot.slane %v2659, 5
    %v2675 = vrot.slane %v2660, 5
    %v2676 = vsel %vm2668, %v2674, %v2675
    %v2677 = vrot.slane %v2661, 5
    %v2678 = vsel %vm2668, %v2675, %v2677
    %v2683 = vadd.f32 %v2650, %v2671
    %v2684 = vadd.f32 %v2651, %v2673
    %v2685 = vadd.f32 %v2652, %v2676
    %v2686 = vadd.f32 %v2653, %v2678
    %s2687 = sld [smem:[#allocation5 + $0x54]]
    %v2688 = vstv %s2687
    %v2689 = vmul.f32 %v2688, %v136
    %v2690 = vmul.f32 %v2688, %v137
    %v2691 = vmul.f32 %v2688, %v138
    %v2692 = vmul.f32 %v2688, %v139
    %v2693 = vmul.f32 %v2688, %v140
    %v2694 = vmul.f32 %v2688, %v141
    %v2701 = vrot.slane %v2689, 5
    %v2702 = vrot.slane %v2690, 5
    %v2703 = vsel %vm2668, %v2701, %v2702
    %v2704 = vrot.slane %v2691, 5
    %v2705 = vsel %vm2668, %v2702, %v2704
    %v2706 = vrot.slane %v2692, 5
    %v2707 = vrot.slane %v2693, 5
    %v2708 = vsel %vm2668, %v2706, %v2707
    %v2709 = vrot.slane %v2694, 5
    %v2710 = vsel %vm2668, %v2707, %v2709
    %v2715 = vadd.f32 %v2683, %v2703
    %v2716 = vadd.f32 %v2684, %v2705
    %v2717 = vadd.f32 %v2685, %v2708
    %v2718 = vadd.f32 %v2686, %v2710
    %s2719 = sld [smem:[#allocation5 + $0x24]]
    %v2720 = vstv %s2719
    %v2721 = vmul.f32 %v2720, %v130
    %v2722 = vmul.f32 %v2720, %v131
    %v2723 = vmul.f32 %v2720, %v132
    %v2724 = vmul.f32 %v2720, %v133
    %v2725 = vmul.f32 %v2720, %v134
    %v2726 = vmul.f32 %v2720, %v135
    %v2733 = vrot.slane %v2721, 5
    %v2734 = vrot.slane %v2722, 5
    %v2735 = vsel %vm2668, %v2733, %v2734
    %v2736 = vrot.slane %v2723, 5
    %v2737 = vsel %vm2668, %v2734, %v2736
    %v2738 = vrot.slane %v2724, 5
    %v2739 = vrot.slane %v2725, 5
    %v2740 = vsel %vm2668, %v2738, %v2739
    %v2741 = vrot.slane %v2726, 5
    %v2742 = vsel %vm2668, %v2739, %v2741
    %2743 = vrot.lane.b32.xlu0 %v2735, 127
    %v2744 = vpop.permute.xlu0 %2743
    %2745 = vrot.lane.b32.xlu0 %v2737, 127
    %v2746 = vpop.permute.xlu0 %2745
    %2747 = vrot.lane.b32.xlu0 %v2740, 127
    %v2748 = vpop.permute.xlu0 %2747
    %2749 = vrot.lane.b32.xlu0 %v2742, 127
    %v2750 = vpop.permute.xlu0 %2749
    %v2755 = vadd.f32 %v2715, %v2744
    %v2756 = vadd.f32 %v2716, %v2746
    %v2757 = vadd.f32 %v2717, %v2748
    %v2758 = vadd.f32 %v2718, %v2750
    %s2759 = sld [smem:[#allocation5 + $0x55]]
    %v2760 = vstv %s2759
    %v2761 = vmul.f32 %v2760, %v136
    %v2762 = vmul.f32 %v2760, %v137
    %v2763 = vmul.f32 %v2760, %v138
    %v2764 = vmul.f32 %v2760, %v139
    %v2765 = vmul.f32 %v2760, %v140
    %v2766 = vmul.f32 %v2760, %v141
    %v2773 = vrot.slane %v2761, 5
    %v2774 = vrot.slane %v2762, 5
    %v2775 = vsel %vm2668, %v2773, %v2774
    %v2776 = vrot.slane %v2763, 5
    %v2777 = vsel %vm2668, %v2774, %v2776
    %v2778 = vrot.slane %v2764, 5
    %v2779 = vrot.slane %v2765, 5
    %v2780 = vsel %vm2668, %v2778, %v2779
    %v2781 = vrot.slane %v2766, 5
    %v2782 = vsel %vm2668, %v2779, %v2781
    %2783 = vrot.lane.b32.xlu0 %v2775, 127
    %v2784 = vpop.permute.xlu0 %2783
    %2785 = vrot.lane.b32.xlu0 %v2777, 127
    %v2786 = vpop.permute.xlu0 %2785
    %2787 = vrot.lane.b32.xlu0 %v2780, 127
    %v2788 = vpop.permute.xlu0 %2787
    %2789 = vrot.lane.b32.xlu0 %v2782, 127
    %v2790 = vpop.permute.xlu0 %2789
    %v2795 = vadd.f32 %v2755, %v2784
    %v2796 = vadd.f32 %v2756, %v2786
    %v2797 = vadd.f32 %v2757, %v2788
    %v2798 = vadd.f32 %v2758, %v2790
    %s2799 = sld [smem:[#allocation5 + $0x25]]
    %v2800 = vstv %s2799
    %v2801 = vmul.f32 %v2800, %v130
    %v2802 = vmul.f32 %v2800, %v131
    %v2803 = vmul.f32 %v2800, %v132
    %v2804 = vmul.f32 %v2800, %v133
    %v2805 = vmul.f32 %v2800, %v134
    %v2806 = vmul.f32 %v2800, %v135
    %v2813 = vrot.slane %v2801, 5
    %v2814 = vrot.slane %v2802, 5
    %v2815 = vsel %vm2668, %v2813, %v2814
    %v2816 = vrot.slane %v2803, 5
    %v2817 = vsel %vm2668, %v2814, %v2816
    %v2818 = vrot.slane %v2804, 5
    %v2819 = vrot.slane %v2805, 5
    %v2820 = vsel %vm2668, %v2818, %v2819
    %v2821 = vrot.slane %v2806, 5
    %v2822 = vsel %vm2668, %v2819, %v2821
    %2823 = vrot.lane.b32.xlu0 %v2815, 126
    %v2824 = vpop.permute.xlu0 %2823
    %2825 = vrot.lane.b32.xlu0 %v2817, 126
    %v2826 = vpop.permute.xlu0 %2825
    %2827 = vrot.lane.b32.xlu0 %v2820, 126
    %v2828 = vpop.permute.xlu0 %2827
    %2829 = vrot.lane.b32.xlu0 %v2822, 126
    %v2830 = vpop.permute.xlu0 %2829
    %v2835 = vadd.f32 %v2795, %v2824
    %v2836 = vadd.f32 %v2796, %v2826
    %v2837 = vadd.f32 %v2797, %v2828
    %v2838 = vadd.f32 %v2798, %v2830
    %s2839 = sld [smem:[#allocation5 + $0x56]]
    %v2840 = vstv %s2839
    %v2841 = vmul.f32 %v2840, %v136
    %v2842 = vmul.f32 %v2840, %v137
    %v2843 = vmul.f32 %v2840, %v138
    %v2844 = vmul.f32 %v2840, %v139
    %v2845 = vmul.f32 %v2840, %v140
    %v2846 = vmul.f32 %v2840, %v141
    %v2853 = vrot.slane %v2841, 5
    %v2854 = vrot.slane %v2842, 5
    %v2855 = vsel %vm2668, %v2853, %v2854
    %v2856 = vrot.slane %v2843, 5
    %v2857 = vsel %vm2668, %v2854, %v2856
    %v2858 = vrot.slane %v2844, 5
    %v2859 = vrot.slane %v2845, 5
    %v2860 = vsel %vm2668, %v2858, %v2859
    %v2861 = vrot.slane %v2846, 5
    %v2862 = vsel %vm2668, %v2859, %v2861
    %2863 = vrot.lane.b32.xlu0 %v2855, 126
    %v2864 = vpop.permute.xlu0 %2863
    %2865 = vrot.lane.b32.xlu0 %v2857, 126
    %v2866 = vpop.permute.xlu0 %2865
    %2867 = vrot.lane.b32.xlu0 %v2860, 126
    %v2868 = vpop.permute.xlu0 %2867
    %2869 = vrot.lane.b32.xlu0 %v2862, 126
    %v2870 = vpop.permute.xlu0 %2869
    %v2875 = vadd.f32 %v2835, %v2864
    %v2876 = vadd.f32 %v2836, %v2866
    %v2877 = vadd.f32 %v2837, %v2868
    %v2878 = vadd.f32 %v2838, %v2870
    %s2879 = sld [smem:[#allocation5 + $0x26]]
    %v2880 = vstv %s2879
    %v2881 = vmul.f32 %v2880, %v130
    %v2882 = vmul.f32 %v2880, %v131
    %v2883 = vmul.f32 %v2880, %v132
    %v2884 = vmul.f32 %v2880, %v133
    %v2885 = vmul.f32 %v2880, %v134
    %v2886 = vmul.f32 %v2880, %v135
    %v2893 = vrot.slane %v2881, 5
    %v2894 = vrot.slane %v2882, 5
    %v2895 = vsel %vm2668, %v2893, %v2894
    %v2896 = vrot.slane %v2883, 5
    %v2897 = vsel %vm2668, %v2894, %v2896
    %v2898 = vrot.slane %v2884, 5
    %v2899 = vrot.slane %v2885, 5
    %v2900 = vsel %vm2668, %v2898, %v2899
    %v2901 = vrot.slane %v2886, 5
    %v2902 = vsel %vm2668, %v2899, %v2901
    %2903 = vrot.lane.b32.xlu0 %v2895, 125
    %v2904 = vpop.permute.xlu0 %2903
    %2905 = vrot.lane.b32.xlu0 %v2897, 125
    %v2906 = vpop.permute.xlu0 %2905
    %2907 = vrot.lane.b32.xlu0 %v2900, 125
    %v2908 = vpop.permute.xlu0 %2907
    %2909 = vrot.lane.b32.xlu0 %v2902, 125
    %v2910 = vpop.permute.xlu0 %2909
    %v2915 = vadd.f32 %v2875, %v2904
    %v2916 = vadd.f32 %v2876, %v2906
    %v2917 = vadd.f32 %v2877, %v2908
    %v2918 = vadd.f32 %v2878, %v2910
    %s2919 = sld [smem:[#allocation5 + $0x57]]
    %v2920 = vstv %s2919
    %v2921 = vmul.f32 %v2920, %v136
    %v2922 = vmul.f32 %v2920, %v137
    %v2923 = vmul.f32 %v2920, %v138
    %v2924 = vmul.f32 %v2920, %v139
    %v2925 = vmul.f32 %v2920, %v140
    %v2926 = vmul.f32 %v2920, %v141
    %v2933 = vrot.slane %v2921, 5
    %v2934 = vrot.slane %v2922, 5
    %v2935 = vsel %vm2668, %v2933, %v2934
    %v2936 = vrot.slane %v2923, 5
    %v2937 = vsel %vm2668, %v2934, %v2936
    %v2938 = vrot.slane %v2924, 5
    %v2939 = vrot.slane %v2925, 5
    %v2940 = vsel %vm2668, %v2938, %v2939
    %v2941 = vrot.slane %v2926, 5
    %v2942 = vsel %vm2668, %v2939, %v2941
    %2943 = vrot.lane.b32.xlu0 %v2935, 125
    %v2944 = vpop.permute.xlu0 %2943
    %2945 = vrot.lane.b32.xlu0 %v2937, 125
    %v2946 = vpop.permute.xlu0 %2945
    %2947 = vrot.lane.b32.xlu0 %v2940, 125
    %v2948 = vpop.permute.xlu0 %2947
    %2949 = vrot.lane.b32.xlu0 %v2942, 125
    %v2950 = vpop.permute.xlu0 %2949
    %v2955 = vadd.f32 %v2915, %v2944
    %v2956 = vadd.f32 %v2916, %v2946
    %v2957 = vadd.f32 %v2917, %v2948
    %v2958 = vadd.f32 %v2918, %v2950
    %s2959 = sld [smem:[#allocation5 + $0x27]]
    %v2960 = vstv %s2959
    %v2961 = vmul.f32 %v2960, %v130
    %v2962 = vmul.f32 %v2960, %v131
    %v2963 = vmul.f32 %v2960, %v132
    %v2964 = vmul.f32 %v2960, %v133
    %v2965 = vmul.f32 %v2960, %v134
    %v2966 = vmul.f32 %v2960, %v135
    %v2973 = vrot.slane %v2961, 5
    %v2974 = vrot.slane %v2962, 5
    %v2975 = vsel %vm2668, %v2973, %v2974
    %v2976 = vrot.slane %v2963, 5
    %v2977 = vsel %vm2668, %v2974, %v2976
    %v2978 = vrot.slane %v2964, 5
    %v2979 = vrot.slane %v2965, 5
    %v2980 = vsel %vm2668, %v2978, %v2979
    %v2981 = vrot.slane %v2966, 5
    %v2982 = vsel %vm2668, %v2979, %v2981
    %2983 = vrot.lane.b32.xlu0 %v2975, 124
    %v2984 = vpop.permute.xlu0 %2983
    %2985 = vrot.lane.b32.xlu0 %v2977, 124
    %v2986 = vpop.permute.xlu0 %2985
    %2987 = vrot.lane.b32.xlu0 %v2980, 124
    %v2988 = vpop.permute.xlu0 %2987
    %2989 = vrot.lane.b32.xlu0 %v2982, 124
    %v2990 = vpop.permute.xlu0 %2989
    %v2995 = vadd.f32 %v2955, %v2984
    %v2996 = vadd.f32 %v2956, %v2986
    %v2997 = vadd.f32 %v2957, %v2988
    %v2998 = vadd.f32 %v2958, %v2990
    %s2999 = sld [smem:[#allocation5 + $0x58]]
    %v3000 = vstv %s2999
    %v3001 = vmul.f32 %v3000, %v136
    %v3002 = vmul.f32 %v3000, %v137
    %v3003 = vmul.f32 %v3000, %v138
    %v3004 = vmul.f32 %v3000, %v139
    %v3005 = vmul.f32 %v3000, %v140
    %v3006 = vmul.f32 %v3000, %v141
    %v3013 = vrot.slane %v3001, 5
    %v3014 = vrot.slane %v3002, 5
    %v3015 = vsel %vm2668, %v3013, %v3014
    %v3016 = vrot.slane %v3003, 5
    %v3017 = vsel %vm2668, %v3014, %v3016
    %v3018 = vrot.slane %v3004, 5
    %v3019 = vrot.slane %v3005, 5
    %v3020 = vsel %vm2668, %v3018, %v3019
    %v3021 = vrot.slane %v3006, 5
    %v3022 = vsel %vm2668, %v3019, %v3021
    %3023 = vrot.lane.b32.xlu0 %v3015, 124
    %v3024 = vpop.permute.xlu0 %3023
    %3025 = vrot.lane.b32.xlu0 %v3017, 124
    %v3026 = vpop.permute.xlu0 %3025
    %3027 = vrot.lane.b32.xlu0 %v3020, 124
    %v3028 = vpop.permute.xlu0 %3027
    %3029 = vrot.lane.b32.xlu0 %v3022, 124
    %v3030 = vpop.permute.xlu0 %3029
    %v3035 = vadd.f32 %v2995, %v3024
    %v3036 = vadd.f32 %v2996, %v3026
    %v3037 = vadd.f32 %v2997, %v3028
    %v3038 = vadd.f32 %v2998, %v3030
    %s3039 = sld [smem:[#allocation5 + $0x28]]
    %v3040 = vstv %s3039
    %v3041 = vmul.f32 %v3040, %v130
    %v3042 = vmul.f32 %v3040, %v131
    %v3043 = vmul.f32 %v3040, %v132
    %v3044 = vmul.f32 %v3040, %v133
    %v3045 = vmul.f32 %v3040, %v134
    %v3046 = vmul.f32 %v3040, %v135
    %v3053 = vrot.slane %v3041, 5
    %v3054 = vrot.slane %v3042, 5
    %v3055 = vsel %vm2668, %v3053, %v3054
    %v3056 = vrot.slane %v3043, 5
    %v3057 = vsel %vm2668, %v3054, %v3056
    %v3058 = vrot.slane %v3044, 5
    %v3059 = vrot.slane %v3045, 5
    %v3060 = vsel %vm2668, %v3058, %v3059
    %v3061 = vrot.slane %v3046, 5
    %v3062 = vsel %vm2668, %v3059, %v3061
    %3063 = vrot.lane.b32.xlu0 %v3055, 123
    %v3064 = vpop.permute.xlu0 %3063
    %3065 = vrot.lane.b32.xlu0 %v3057, 123
    %v3066 = vpop.permute.xlu0 %3065
    %3067 = vrot.lane.b32.xlu0 %v3060, 123
    %v3068 = vpop.permute.xlu0 %3067
    %3069 = vrot.lane.b32.xlu0 %v3062, 123
    %v3070 = vpop.permute.xlu0 %3069
    %v3075 = vadd.f32 %v3035, %v3064
    %v3076 = vadd.f32 %v3036, %v3066
    %v3077 = vadd.f32 %v3037, %v3068
    %v3078 = vadd.f32 %v3038, %v3070
    %s3079 = sld [smem:[#allocation5 + $0x59]]
    %v3080 = vstv %s3079
    %v3081 = vmul.f32 %v3080, %v136
    %v3082 = vmul.f32 %v3080, %v137
    %v3083 = vmul.f32 %v3080, %v138
    %v3084 = vmul.f32 %v3080, %v139
    %v3085 = vmul.f32 %v3080, %v140
    %v3086 = vmul.f32 %v3080, %v141
    %v3093 = vrot.slane %v3081, 5
    %v3094 = vrot.slane %v3082, 5
    %v3095 = vsel %vm2668, %v3093, %v3094
    %v3096 = vrot.slane %v3083, 5
    %v3097 = vsel %vm2668, %v3094, %v3096
    %v3098 = vrot.slane %v3084, 5
    %v3099 = vrot.slane %v3085, 5
    %v3100 = vsel %vm2668, %v3098, %v3099
    %v3101 = vrot.slane %v3086, 5
    %v3102 = vsel %vm2668, %v3099, %v3101
    %3103 = vrot.lane.b32.xlu0 %v3095, 123
    %v3104 = vpop.permute.xlu0 %3103
    %3105 = vrot.lane.b32.xlu0 %v3097, 123
    %v3106 = vpop.permute.xlu0 %3105
    %3107 = vrot.lane.b32.xlu0 %v3100, 123
    %v3108 = vpop.permute.xlu0 %3107
    %3109 = vrot.lane.b32.xlu0 %v3102, 123
    %v3110 = vpop.permute.xlu0 %3109
    %v3115 = vadd.f32 %v3075, %v3104
    %v3116 = vadd.f32 %v3076, %v3106
    %v3117 = vadd.f32 %v3077, %v3108
    %v3118 = vadd.f32 %v3078, %v3110
    %s3119 = sld [smem:[#allocation5 + $0x29]]
    %v3120 = vstv %s3119
    %v3121 = vmul.f32 %v3120, %v130
    %v3122 = vmul.f32 %v3120, %v131
    %v3123 = vmul.f32 %v3120, %v132
    %v3124 = vmul.f32 %v3120, %v133
    %v3125 = vmul.f32 %v3120, %v134
    %v3126 = vmul.f32 %v3120, %v135
    %v3133 = vrot.slane %v3121, 5
    %v3134 = vrot.slane %v3122, 5
    %v3135 = vsel %vm2668, %v3133, %v3134
    %v3136 = vrot.slane %v3123, 5
    %v3137 = vsel %vm2668, %v3134, %v3136
    %v3138 = vrot.slane %v3124, 5
    %v3139 = vrot.slane %v3125, 5
    %v3140 = vsel %vm2668, %v3138, %v3139
    %v3141 = vrot.slane %v3126, 5
    %v3142 = vsel %vm2668, %v3139, %v3141
    %3143 = vrot.lane.b32.xlu0 %v3135, 122
    %v3144 = vpop.permute.xlu0 %3143
    %3145 = vrot.lane.b32.xlu0 %v3137, 122
    %v3146 = vpop.permute.xlu0 %3145
    %3147 = vrot.lane.b32.xlu0 %v3140, 122
    %v3148 = vpop.permute.xlu0 %3147
    %3149 = vrot.lane.b32.xlu0 %v3142, 122
    %v3150 = vpop.permute.xlu0 %3149
    %v3155 = vadd.f32 %v3115, %v3144
    %v3156 = vadd.f32 %v3116, %v3146
    %v3157 = vadd.f32 %v3117, %v3148
    %v3158 = vadd.f32 %v3118, %v3150
    %s3159 = sld [smem:[#allocation5 + $0x5a]]
    %v3160 = vstv %s3159
    %v3161 = vmul.f32 %v3160, %v136
    %v3162 = vmul.f32 %v3160, %v137
    %v3163 = vmul.f32 %v3160, %v138
    %v3164 = vmul.f32 %v3160, %v139
    %v3165 = vmul.f32 %v3160, %v140
    %v3166 = vmul.f32 %v3160, %v141
    %v3173 = vrot.slane %v3161, 5
    %v3174 = vrot.slane %v3162, 5
    %v3175 = vsel %vm2668, %v3173, %v3174
    %v3176 = vrot.slane %v3163, 5
    %v3177 = vsel %vm2668, %v3174, %v3176
    %v3178 = vrot.slane %v3164, 5
    %v3179 = vrot.slane %v3165, 5
    %v3180 = vsel %vm2668, %v3178, %v3179
    %v3181 = vrot.slane %v3166, 5
    %v3182 = vsel %vm2668, %v3179, %v3181
    %3183 = vrot.lane.b32.xlu0 %v3175, 122
    %v3184 = vpop.permute.xlu0 %3183
    %3185 = vrot.lane.b32.xlu0 %v3177, 122
    %v3186 = vpop.permute.xlu0 %3185
    %3187 = vrot.lane.b32.xlu0 %v3180, 122
    %v3188 = vpop.permute.xlu0 %3187
    %3189 = vrot.lane.b32.xlu0 %v3182, 122
    %v3190 = vpop.permute.xlu0 %3189
    %v3195 = vadd.f32 %v3155, %v3184
    %v3196 = vadd.f32 %v3156, %v3186
    %v3197 = vadd.f32 %v3157, %v3188
    %v3198 = vadd.f32 %v3158, %v3190
    %s3199 = sld [smem:[#allocation5 + $0x2a]]
    %v3200 = vstv %s3199
    %v3201 = vmul.f32 %v3200, %v130
    %v3202 = vmul.f32 %v3200, %v131
    %v3203 = vmul.f32 %v3200, %v132
    %v3204 = vmul.f32 %v3200, %v133
    %v3205 = vmul.f32 %v3200, %v134
    %v3206 = vmul.f32 %v3200, %v135
    %vm3213 = vcmask 1041408
    %v3214 = vrot.slane %v3201, 6
    %v3215 = vrot.slane %v3202, 6
    %v3216 = vsel %vm3213, %v3214, %v3215
    %v3217 = vrot.slane %v3203, 6
    %v3218 = vsel %vm3213, %v3215, %v3217
    %v3219 = vrot.slane %v3204, 6
    %v3220 = vrot.slane %v3205, 6
    %v3221 = vsel %vm3213, %v3219, %v3220
    %v3222 = vrot.slane %v3206, 6
    %v3223 = vsel %vm3213, %v3220, %v3222
    %v3228 = vadd.f32 %v3195, %v3216
    %v3229 = vadd.f32 %v3196, %v3218
    %v3230 = vadd.f32 %v3197, %v3221
    %v3231 = vadd.f32 %v3198, %v3223
    %s3232 = sld [smem:[#allocation5 + $0x5b]]
    %v3233 = vstv %s3232
    %v3234 = vmul.f32 %v3233, %v136
    %v3235 = vmul.f32 %v3233, %v137
    %v3236 = vmul.f32 %v3233, %v138
    %v3237 = vmul.f32 %v3233, %v139
    %v3238 = vmul.f32 %v3233, %v140
    %v3239 = vmul.f32 %v3233, %v141
    %v3246 = vrot.slane %v3234, 6
    %v3247 = vrot.slane %v3235, 6
    %v3248 = vsel %vm3213, %v3246, %v3247
    %v3249 = vrot.slane %v3236, 6
    %v3250 = vsel %vm3213, %v3247, %v3249
    %v3251 = vrot.slane %v3237, 6
    %v3252 = vrot.slane %v3238, 6
    %v3253 = vsel %vm3213, %v3251, %v3252
    %v3254 = vrot.slane %v3239, 6
    %v3255 = vsel %vm3213, %v3252, %v3254
    %v3260 = vadd.f32 %v3228, %v3248
    %v3261 = vadd.f32 %v3229, %v3250
    %v3262 = vadd.f32 %v3230, %v3253
    %v3263 = vadd.f32 %v3231, %v3255
    %s3264 = sld [smem:[#allocation5 + $0x2b]]
    %v3265 = vstv %s3264
    %v3266 = vmul.f32 %v3265, %v130
    %v3267 = vmul.f32 %v3265, %v131
    %v3268 = vmul.f32 %v3265, %v132
    %v3269 = vmul.f32 %v3265, %v133
    %v3270 = vmul.f32 %v3265, %v134
    %v3271 = vmul.f32 %v3265, %v135
    %v3278 = vrot.slane %v3266, 6
    %v3279 = vrot.slane %v3267, 6
    %v3280 = vsel %vm3213, %v3278, %v3279
    %v3281 = vrot.slane %v3268, 6
    %v3282 = vsel %vm3213, %v3279, %v3281
    %v3283 = vrot.slane %v3269, 6
    %v3284 = vrot.slane %v3270, 6
    %v3285 = vsel %vm3213, %v3283, %v3284
    %v3286 = vrot.slane %v3271, 6
    %v3287 = vsel %vm3213, %v3284, %v3286
    %3288 = vrot.lane.b32.xlu0 %v3280, 127
    %v3289 = vpop.permute.xlu0 %3288
    %3290 = vrot.lane.b32.xlu0 %v3282, 127
    %v3291 = vpop.permute.xlu0 %3290
    %3292 = vrot.lane.b32.xlu0 %v3285, 127
    %v3293 = vpop.permute.xlu0 %3292
    %3294 = vrot.lane.b32.xlu0 %v3287, 127
    %v3295 = vpop.permute.xlu0 %3294
    %v3300 = vadd.f32 %v3260, %v3289
    %v3301 = vadd.f32 %v3261, %v3291
    %v3302 = vadd.f32 %v3262, %v3293
    %v3303 = vadd.f32 %v3263, %v3295
    %s3304 = sld [smem:[#allocation5 + $0x5c]]
    %v3305 = vstv %s3304
    %v3306 = vmul.f32 %v3305, %v136
    %v3307 = vmul.f32 %v3305, %v137
    %v3308 = vmul.f32 %v3305, %v138
    %v3309 = vmul.f32 %v3305, %v139
    %v3310 = vmul.f32 %v3305, %v140
    %v3311 = vmul.f32 %v3305, %v141
    %v3318 = vrot.slane %v3306, 6
    %v3319 = vrot.slane %v3307, 6
    %v3320 = vsel %vm3213, %v3318, %v3319
    %v3321 = vrot.slane %v3308, 6
    %v3322 = vsel %vm3213, %v3319, %v3321
    %v3323 = vrot.slane %v3309, 6
    %v3324 = vrot.slane %v3310, 6
    %v3325 = vsel %vm3213, %v3323, %v3324
    %v3326 = vrot.slane %v3311, 6
    %v3327 = vsel %vm3213, %v3324, %v3326
    %3328 = vrot.lane.b32.xlu0 %v3320, 127
    %v3329 = vpop.permute.xlu0 %3328
    %3330 = vrot.lane.b32.xlu0 %v3322, 127
    %v3331 = vpop.permute.xlu0 %3330
    %3332 = vrot.lane.b32.xlu0 %v3325, 127
    %v3333 = vpop.permute.xlu0 %3332
    %3334 = vrot.lane.b32.xlu0 %v3327, 127
    %v3335 = vpop.permute.xlu0 %3334
    %v3340 = vadd.f32 %v3300, %v3329
    %v3341 = vadd.f32 %v3301, %v3331
    %v3342 = vadd.f32 %v3302, %v3333
    %v3343 = vadd.f32 %v3303, %v3335
    %s3344 = sld [smem:[#allocation5 + $0x2c]]
    %v3345 = vstv %s3344
    %v3346 = vmul.f32 %v3345, %v130
    %v3347 = vmul.f32 %v3345, %v131
    %v3348 = vmul.f32 %v3345, %v132
    %v3349 = vmul.f32 %v3345, %v133
    %v3350 = vmul.f32 %v3345, %v134
    %v3351 = vmul.f32 %v3345, %v135
    %v3358 = vrot.slane %v3346, 6
    %v3359 = vrot.slane %v3347, 6
    %v3360 = vsel %vm3213, %v3358, %v3359
    %v3361 = vrot.slane %v3348, 6
    %v3362 = vsel %vm3213, %v3359, %v3361
    %v3363 = vrot.slane %v3349, 6
    %v3364 = vrot.slane %v3350, 6
    %v3365 = vsel %vm3213, %v3363, %v3364
    %v3366 = vrot.slane %v3351, 6
    %v3367 = vsel %vm3213, %v3364, %v3366
    %3368 = vrot.lane.b32.xlu0 %v3360, 126
    %v3369 = vpop.permute.xlu0 %3368
    %3370 = vrot.lane.b32.xlu0 %v3362, 126
    %v3371 = vpop.permute.xlu0 %3370
    %3372 = vrot.lane.b32.xlu0 %v3365, 126
    %v3373 = vpop.permute.xlu0 %3372
    %3374 = vrot.lane.b32.xlu0 %v3367, 126
    %v3375 = vpop.permute.xlu0 %3374
    %v3380 = vadd.f32 %v3340, %v3369
    %v3381 = vadd.f32 %v3341, %v3371
    %v3382 = vadd.f32 %v3342, %v3373
    %v3383 = vadd.f32 %v3343, %v3375
    %s3384 = sld [smem:[#allocation5 + $0x5d]]
    %v3385 = vstv %s3384
    %v3386 = vmul.f32 %v3385, %v136
    %v3387 = vmul.f32 %v3385, %v137
    %v3388 = vmul.f32 %v3385, %v138
    %v3389 = vmul.f32 %v3385, %v139
    %v3390 = vmul.f32 %v3385, %v140
    %v3391 = vmul.f32 %v3385, %v141
    %v3398 = vrot.slane %v3386, 6
    %v3399 = vrot.slane %v3387, 6
    %v3400 = vsel %vm3213, %v3398, %v3399
    %v3401 = vrot.slane %v3388, 6
    %v3402 = vsel %vm3213, %v3399, %v3401
    %v3403 = vrot.slane %v3389, 6
    %v3404 = vrot.slane %v3390, 6
    %v3405 = vsel %vm3213, %v3403, %v3404
    %v3406 = vrot.slane %v3391, 6
    %v3407 = vsel %vm3213, %v3404, %v3406
    %3408 = vrot.lane.b32.xlu0 %v3400, 126
    %v3409 = vpop.permute.xlu0 %3408
    %3410 = vrot.lane.b32.xlu0 %v3402, 126
    %v3411 = vpop.permute.xlu0 %3410
    %3412 = vrot.lane.b32.xlu0 %v3405, 126
    %v3413 = vpop.permute.xlu0 %3412
    %3414 = vrot.lane.b32.xlu0 %v3407, 126
    %v3415 = vpop.permute.xlu0 %3414
    %v3420 = vadd.f32 %v3380, %v3409
    %v3421 = vadd.f32 %v3381, %v3411
    %v3422 = vadd.f32 %v3382, %v3413
    %v3423 = vadd.f32 %v3383, %v3415
    %s3424 = sld [smem:[#allocation5 + $0x2d]]
    %v3425 = vstv %s3424
    %v3426 = vmul.f32 %v3425, %v130
    %v3427 = vmul.f32 %v3425, %v131
    %v3428 = vmul.f32 %v3425, %v132
    %v3429 = vmul.f32 %v3425, %v133
    %v3430 = vmul.f32 %v3425, %v134
    %v3431 = vmul.f32 %v3425, %v135
    %v3438 = vrot.slane %v3426, 6
    %v3439 = vrot.slane %v3427, 6
    %v3440 = vsel %vm3213, %v3438, %v3439
    %v3441 = vrot.slane %v3428, 6
    %v3442 = vsel %vm3213, %v3439, %v3441
    %v3443 = vrot.slane %v3429, 6
    %v3444 = vrot.slane %v3430, 6
    %v3445 = vsel %vm3213, %v3443, %v3444
    %v3446 = vrot.slane %v3431, 6
    %v3447 = vsel %vm3213, %v3444, %v3446
    %3448 = vrot.lane.b32.xlu0 %v3440, 125
    %v3449 = vpop.permute.xlu0 %3448
    %3450 = vrot.lane.b32.xlu0 %v3442, 125
    %v3451 = vpop.permute.xlu0 %3450
    %3452 = vrot.lane.b32.xlu0 %v3445, 125
    %v3453 = vpop.permute.xlu0 %3452
    %3454 = vrot.lane.b32.xlu0 %v3447, 125
    %v3455 = vpop.permute.xlu0 %3454
    %v3460 = vadd.f32 %v3420, %v3449
    %v3461 = vadd.f32 %v3421, %v3451
    %v3462 = vadd.f32 %v3422, %v3453
    %v3463 = vadd.f32 %v3423, %v3455
    %s3464 = sld [smem:[#allocation5 + $0x5e]]
    %v3465 = vstv %s3464
    %v3466 = vmul.f32 %v3465, %v136
    %v3467 = vmul.f32 %v3465, %v137
    %v3468 = vmul.f32 %v3465, %v138
    %v3469 = vmul.f32 %v3465, %v139
    %v3470 = vmul.f32 %v3465, %v140
    %v3471 = vmul.f32 %v3465, %v141
    %v3478 = vrot.slane %v3466, 6
    %v3479 = vrot.slane %v3467, 6
    %v3480 = vsel %vm3213, %v3478, %v3479
    %v3481 = vrot.slane %v3468, 6
    %v3482 = vsel %vm3213, %v3479, %v3481
    %v3483 = vrot.slane %v3469, 6
    %v3484 = vrot.slane %v3470, 6
    %v3485 = vsel %vm3213, %v3483, %v3484
    %v3486 = vrot.slane %v3471, 6
    %v3487 = vsel %vm3213, %v3484, %v3486
    %3488 = vrot.lane.b32.xlu0 %v3480, 125
    %v3489 = vpop.permute.xlu0 %3488
    %3490 = vrot.lane.b32.xlu0 %v3482, 125
    %v3491 = vpop.permute.xlu0 %3490
    %3492 = vrot.lane.b32.xlu0 %v3485, 125
    %v3493 = vpop.permute.xlu0 %3492
    %3494 = vrot.lane.b32.xlu0 %v3487, 125
    %v3495 = vpop.permute.xlu0 %3494
    %v3500 = vadd.f32 %v3460, %v3489
    %v3501 = vadd.f32 %v3461, %v3491
    %v3502 = vadd.f32 %v3462, %v3493
    %v3503 = vadd.f32 %v3463, %v3495
    %s3504 = sld [smem:[#allocation5 + $0x2e]]
    %v3505 = vstv %s3504
    %v3506 = vmul.f32 %v3505, %v130
    %v3507 = vmul.f32 %v3505, %v131
    %v3508 = vmul.f32 %v3505, %v132
    %v3509 = vmul.f32 %v3505, %v133
    %v3510 = vmul.f32 %v3505, %v134
    %v3511 = vmul.f32 %v3505, %v135
    %v3518 = vrot.slane %v3506, 6
    %v3519 = vrot.slane %v3507, 6
    %v3520 = vsel %vm3213, %v3518, %v3519
    %v3521 = vrot.slane %v3508, 6
    %v3522 = vsel %vm3213, %v3519, %v3521
    %v3523 = vrot.slane %v3509, 6
    %v3524 = vrot.slane %v3510, 6
    %v3525 = vsel %vm3213, %v3523, %v3524
    %v3526 = vrot.slane %v3511, 6
    %v3527 = vsel %vm3213, %v3524, %v3526
    %3528 = vrot.lane.b32.xlu0 %v3520, 124
    %v3529 = vpop.permute.xlu0 %3528
    %3530 = vrot.lane.b32.xlu0 %v3522, 124
    %v3531 = vpop.permute.xlu0 %3530
    %3532 = vrot.lane.b32.xlu0 %v3525, 124
    %v3533 = vpop.permute.xlu0 %3532
    %3534 = vrot.lane.b32.xlu0 %v3527, 124
    %v3535 = vpop.permute.xlu0 %3534
    %v3540 = vadd.f32 %v3500, %v3529
    %v3541 = vadd.f32 %v3501, %v3531
    %v3542 = vadd.f32 %v3502, %v3533
    %v3543 = vadd.f32 %v3503, %v3535
    %s3544 = sld [smem:[#allocation5 + $0x5f]]
    %v3545 = vstv %s3544
    %v3546 = vmul.f32 %v3545, %v136
    %v3547 = vmul.f32 %v3545, %v137
    %v3548 = vmul.f32 %v3545, %v138
    %v3549 = vmul.f32 %v3545, %v139
    %v3550 = vmul.f32 %v3545, %v140
    %v3551 = vmul.f32 %v3545, %v141
    %v3558 = vrot.slane %v3546, 6
    %v3559 = vrot.slane %v3547, 6
    %v3560 = vsel %vm3213, %v3558, %v3559
    %v3561 = vrot.slane %v3548, 6
    %v3562 = vsel %vm3213, %v3559, %v3561
    %v3563 = vrot.slane %v3549, 6
    %v3564 = vrot.slane %v3550, 6
    %v3565 = vsel %vm3213, %v3563, %v3564
    %v3566 = vrot.slane %v3551, 6
    %v3567 = vsel %vm3213, %v3564, %v3566
    %3568 = vrot.lane.b32.xlu0 %v3560, 124
    %v3569 = vpop.permute.xlu0 %3568
    %3570 = vrot.lane.b32.xlu0 %v3562, 124
    %v3571 = vpop.permute.xlu0 %3570
    %3572 = vrot.lane.b32.xlu0 %v3565, 124
    %v3573 = vpop.permute.xlu0 %3572
    %3574 = vrot.lane.b32.xlu0 %v3567, 124
    %v3575 = vpop.permute.xlu0 %3574
    %v3580 = vadd.f32 %v3540, %v3569
    %v3581 = vadd.f32 %v3541, %v3571
    %v3582 = vadd.f32 %v3542, %v3573
    %v3583 = vadd.f32 %v3543, %v3575
    %s3584 = sld [smem:[#allocation5 + $0x2f]]
    %v3585 = vstv %s3584
    %v3586 = vmul.f32 %v3585, %v130
    %v3587 = vmul.f32 %v3585, %v131
    %v3588 = vmul.f32 %v3585, %v132
    %v3589 = vmul.f32 %v3585, %v133
    %v3590 = vmul.f32 %v3585, %v134
    %v3591 = vmul.f32 %v3585, %v135
    %v3598 = vrot.slane %v3586, 6
    %v3599 = vrot.slane %v3587, 6
    %v3600 = vsel %vm3213, %v3598, %v3599
    %v3601 = vrot.slane %v3588, 6
    %v3602 = vsel %vm3213, %v3599, %v3601
    %v3603 = vrot.slane %v3589, 6
    %v3604 = vrot.slane %v3590, 6
    %v3605 = vsel %vm3213, %v3603, %v3604
    %v3606 = vrot.slane %v3591, 6
    %v3607 = vsel %vm3213, %v3604, %v3606
    %3608 = vrot.lane.b32.xlu0 %v3600, 123
    %v3609 = vpop.permute.xlu0 %3608
    %3610 = vrot.lane.b32.xlu0 %v3602, 123
    %v3611 = vpop.permute.xlu0 %3610
    %3612 = vrot.lane.b32.xlu0 %v3605, 123
    %v3613 = vpop.permute.xlu0 %3612
    %3614 = vrot.lane.b32.xlu0 %v3607, 123
    %v3615 = vpop.permute.xlu0 %3614
    %v3620 = vadd.f32 %v3580, %v3609
    %v3621 = vadd.f32 %v3581, %v3611
    %v3622 = vadd.f32 %v3582, %v3613
    %v3623 = vadd.f32 %v3583, %v3615
    %s3624 = sld [smem:[#allocation5 + $0x60]]
    %v3625 = vstv %s3624
    %v3626 = vmul.f32 %v3625, %v136
    %v3627 = vmul.f32 %v3625, %v137
    %v3628 = vmul.f32 %v3625, %v138
    %v3629 = vmul.f32 %v3625, %v139
    %v3630 = vmul.f32 %v3625, %v140
    %v3631 = vmul.f32 %v3625, %v141
    %v3638 = vrot.slane %v3626, 6
    %v3639 = vrot.slane %v3627, 6
    %v3640 = vsel %vm3213, %v3638, %v3639
    %v3641 = vrot.slane %v3628, 6
    %v3642 = vsel %vm3213, %v3639, %v3641
    %v3643 = vrot.slane %v3629, 6
    %v3644 = vrot.slane %v3630, 6
    %v3645 = vsel %vm3213, %v3643, %v3644
    %v3646 = vrot.slane %v3631, 6
    %v3647 = vsel %vm3213, %v3644, %v3646
    %3648 = vrot.lane.b32.xlu0 %v3640, 123
    %v3649 = vpop.permute.xlu0 %3648
    %3650 = vrot.lane.b32.xlu0 %v3642, 123
    %v3651 = vpop.permute.xlu0 %3650
    %3652 = vrot.lane.b32.xlu0 %v3645, 123
    %v3653 = vpop.permute.xlu0 %3652
    %3654 = vrot.lane.b32.xlu0 %v3647, 123
    %v3655 = vpop.permute.xlu0 %3654
    %v3660 = vadd.f32 %v3620, %v3649
    %v3661 = vadd.f32 %v3621, %v3651
    %v3662 = vadd.f32 %v3622, %v3653
    %v3663 = vadd.f32 %v3623, %v3655
    %s3664 = sld [smem:[#allocation5 + $0x30]]
    %v3665 = vstv %s3664
    %v3666 = vmul.f32 %v3665, %v130
    %v3667 = vmul.f32 %v3665, %v131
    %v3668 = vmul.f32 %v3665, %v132
    %v3669 = vmul.f32 %v3665, %v133
    %v3670 = vmul.f32 %v3665, %v134
    %v3671 = vmul.f32 %v3665, %v135
    %v3678 = vrot.slane %v3666, 6
    %v3679 = vrot.slane %v3667, 6
    %v3680 = vsel %vm3213, %v3678, %v3679
    %v3681 = vrot.slane %v3668, 6
    %v3682 = vsel %vm3213, %v3679, %v3681
    %v3683 = vrot.slane %v3669, 6
    %v3684 = vrot.slane %v3670, 6
    %v3685 = vsel %vm3213, %v3683, %v3684
    %v3686 = vrot.slane %v3671, 6
    %v3687 = vsel %vm3213, %v3684, %v3686
    %3688 = vrot.lane.b32.xlu0 %v3680, 122
    %v3689 = vpop.permute.xlu0 %3688
    %3690 = vrot.lane.b32.xlu0 %v3682, 122
    %v3691 = vpop.permute.xlu0 %3690
    %3692 = vrot.lane.b32.xlu0 %v3685, 122
    %v3693 = vpop.permute.xlu0 %3692
    %3694 = vrot.lane.b32.xlu0 %v3687, 122
    %v3695 = vpop.permute.xlu0 %3694
    %v3700 = vadd.f32 %v3660, %v3689
    %v3701 = vadd.f32 %v3661, %v3691
    %v3702 = vadd.f32 %v3662, %v3693
    %v3703 = vadd.f32 %v3663, %v3695
    %s3704 = sld [smem:[#allocation5 + $0x61]]
    %v3705 = vstv %s3704
    %v3706 = vmul.f32 %v3705, %v136
    %v3707 = vmul.f32 %v3705, %v137
    %v3708 = vmul.f32 %v3705, %v138
    %v3709 = vmul.f32 %v3705, %v139
    %v3710 = vmul.f32 %v3705, %v140
    %v3711 = vmul.f32 %v3705, %v141
    %v3718 = vrot.slane %v3706, 6
    %v3719 = vrot.slane %v3707, 6
    %v3720 = vsel %vm3213, %v3718, %v3719
    %v3721 = vrot.slane %v3708, 6
    %v3722 = vsel %vm3213, %v3719, %v3721
    %v3723 = vrot.slane %v3709, 6
    %v3724 = vrot.slane %v3710, 6
    %v3725 = vsel %vm3213, %v3723, %v3724
    %v3726 = vrot.slane %v3711, 6
    %v3727 = vsel %vm3213, %v3724, %v3726
    %3728 = vrot.lane.b32.xlu0 %v3720, 122
    %v3729 = vpop.permute.xlu0 %3728
    %3730 = vrot.lane.b32.xlu0 %v3722, 122
    %v3731 = vpop.permute.xlu0 %3730
    %3732 = vrot.lane.b32.xlu0 %v3725, 122
    %v3733 = vpop.permute.xlu0 %3732
    %3734 = vrot.lane.b32.xlu0 %v3727, 122
    %v3735 = vpop.permute.xlu0 %3734
    %v3740 = vadd.f32 %v3700, %v3729
    %v3741 = vadd.f32 %v3701, %v3731
    %v3742 = vadd.f32 %v3702, %v3733
    %v3743 = vadd.f32 %v3703, %v3735
    %v3744 = vxor.u32 %v3740, 2147483648
    %v3745 = vxor.u32 %v3741, 2147483648
    %v3746 = vxor.u32 %v3742, 2147483648
    %v3747 = vxor.u32 %v3743, 2147483648
    %v3748 = vmul.f32 %v3744, 1.442695
    %v3749 = vpow.pop %v3748
    %v3750 = vmul.f32 %v3745, 1.442695
    %v3751 = vpow.pop %v3750
    %v3752 = vmul.f32 %v3746, 1.442695
    %v3753 = vpow.pop %v3752
    %v3754 = vmul.f32 %v3747, 1.442695
    %v3755 = vpow.pop %v3754
    %v3756 = vadd.f32 %v3749, 1.0
    %v3757 = vadd.f32 %v3751, 1.0
    %v3758 = vadd.f32 %v3753, 1.0
    %v3759 = vadd.f32 %v3755, 1.0
    %v3760 = vrcp.pop %v3756
    %v3761 = vmul.f32 1.0, %v3760
    %v3762 = vrcp.pop %v3757
    %v3763 = vmul.f32 1.0, %v3762
    %v3764 = vrcp.pop %v3758
    %v3765 = vmul.f32 1.0, %v3764
    %v3766 = vrcp.pop %v3759
    %v3767 = vmul.f32 1.0, %v3766
    %vm3768 = vcmask 130048
    %3769 = vst.msk [vmem:[#allocation9] sm:$0xff] %vm3768, %v3761
    %3770 = vst.msk [vmem:[#allocation9 + $0x8] sm:$0xff] %vm3768, %v3763
    %3771 = vst.msk [vmem:[#allocation9 + $0x10] sm:$0xff] %vm3768, %v3765
    %3772 = vst.msk [vmem:[#allocation9 + $0x18] sm:$0xff] %vm3768, %v3767
    // Predicated region
    $region10: #{tpu_custom_call.1} parent=1 // pred_check
      _
    $region11: #{tpu_custom_call.1} parent=1 // pred_check_branch
      %3774 = sbr.rel (0) target = $region13
    $region12: #{tpu_custom_call.1} parent=1 // pred_region
      %s3776 = ssub.s32 512, 512
      %3777 = vsyncadd [#allocation8], %s3776
      %s3778 = sshll.u32 [#allocation9], 4
      %s3779 = int_to_ptr.vmem [resolvable:$true] %s3778
      %3784 = dma.vmem_to_hbm [thread:$0]  %s3779, 512, %s2, [#allocation8], 128, 128, 8
    $region13: #{tpu_custom_call.1} parent=1 // pred_fallthru
      _
    // Predicated region
    $region14: #{tpu_custom_call.1} parent=1 // pred_check
      _
    $region15: #{tpu_custom_call.1} parent=1 // pred_check_branch
      %3786 = sbr.rel (0) target = $region17
    $region16: #{tpu_custom_call.1} parent=1 // pred_region
      %3787 = dma.done [#allocation8], 512
    $region17: #{tpu_custom_call.1} parent=1 // pred_fallthru
      _
    %3788 = vsyncpa [#allocation7], 1
    %3789 = vsyncpa [#allocation8], 1

</llo_original>
